<compile_context>
chip_gen: v7x
topology: tpu7x:2x2x1
jax: 0.10.0
libtpu: 0.0.40
codegen_flags: <defaults>
</compile_context>

<pallas_src>
import functools

import jax
import jax.numpy as jnp
from jax.experimental import pallas as pl
from jax.experimental.pallas import tpu as pltpu


def attentions_kernel(xq_ref, xc_ref,
                      wq1_ref, wk1_ref, wv1_ref, wo1_ref, bo1_ref,
                      wq2_ref, wk2_ref, wv2_ref, wo2_ref, bo2_ref,
                      wn_ref, bn_ref,
                      o_ref,
                      k1_sc, v1_sc, k2_sc, v2_sc, ho_sc,
                      *, n_heads, d_head, kv_chunk, compute_dtype):
    cd = compute_dtype

    # ---- Cache context K/V once per batch (context is the original x for both
    # attention layers); reused across all q-row tiles of this batch. ----------
    @pl.when(pl.program_id(1) == 0)
    def _():
        ctx = xc_ref[...].astype(cd)                                    # (Nc, D)
        k1_sc[...] = jnp.dot(ctx, wk1_ref[...],
                             preferred_element_type=jnp.float32).astype(cd)
        v1_sc[...] = jnp.dot(ctx, wv1_ref[...],
                             preferred_element_type=jnp.float32).astype(cd)
        k2_sc[...] = jnp.dot(ctx, wk2_ref[...],
                             preferred_element_type=jnp.float32).astype(cd)
        v2_sc[...] = jnp.dot(ctx, wv2_ref[...],
                             preferred_element_type=jnp.float32).astype(cd)

    x = xq_ref[...].astype(jnp.float32)                                 # (tq, D) f32 residual path
    tq = x.shape[0]
    n_chunks = k1_sc.shape[0] // kv_chunk

    def attention(q_in, wq_ref, wo_ref, bo_ref, k_sc, v_sc):
        # 1/sqrt(d_head) already folded into wq; cast q once to compute dtype.
        q = jnp.dot(q_in.astype(cd), wq_ref[...],
                    preferred_element_type=jnp.float32).astype(cd)      # (tq, inner)
        for h in range(n_heads):
            hs = slice(h * d_head, (h + 1) * d_head)
            qh = q[:, hs]                                               # (tq, dh)
            m = jnp.full((tq, 1), -jnp.inf, jnp.float32)
            l = jnp.zeros((tq, 1), jnp.float32)
            acc = jnp.zeros((tq, d_head), jnp.float32)
            # Online softmax over kv chunks: sim never exceeds (tq, kv_chunk).
            for c in range(n_chunks):
                rows = slice(c * kv_chunk, (c + 1) * kv_chunk)
                kh = k_sc[rows, hs]                                     # (tkv, dh), cd
                vh = v_sc[rows, hs]                                     # (tkv, dh), cd
                # qh @ kh.T without an explicit transpose (NT dot_general).
                s = jax.lax.dot_general(
                    qh, kh, dimension_numbers=(((1,), (1,)), ((), ())),
                    preferred_element_type=jnp.float32)                 # (tq, tkv) f32
                m_new = jnp.maximum(m, jnp.max(s, axis=-1, keepdims=True))
                alpha = jnp.exp(m - m_new)
                p = jnp.exp(s - m_new)
                l = alpha * l + jnp.sum(p, axis=-1, keepdims=True)
                acc = alpha * acc + jnp.dot(p.astype(cd), vh,
                                            preferred_element_type=jnp.float32)
                m = m_new
            # EUP approximate reciprocal (separate VLIW slot, ~free).
            ho_sc[:, hs] = acc * pl.reciprocal(l, approx=True)
        # Single (tq, inner) @ (inner, D) output projection — no per-head K=d_head
        # matmul folds, no lane concat.
        out = jnp.dot(ho_sc[...].astype(cd), wo_ref[...],
                      preferred_element_type=jnp.float32)               # (tq, D)
        return out + bo_ref[...].astype(jnp.float32)

    # x_1 = attn1(x, x) + x              (self-attention)
    x1 = attention(x, wq1_ref, wo1_ref, bo1_ref, k1_sc, v1_sc) + x
    # x_2 = attn2(x_1, x) + x_1          (cross-attention, context = original x)
    x2 = attention(x1, wq2_ref, wo2_ref, bo2_ref, k2_sc, v2_sc) + x1
    # x_3 = Dropout(0.0) -> Linear(dim, dim)
    x3 = jnp.dot(x2.astype(cd), wn_ref[...],
                 preferred_element_type=jnp.float32) + bn_ref[...].astype(jnp.float32)

    o_ref[...] = x3.astype(o_ref.dtype)


def attentions_forward(x, params, *, n_heads, d_head,
                       compute_dtype=jnp.float32, q_tile=256, kv_chunk=512):
    B, N, D = x.shape
    inner = n_heads * d_head

    # Row-tile / kv-chunk sizes (fall back to full N when it doesn't tile evenly;
    # q_tile=256 keeps MXU M-dim >=256 on v6e/v7x at real sequence lengths).
    tq = q_tile if (N > q_tile and N % q_tile == 0) else N
    tkv = kv_chunk if (N > kv_chunk and N % kv_chunk == 0) else N
    nq = N // tq

    scale = float(d_head) ** -0.5
    names = ("wq1", "wk1", "wv1", "wo1", "bo1",
             "wq2", "wk2", "wv2", "wo2", "bo2",
             "wn", "bn")

    def prep(name):
        w = params[name]
        if name.startswith("b"):
            return w.astype(jnp.float32)          # biases added on the f32 path
        if name in ("wq1", "wq2"):
            w = w * scale                         # fold 1/sqrt(d_head) into wq
        return w.astype(compute_dtype)

    weights = [prep(n) for n in names]

    def _const2d(b, q):                           # weights stay VMEM-resident
        return (0, 0)

    w_specs = [pl.BlockSpec(w.shape, _const2d) for w in weights]

    grid_spec = pltpu.PrefetchScalarGridSpec(
        num_scalar_prefetch=0,
        grid=(B, nq),
        in_specs=[
            pl.BlockSpec((None, tq, D), lambda b, q: (b, q, 0)),   # q-row tile of x
            pl.BlockSpec((None, N, D), lambda b, q: (b, 0, 0)),    # full ctx per batch
            *w_specs,
        ],
        out_specs=pl.BlockSpec((None, tq, D), lambda b, q: (b, q, 0)),
        scratch_shapes=[pltpu.VMEM((N, inner), compute_dtype)] * 4   # k1,v1,k2,v2 caches
                     + [pltpu.VMEM((tq, inner), jnp.float32)],       # per-layer head outputs
    )

    out = pl.pallas_call(
        functools.partial(attentions_kernel, n_heads=n_heads, d_head=d_head,
                          kv_chunk=tkv, compute_dtype=compute_dtype),
        grid_spec=grid_spec,
        out_shape=jax.ShapeDtypeStruct((B, N, D), x.dtype),
        compiler_params=pltpu.CompilerParams(
            # batch axis is independent -> "parallel" (v7x megacore); the q-tile
            # axis carries the per-batch K/V scratch cache -> "arbitrary".
            dimension_semantics=("parallel", "arbitrary"),
            vmem_limit_bytes=64 * 1024 * 1024),
    )(x, x, *weights)
    return out


def reference_forward(x, params, *, n_heads, d_head):
    """Pure-JAX reference mirroring the PyTorch forward."""
    scale = float(d_head) ** -0.5

    def cross_attention(q_in, ctx, wq, wk, wv, wo, bo):
        B, N, _ = q_in.shape
        Nc = ctx.shape[1]
        q = q_in @ wq
        k = ctx @ wk
        v = ctx @ wv
        q = q.reshape(B, N, n_heads, d_head).transpose(0, 2, 1, 3)
        k = k.reshape(B, Nc, n_heads, d_head).transpose(0, 2, 1, 3)
        v = v.reshape(B, Nc, n_heads, d_head).transpose(0, 2, 1, 3)
        sim = jnp.einsum("bhid,bhjd->bhij", q, k) * scale
        p = jax.nn.softmax(sim, axis=-1)
        out = jnp.einsum("bhij,bhjd->bhid", p, v)
        out = out.transpose(0, 2, 1, 3).reshape(B, N, n_heads * d_head)
        return out @ wo + bo

    x1 = cross_attention(x, x, params["wq1"], params["wk1"], params["wv1"],
                         params["wo1"], params["bo1"]) + x
    x2 = cross_attention(x1, x, params["wq2"], params["wk2"], params["wv2"],
                         params["wo2"], params["bo2"]) + x1
    return x2 @ params["wn"] + params["bn"]


if __name__ == "__main__":
    B, N = 2, 8
    dim, n_heads, d_head = 32, 4, 8
    inner = n_heads * d_head

    key = jax.random.PRNGKey(0)
    ks = jax.random.split(key, 13)

    def init(k, shape, scale=0.05):
        return jax.random.normal(k, shape, jnp.float32) * scale

    params = {
        # attn1 (self-attention): to_q/to_k/to_v have no bias, to_out has bias
        "wq1": init(ks[0], (dim, inner)),
        "wk1": init(ks[1], (dim, inner)),
        "wv1": init(ks[2], (dim, inner)),
        "wo1": init(ks[3], (inner, dim)),
        "bo1": init(ks[4], (1, dim)),
        # attn2 (cross-attention, context_dim defaults to dim)
        "wq2": init(ks[5], (dim, inner)),
        "wk2": init(ks[6], (dim, inner)),
        "wv2": init(ks[7], (dim, inner)),
        "wo2": init(ks[8], (inner, dim)),
        "bo2": init(ks[9], (1, dim)),
        # net: Dropout(0.0) -> Linear(dim, dim)
        "wn": init(ks[10], (dim, dim)),
        "bn": init(ks[11], (1, dim)),
    }

    x = jax.random.normal(ks[12], (B, N, dim), jnp.float32)
    ref = reference_forward(x, params, n_heads=n_heads, d_head=d_head)

    # f32 matmul-operand path (tolerance loosened for approx reciprocal +
    # scale-folded-into-wq).
    out = attentions_forward(x, params, n_heads=n_heads, d_head=d_head)
    out = jax.block_until_ready(out)
    assert out.shape == (B, N, dim)
    assert jnp.allclose(out, ref, atol=1e-2, rtol=1e-2), "f32 mismatch vs reference"

    # bf16 matmul-operand path (v5e/v6e/v7x MXU throughput), f32 softmax/residuals.
    out_bf16 = attentions_forward(x, params, n_heads=n_heads, d_head=d_head,
                                  compute_dtype=jnp.bfloat16)
    out_bf16 = jax.block_until_ready(out_bf16)
    assert jnp.allclose(out_bf16, ref, atol=5e-2, rtol=5e-2), "bf16 mismatch vs reference"

    print("KERNEL_OK")
</pallas_src>

<mosaic_0001>
module attributes {stable_mosaic.version = 11 : i64} {
  func.func @attentions_kernel(%arg0: i32, %arg1: i32, %arg2: memref<1x8x32xf32, #tpu.memory_space<vmem>>, %arg3: memref<1x8x32xf32, #tpu.memory_space<vmem>>, %arg4: memref<32x32xf32, #tpu.memory_space<vmem>>, %arg5: memref<32x32xf32, #tpu.memory_space<vmem>>, %arg6: memref<32x32xf32, #tpu.memory_space<vmem>>, %arg7: memref<32x32xf32, #tpu.memory_space<vmem>>, %arg8: memref<1x32xf32, #tpu.memory_space<vmem>>, %arg9: memref<32x32xf32, #tpu.memory_space<vmem>>, %arg10: memref<32x32xf32, #tpu.memory_space<vmem>>, %arg11: memref<32x32xf32, #tpu.memory_space<vmem>>, %arg12: memref<32x32xf32, #tpu.memory_space<vmem>>, %arg13: memref<1x32xf32, #tpu.memory_space<vmem>>, %arg14: memref<32x32xf32, #tpu.memory_space<vmem>>, %arg15: memref<1x32xf32, #tpu.memory_space<vmem>>, %arg16: memref<1x8x32xf32, #tpu.memory_space<vmem>>, %arg17: memref<8x32xf32, #tpu.memory_space<vmem>>, %arg18: memref<8x32xf32, #tpu.memory_space<vmem>>, %arg19: memref<8x32xf32, #tpu.memory_space<vmem>>, %arg20: memref<8x32xf32, #tpu.memory_space<vmem>>, %arg21: memref<8x32xf32, #tpu.memory_space<vmem>>) attributes {dimension_semantics = [#tpu.dimension_semantics<parallel>, #tpu.dimension_semantics<arbitrary>], iteration_bounds = array<i64: 2, 1>, scalar_prefetch = 0 : i64, scratch_operands = 5 : i64, tpu.core_type = #tpu.core_type<tc>, window_params = [{transform_indices = @transform_0, window_bounds = array<i64: 1, 8, 32>}, {transform_indices = @transform_1, window_bounds = array<i64: 1, 8, 32>}, {pipeline_mode = #tpu.pipeline_mode<synchronous>, transform_indices = @transform_2, window_bounds = array<i64: 32, 32>}, {pipeline_mode = #tpu.pipeline_mode<synchronous>, transform_indices = @transform_3, window_bounds = array<i64: 32, 32>}, {pipeline_mode = #tpu.pipeline_mode<synchronous>, transform_indices = @transform_4, window_bounds = array<i64: 32, 32>}, {pipeline_mode = #tpu.pipeline_mode<synchronous>, transform_indices = @transform_5, window_bounds = array<i64: 32, 32>}, {pipeline_mode = #tpu.pipeline_mode<synchronous>, transform_indices = @transform_6, window_bounds = array<i64: 1, 32>}, {pipeline_mode = #tpu.pipeline_mode<synchronous>, transform_indices = @transform_7, window_bounds = array<i64: 32, 32>}, {pipeline_mode = #tpu.pipeline_mode<synchronous>, transform_indices = @transform_8, window_bounds = array<i64: 32, 32>}, {pipeline_mode = #tpu.pipeline_mode<synchronous>, transform_indices = @transform_9, window_bounds = array<i64: 32, 32>}, {pipeline_mode = #tpu.pipeline_mode<synchronous>, transform_indices = @transform_10, window_bounds = array<i64: 32, 32>}, {pipeline_mode = #tpu.pipeline_mode<synchronous>, transform_indices = @transform_11, window_bounds = array<i64: 1, 32>}, {pipeline_mode = #tpu.pipeline_mode<synchronous>, transform_indices = @transform_12, window_bounds = array<i64: 32, 32>}, {pipeline_mode = #tpu.pipeline_mode<synchronous>, transform_indices = @transform_13, window_bounds = array<i64: 1, 32>}, {transform_indices = @transform_14, window_bounds = array<i64: 1, 8, 32>}]} {
    %c0_i32 = arith.constant 0 : i32
    %0 = arith.cmpi eq, %arg1, %c0_i32 : i32
    %1 = arith.extui %0 : i1 to i32
    %c0_i32_0 = arith.constant 0 : i32
    %2 = arith.cmpi ne, %1, %c0_i32_0 : i32
    scf.if %2 {
      %c0_131 = arith.constant 0 : index
      %c0_132 = arith.constant 0 : index
      %c0_133 = arith.constant 0 : index
      %247 = vector.load %arg3[%c0_131, %c0_132, %c0_133] : memref<1x8x32xf32, #tpu.memory_space<vmem>>, vector<1x8x32xf32>
      %248 = vector.shape_cast %247 : vector<1x8x32xf32> to vector<8x32xf32>
      %c0_134 = arith.constant 0 : index
      %c0_135 = arith.constant 0 : index
      %249 = vector.load %arg5[%c0_134, %c0_135] : memref<32x32xf32, #tpu.memory_space<vmem>>, vector<32x32xf32>
      %cst_136 = arith.constant dense<0.000000e+00> : vector<8x32xf32>
      %250 = tpu.matmul %248, %249, %cst_136 {dimension_numbers = #tpu.dot_dimension_numbers<[1], [0], [0], [1], [0, 0, 1, 1], [], []>} : vector<8x32xf32>, vector<32x32xf32>, vector<8x32xf32> -> vector<8x32xf32>
      %c0_137 = arith.constant 0 : index
      %c0_138 = arith.constant 0 : index
      %251 = vector.load %arg17[%c0_137, %c0_138] : memref<8x32xf32, #tpu.memory_space<vmem>>, vector<8x32xf32>
      tpu.vector_store %arg17[%c0_137, %c0_138], %250 {strides = array<i32>} : memref<8x32xf32, #tpu.memory_space<vmem>>, vector<8x32xf32>,
      %c0_139 = arith.constant 0 : index
      %c0_140 = arith.constant 0 : index
      %252 = vector.load %arg6[%c0_139, %c0_140] : memref<32x32xf32, #tpu.memory_space<vmem>>, vector<32x32xf32>
      %cst_141 = arith.constant dense<0.000000e+00> : vector<8x32xf32>
      %253 = tpu.matmul %248, %252, %cst_141 {dimension_numbers = #tpu.dot_dimension_numbers<[1], [0], [0], [1], [0, 0, 1, 1], [], []>} : vector<8x32xf32>, vector<32x32xf32>, vector<8x32xf32> -> vector<8x32xf32>
      %c0_142 = arith.constant 0 : index
      %c0_143 = arith.constant 0 : index
      %254 = vector.load %arg18[%c0_142, %c0_143] : memref<8x32xf32, #tpu.memory_space<vmem>>, vector<8x32xf32>
      tpu.vector_store %arg18[%c0_142, %c0_143], %253 {strides = array<i32>} : memref<8x32xf32, #tpu.memory_space<vmem>>, vector<8x32xf32>,
      %c0_144 = arith.constant 0 : index
      %c0_145 = arith.constant 0 : index
      %255 = vector.load %arg10[%c0_144, %c0_145] : memref<32x32xf32, #tpu.memory_space<vmem>>, vector<32x32xf32>
      %cst_146 = arith.constant dense<0.000000e+00> : vector<8x32xf32>
      %256 = tpu.matmul %248, %255, %cst_146 {dimension_numbers = #tpu.dot_dimension_numbers<[1], [0], [0], [1], [0, 0, 1, 1], [], []>} : vector<8x32xf32>, vector<32x32xf32>, vector<8x32xf32> -> vector<8x32xf32>
      %c0_147 = arith.constant 0 : index
      %c0_148 = arith.constant 0 : index
      %257 = vector.load %arg19[%c0_147, %c0_148] : memref<8x32xf32, #tpu.memory_space<vmem>>, vector<8x32xf32>
      tpu.vector_store %arg19[%c0_147, %c0_148], %256 {strides = array<i32>} : memref<8x32xf32, #tpu.memory_space<vmem>>, vector<8x32xf32>,
      %c0_149 = arith.constant 0 : index
      %c0_150 = arith.constant 0 : index
      %258 = vector.load %arg11[%c0_149, %c0_150] : memref<32x32xf32, #tpu.memory_space<vmem>>, vector<32x32xf32>
      %cst_151 = arith.constant dense<0.000000e+00> : vector<8x32xf32>
      %259 = tpu.matmul %248, %258, %cst_151 {dimension_numbers = #tpu.dot_dimension_numbers<[1], [0], [0], [1], [0, 0, 1, 1], [], []>} : vector<8x32xf32>, vector<32x32xf32>, vector<8x32xf32> -> vector<8x32xf32>
      %c0_152 = arith.constant 0 : index
      %c0_153 = arith.constant 0 : index
      %260 = vector.load %arg20[%c0_152, %c0_153] : memref<8x32xf32, #tpu.memory_space<vmem>>, vector<8x32xf32>
      tpu.vector_store %arg20[%c0_152, %c0_153], %259 {strides = array<i32>} : memref<8x32xf32, #tpu.memory_space<vmem>>, vector<8x32xf32>,
    } else {
    }
    %c0 = arith.constant 0 : index
    %c0_1 = arith.constant 0 : index
    %c0_2 = arith.constant 0 : index
    %3 = vector.load %arg2[%c0, %c0_1, %c0_2] : memref<1x8x32xf32, #tpu.memory_space<vmem>>, vector<1x8x32xf32>
    %4 = vector.shape_cast %3 : vector<1x8x32xf32> to vector<8x32xf32>
    %c0_3 = arith.constant 0 : index
    %c0_4 = arith.constant 0 : index
    %5 = vector.load %arg4[%c0_3, %c0_4] : memref<32x32xf32, #tpu.memory_space<vmem>>, vector<32x32xf32>
    %cst = arith.constant dense<0.000000e+00> : vector<8x32xf32>
    %6 = tpu.matmul %4, %5, %cst {dimension_numbers = #tpu.dot_dimension_numbers<[1], [0], [0], [1], [0, 0, 1, 1], [], []>} : vector<8x32xf32>, vector<32x32xf32>, vector<8x32xf32> -> vector<8x32xf32>
    %7 = vector.extract_strided_slice %6 {offsets = [0, 0], sizes = [8, 8], strides = [1, 1]} : vector<8x32xf32> to vector<8x8xf32>
    %cst_5 = arith.constant 0xFF800000 : f32
    %8 = vector.broadcast %cst_5 : f32 to vector<8x1xf32>
    %cst_6 = arith.constant 0.000000e+00 : f32
    %9 = vector.broadcast %cst_6 : f32 to vector<8x1xf32>
    %cst_7 = arith.constant 0.000000e+00 : f32
    %10 = vector.broadcast %cst_7 : f32 to vector<8x8xf32>
    %c0_8 = arith.constant 0 : index
    %c0_9 = arith.constant 0 : index
    %11 = vector.load %arg17[%c0_8, %c0_9] : memref<8x32xf32, #tpu.memory_space<vmem>>, vector<8x8xf32>
    %c0_10 = arith.constant 0 : index
    %c0_11 = arith.constant 0 : index
    %12 = vector.load %arg18[%c0_10, %c0_11] : memref<8x32xf32, #tpu.memory_space<vmem>>, vector<8x8xf32>
    %cst_12 = arith.constant dense<0.000000e+00> : vector<8x8xf32>
    %13 = tpu.matmul %7, %11, %cst_12 {dimension_numbers = #tpu.dot_dimension_numbers<[1], [1], [0], [0], [0, 0, 1, 0], [], []>} : vector<8x8xf32>, vector<8x8xf32>, vector<8x8xf32> -> vector<8x8xf32>
    %cst_13 = arith.constant dense<0xFF800000> : vector<8xf32>
    %14 = vector.multi_reduction <maximumf>, %13, %cst_13 [1] : vector<8x8xf32> to vector<8xf32>
    %15 = vector.shape_cast %14 : vector<8xf32> to vector<8x1xf32>
    %16 = arith.maximumf %8, %15 : vector<8x1xf32>
    %17 = arith.subf %8, %16 : vector<8x1xf32>
    %18 = math.exp %17 : vector<8x1xf32>
    %19 = vector.broadcast %16 : vector<8x1xf32> to vector<8x8xf32>
    %20 = arith.subf %13, %19 : vector<8x8xf32>
    %21 = math.exp %20 : vector<8x8xf32>
    %22 = arith.mulf %18, %9 : vector<8x1xf32>
    %cst_14 = arith.constant dense<0.000000e+00> : vector<8xf32>
    %23 = vector.multi_reduction <add>, %21, %cst_14 [1] : vector<8x8xf32> to vector<8xf32>
    %24 = vector.shape_cast %23 : vector<8xf32> to vector<8x1xf32>
    %25 = arith.addf %22, %24 : vector<8x1xf32>
    %26 = vector.broadcast %18 : vector<8x1xf32> to vector<8x8xf32>
    %27 = arith.mulf %26, %10 : vector<8x8xf32>
    %cst_15 = arith.constant dense<0.000000e+00> : vector<8x8xf32>
    %28 = tpu.matmul %21, %12, %cst_15 {dimension_numbers = #tpu.dot_dimension_numbers<[1], [0], [0], [1], [0, 0, 1, 1], [], []>} : vector<8x8xf32>, vector<8x8xf32>, vector<8x8xf32> -> vector<8x8xf32>
    %29 = arith.addf %27, %28 : vector<8x8xf32>
    %30 = tpu.reciprocal %25 {approx = true} : vector<8x1xf32> -> vector<8x1xf32>
    %31 = vector.broadcast %30 : vector<8x1xf32> to vector<8x8xf32>
    %32 = arith.mulf %29, %31 : vector<8x8xf32>
    %c0_16 = arith.constant 0 : index
    %c0_17 = arith.constant 0 : index
    %33 = vector.load %arg21[%c0_16, %c0_17] : memref<8x32xf32, #tpu.memory_space<vmem>>, vector<8x8xf32>
    tpu.vector_store %arg21[%c0_16, %c0_17], %32 {strides = array<i32>} : memref<8x32xf32, #tpu.memory_space<vmem>>, vector<8x8xf32>,
    %34 = vector.extract_strided_slice %6 {offsets = [0, 8], sizes = [8, 8], strides = [1, 1]} : vector<8x32xf32> to vector<8x8xf32>
    %cst_18 = arith.constant 0xFF800000 : f32
    %35 = vector.broadcast %cst_18 : f32 to vector<8x1xf32>
    %cst_19 = arith.constant 0.000000e+00 : f32
    %36 = vector.broadcast %cst_19 : f32 to vector<8x1xf32>
    %cst_20 = arith.constant 0.000000e+00 : f32
    %37 = vector.broadcast %cst_20 : f32 to vector<8x8xf32>
    %c0_21 = arith.constant 0 : index
    %c8 = arith.constant 8 : index
    %38 = vector.load %arg17[%c0_21, %c8] : memref<8x32xf32, #tpu.memory_space<vmem>>, vector<8x8xf32>
    %c0_22 = arith.constant 0 : index
    %c8_23 = arith.constant 8 : index
    %39 = vector.load %arg18[%c0_22, %c8_23] : memref<8x32xf32, #tpu.memory_space<vmem>>, vector<8x8xf32>
    %cst_24 = arith.constant dense<0.000000e+00> : vector<8x8xf32>
    %40 = tpu.matmul %34, %38, %cst_24 {dimension_numbers = #tpu.dot_dimension_numbers<[1], [1], [0], [0], [0, 0, 1, 0], [], []>} : vector<8x8xf32>, vector<8x8xf32>, vector<8x8xf32> -> vector<8x8xf32>
    %cst_25 = arith.constant dense<0xFF800000> : vector<8xf32>
    %41 = vector.multi_reduction <maximumf>, %40, %cst_25 [1] : vector<8x8xf32> to vector<8xf32>
    %42 = vector.shape_cast %41 : vector<8xf32> to vector<8x1xf32>
    %43 = arith.maximumf %35, %42 : vector<8x1xf32>
    %44 = arith.subf %35, %43 : vector<8x1xf32>
    %45 = math.exp %44 : vector<8x1xf32>
    %46 = vector.broadcast %43 : vector<8x1xf32> to vector<8x8xf32>
    %47 = arith.subf %40, %46 : vector<8x8xf32>
    %48 = math.exp %47 : vector<8x8xf32>
    %49 = arith.mulf %45, %36 : vector<8x1xf32>
    %cst_26 = arith.constant dense<0.000000e+00> : vector<8xf32>
    %50 = vector.multi_reduction <add>, %48, %cst_26 [1] : vector<8x8xf32> to vector<8xf32>
    %51 = vector.shape_cast %50 : vector<8xf32> to vector<8x1xf32>
    %52 = arith.addf %49, %51 : vector<8x1xf32>
    %53 = vector.broadcast %45 : vector<8x1xf32> to vector<8x8xf32>
    %54 = arith.mulf %53, %37 : vector<8x8xf32>
    %cst_27 = arith.constant dense<0.000000e+00> : vector<8x8xf32>
    %55 = tpu.matmul %48, %39, %cst_27 {dimension_numbers = #tpu.dot_dimension_numbers<[1], [0], [0], [1], [0, 0, 1, 1], [], []>} : vector<8x8xf32>, vector<8x8xf32>, vector<8x8xf32> -> vector<8x8xf32>
    %56 = arith.addf %54, %55 : vector<8x8xf32>
    %57 = tpu.reciprocal %52 {approx = true} : vector<8x1xf32> -> vector<8x1xf32>
    %58 = vector.broadcast %57 : vector<8x1xf32> to vector<8x8xf32>
    %59 = arith.mulf %56, %58 : vector<8x8xf32>
    %c0_28 = arith.constant 0 : index
    %c8_29 = arith.constant 8 : index
    %60 = vector.load %arg21[%c0_28, %c8_29] : memref<8x32xf32, #tpu.memory_space<vmem>>, vector<8x8xf32>
    tpu.vector_store %arg21[%c0_28, %c8_29], %59 {strides = array<i32>} : memref<8x32xf32, #tpu.memory_space<vmem>>, vector<8x8xf32>,
    %61 = vector.extract_strided_slice %6 {offsets = [0, 16], sizes = [8, 8], strides = [1, 1]} : vector<8x32xf32> to vector<8x8xf32>
    %cst_30 = arith.constant 0xFF800000 : f32
    %62 = vector.broadcast %cst_30 : f32 to vector<8x1xf32>
    %cst_31 = arith.constant 0.000000e+00 : f32
    %63 = vector.broadcast %cst_31 : f32 to vector<8x1xf32>
    %cst_32 = arith.constant 0.000000e+00 : f32
    %64 = vector.broadcast %cst_32 : f32 to vector<8x8xf32>
    %c0_33 = arith.constant 0 : index
    %c16 = arith.constant 16 : index
    %65 = vector.load %arg17[%c0_33, %c16] : memref<8x32xf32, #tpu.memory_space<vmem>>, vector<8x8xf32>
    %c0_34 = arith.constant 0 : index
    %c16_35 = arith.constant 16 : index
    %66 = vector.load %arg18[%c0_34, %c16_35] : memref<8x32xf32, #tpu.memory_space<vmem>>, vector<8x8xf32>
    %cst_36 = arith.constant dense<0.000000e+00> : vector<8x8xf32>
    %67 = tpu.matmul %61, %65, %cst_36 {dimension_numbers = #tpu.dot_dimension_numbers<[1], [1], [0], [0], [0, 0, 1, 0], [], []>} : vector<8x8xf32>, vector<8x8xf32>, vector<8x8xf32> -> vector<8x8xf32>
    %cst_37 = arith.constant dense<0xFF800000> : vector<8xf32>
    %68 = vector.multi_reduction <maximumf>, %67, %cst_37 [1] : vector<8x8xf32> to vector<8xf32>
    %69 = vector.shape_cast %68 : vector<8xf32> to vector<8x1xf32>
    %70 = arith.maximumf %62, %69 : vector<8x1xf32>
    %71 = arith.subf %62, %70 : vector<8x1xf32>
    %72 = math.exp %71 : vector<8x1xf32>
    %73 = vector.broadcast %70 : vector<8x1xf32> to vector<8x8xf32>
    %74 = arith.subf %67, %73 : vector<8x8xf32>
    %75 = math.exp %74 : vector<8x8xf32>
    %76 = arith.mulf %72, %63 : vector<8x1xf32>
    %cst_38 = arith.constant dense<0.000000e+00> : vector<8xf32>
    %77 = vector.multi_reduction <add>, %75, %cst_38 [1] : vector<8x8xf32> to vector<8xf32>
    %78 = vector.shape_cast %77 : vector<8xf32> to vector<8x1xf32>
    %79 = arith.addf %76, %78 : vector<8x1xf32>
    %80 = vector.broadcast %72 : vector<8x1xf32> to vector<8x8xf32>
    %81 = arith.mulf %80, %64 : vector<8x8xf32>
    %cst_39 = arith.constant dense<0.000000e+00> : vector<8x8xf32>
    %82 = tpu.matmul %75, %66, %cst_39 {dimension_numbers = #tpu.dot_dimension_numbers<[1], [0], [0], [1], [0, 0, 1, 1], [], []>} : vector<8x8xf32>, vector<8x8xf32>, vector<8x8xf32> -> vector<8x8xf32>
    %83 = arith.addf %81, %82 : vector<8x8xf32>
    %84 = tpu.reciprocal %79 {approx = true} : vector<8x1xf32> -> vector<8x1xf32>
    %85 = vector.broadcast %84 : vector<8x1xf32> to vector<8x8xf32>
    %86 = arith.mulf %83, %85 : vector<8x8xf32>
    %c0_40 = arith.constant 0 : index
    %c16_41 = arith.constant 16 : index
    %87 = vector.load %arg21[%c0_40, %c16_41] : memref<8x32xf32, #tpu.memory_space<vmem>>, vector<8x8xf32>
    tpu.vector_store %arg21[%c0_40, %c16_41], %86 {strides = array<i32>} : memref<8x32xf32, #tpu.memory_space<vmem>>, vector<8x8xf32>,
    %88 = vector.extract_strided_slice %6 {offsets = [0, 24], sizes = [8, 8], strides = [1, 1]} : vector<8x32xf32> to vector<8x8xf32>
    %cst_42 = arith.constant 0xFF800000 : f32
    %89 = vector.broadcast %cst_42 : f32 to vector<8x1xf32>
    %cst_43 = arith.constant 0.000000e+00 : f32
    %90 = vector.broadcast %cst_43 : f32 to vector<8x1xf32>
    %cst_44 = arith.constant 0.000000e+00 : f32
    %91 = vector.broadcast %cst_44 : f32 to vector<8x8xf32>
    %c0_45 = arith.constant 0 : index
    %c24 = arith.constant 24 : index
    %92 = vector.load %arg17[%c0_45, %c24] : memref<8x32xf32, #tpu.memory_space<vmem>>, vector<8x8xf32>
    %c0_46 = arith.constant 0 : index
    %c24_47 = arith.constant 24 : index
    %93 = vector.load %arg18[%c0_46, %c24_47] : memref<8x32xf32, #tpu.memory_space<vmem>>, vector<8x8xf32>
    %cst_48 = arith.constant dense<0.000000e+00> : vector<8x8xf32>
    %94 = tpu.matmul %88, %92, %cst_48 {dimension_numbers = #tpu.dot_dimension_numbers<[1], [1], [0], [0], [0, 0, 1, 0], [], []>} : vector<8x8xf32>, vector<8x8xf32>, vector<8x8xf32> -> vector<8x8xf32>
    %cst_49 = arith.constant dense<0xFF800000> : vector<8xf32>
    %95 = vector.multi_reduction <maximumf>, %94, %cst_49 [1] : vector<8x8xf32> to vector<8xf32>
    %96 = vector.shape_cast %95 : vector<8xf32> to vector<8x1xf32>
    %97 = arith.maximumf %89, %96 : vector<8x1xf32>
    %98 = arith.subf %89, %97 : vector<8x1xf32>
    %99 = math.exp %98 : vector<8x1xf32>
    %100 = vector.broadcast %97 : vector<8x1xf32> to vector<8x8xf32>
    %101 = arith.subf %94, %100 : vector<8x8xf32>
    %102 = math.exp %101 : vector<8x8xf32>
    %103 = arith.mulf %99, %90 : vector<8x1xf32>
    %cst_50 = arith.constant dense<0.000000e+00> : vector<8xf32>
    %104 = vector.multi_reduction <add>, %102, %cst_50 [1] : vector<8x8xf32> to vector<8xf32>
    %105 = vector.shape_cast %104 : vector<8xf32> to vector<8x1xf32>
    %106 = arith.addf %103, %105 : vector<8x1xf32>
    %107 = vector.broadcast %99 : vector<8x1xf32> to vector<8x8xf32>
    %108 = arith.mulf %107, %91 : vector<8x8xf32>
    %cst_51 = arith.constant dense<0.000000e+00> : vector<8x8xf32>
    %109 = tpu.matmul %102, %93, %cst_51 {dimension_numbers = #tpu.dot_dimension_numbers<[1], [0], [0], [1], [0, 0, 1, 1], [], []>} : vector<8x8xf32>, vector<8x8xf32>, vector<8x8xf32> -> vector<8x8xf32>
    %110 = arith.addf %108, %109 : vector<8x8xf32>
    %111 = tpu.reciprocal %106 {approx = true} : vector<8x1xf32> -> vector<8x1xf32>
    %112 = vector.broadcast %111 : vector<8x1xf32> to vector<8x8xf32>
    %113 = arith.mulf %110, %112 : vector<8x8xf32>
    %c0_52 = arith.constant 0 : index
    %c24_53 = arith.constant 24 : index
    %114 = vector.load %arg21[%c0_52, %c24_53] : memref<8x32xf32, #tpu.memory_space<vmem>>, vector<8x8xf32>
    tpu.vector_store %arg21[%c0_52, %c24_53], %113 {strides = array<i32>} : memref<8x32xf32, #tpu.memory_space<vmem>>, vector<8x8xf32>,
    %c0_54 = arith.constant 0 : index
    %c0_55 = arith.constant 0 : index
    %115 = vector.load %arg21[%c0_54, %c0_55] : memref<8x32xf32, #tpu.memory_space<vmem>>, vector<8x32xf32>
    %c0_56 = arith.constant 0 : index
    %c0_57 = arith.constant 0 : index
    %116 = vector.load %arg7[%c0_56, %c0_57] : memref<32x32xf32, #tpu.memory_space<vmem>>, vector<32x32xf32>
    %cst_58 = arith.constant dense<0.000000e+00> : vector<8x32xf32>
    %117 = tpu.matmul %115, %116, %cst_58 {dimension_numbers = #tpu.dot_dimension_numbers<[1], [0], [0], [1], [0, 0, 1, 1], [], []>} : vector<8x32xf32>, vector<32x32xf32>, vector<8x32xf32> -> vector<8x32xf32>
    %c0_59 = arith.constant 0 : index
    %c0_60 = arith.constant 0 : index
    %118 = vector.load %arg8[%c0_59, %c0_60] : memref<1x32xf32, #tpu.memory_space<vmem>>, vector<1x32xf32>
    %119 = vector.broadcast %118 : vector<1x32xf32> to vector<8x32xf32>
    %120 = arith.addf %117, %119 : vector<8x32xf32>
    %121 = arith.addf %120, %4 : vector<8x32xf32>
    %c0_61 = arith.constant 0 : index
    %c0_62 = arith.constant 0 : index
    %122 = vector.load %arg9[%c0_61, %c0_62] : memref<32x32xf32, #tpu.memory_space<vmem>>, vector<32x32xf32>
    %cst_63 = arith.constant dense<0.000000e+00> : vector<8x32xf32>
    %123 = tpu.matmul %121, %122, %cst_63 {dimension_numbers = #tpu.dot_dimension_numbers<[1], [0], [0], [1], [0, 0, 1, 1], [], []>} : vector<8x32xf32>, vector<32x32xf32>, vector<8x32xf32> -> vector<8x32xf32>
    %124 = vector.extract_strided_slice %123 {offsets = [0, 0], sizes = [8, 8], strides = [1, 1]} : vector<8x32xf32> to vector<8x8xf32>
    %cst_64 = arith.constant 0xFF800000 : f32
    %125 = vector.broadcast %cst_64 : f32 to vector<8x1xf32>
    %cst_65 = arith.constant 0.000000e+00 : f32
    %126 = vector.broadcast %cst_65 : f32 to vector<8x1xf32>
    %cst_66 = arith.constant 0.000000e+00 : f32
    %127 = vector.broadcast %cst_66 : f32 to vector<8x8xf32>
    %c0_67 = arith.constant 0 : index
    %c0_68 = arith.constant 0 : index
    %128 = vector.load %arg19[%c0_67, %c0_68] : memref<8x32xf32, #tpu.memory_space<vmem>>, vector<8x8xf32>
    %c0_69 = arith.constant 0 : index
    %c0_70 = arith.constant 0 : index
    %129 = vector.load %arg20[%c0_69, %c0_70] : memref<8x32xf32, #tpu.memory_space<vmem>>, vector<8x8xf32>
    %cst_71 = arith.constant dense<0.000000e+00> : vector<8x8xf32>
    %130 = tpu.matmul %124, %128, %cst_71 {dimension_numbers = #tpu.dot_dimension_numbers<[1], [1], [0], [0], [0, 0, 1, 0], [], []>} : vector<8x8xf32>, vector<8x8xf32>, vector<8x8xf32> -> vector<8x8xf32>
    %cst_72 = arith.constant dense<0xFF800000> : vector<8xf32>
    %131 = vector.multi_reduction <maximumf>, %130, %cst_72 [1] : vector<8x8xf32> to vector<8xf32>
    %132 = vector.shape_cast %131 : vector<8xf32> to vector<8x1xf32>
    %133 = arith.maximumf %125, %132 : vector<8x1xf32>
    %134 = arith.subf %125, %133 : vector<8x1xf32>
    %135 = math.exp %134 : vector<8x1xf32>
    %136 = vector.broadcast %133 : vector<8x1xf32> to vector<8x8xf32>
    %137 = arith.subf %130, %136 : vector<8x8xf32>
    %138 = math.exp %137 : vector<8x8xf32>
    %139 = arith.mulf %135, %126 : vector<8x1xf32>
    %cst_73 = arith.constant dense<0.000000e+00> : vector<8xf32>
    %140 = vector.multi_reduction <add>, %138, %cst_73 [1] : vector<8x8xf32> to vector<8xf32>
    %141 = vector.shape_cast %140 : vector<8xf32> to vector<8x1xf32>
    %142 = arith.addf %139, %141 : vector<8x1xf32>
    %143 = vector.broadcast %135 : vector<8x1xf32> to vector<8x8xf32>
    %144 = arith.mulf %143, %127 : vector<8x8xf32>
    %cst_74 = arith.constant dense<0.000000e+00> : vector<8x8xf32>
    %145 = tpu.matmul %138, %129, %cst_74 {dimension_numbers = #tpu.dot_dimension_numbers<[1], [0], [0], [1], [0, 0, 1, 1], [], []>} : vector<8x8xf32>, vector<8x8xf32>, vector<8x8xf32> -> vector<8x8xf32>
    %146 = arith.addf %144, %145 : vector<8x8xf32>
    %147 = tpu.reciprocal %142 {approx = true} : vector<8x1xf32> -> vector<8x1xf32>
    %148 = vector.broadcast %147 : vector<8x1xf32> to vector<8x8xf32>
    %149 = arith.mulf %146, %148 : vector<8x8xf32>
    %c0_75 = arith.constant 0 : index
    %c0_76 = arith.constant 0 : index
    %150 = vector.load %arg21[%c0_75, %c0_76] : memref<8x32xf32, #tpu.memory_space<vmem>>, vector<8x8xf32>
    tpu.vector_store %arg21[%c0_75, %c0_76], %149 {strides = array<i32>} : memref<8x32xf32, #tpu.memory_space<vmem>>, vector<8x8xf32>,
    %151 = vector.extract_strided_slice %123 {offsets = [0, 8], sizes = [8, 8], strides = [1, 1]} : vector<8x32xf32> to vector<8x8xf32>
    %cst_77 = arith.constant 0xFF800000 : f32
    %152 = vector.broadcast %cst_77 : f32 to vector<8x1xf32>
    %cst_78 = arith.constant 0.000000e+00 : f32
    %153 = vector.broadcast %cst_78 : f32 to vector<8x1xf32>
    %cst_79 = arith.constant 0.000000e+00 : f32
    %154 = vector.broadcast %cst_79 : f32 to vector<8x8xf32>
    %c0_80 = arith.constant 0 : index
    %c8_81 = arith.constant 8 : index
    %155 = vector.load %arg19[%c0_80, %c8_81] : memref<8x32xf32, #tpu.memory_space<vmem>>, vector<8x8xf32>
    %c0_82 = arith.constant 0 : index
    %c8_83 = arith.constant 8 : index
    %156 = vector.load %arg20[%c0_82, %c8_83] : memref<8x32xf32, #tpu.memory_space<vmem>>, vector<8x8xf32>
    %cst_84 = arith.constant dense<0.000000e+00> : vector<8x8xf32>
    %157 = tpu.matmul %151, %155, %cst_84 {dimension_numbers = #tpu.dot_dimension_numbers<[1], [1], [0], [0], [0, 0, 1, 0], [], []>} : vector<8x8xf32>, vector<8x8xf32>, vector<8x8xf32> -> vector<8x8xf32>
    %cst_85 = arith.constant dense<0xFF800000> : vector<8xf32>
    %158 = vector.multi_reduction <maximumf>, %157, %cst_85 [1] : vector<8x8xf32> to vector<8xf32>
    %159 = vector.shape_cast %158 : vector<8xf32> to vector<8x1xf32>
    %160 = arith.maximumf %152, %159 : vector<8x1xf32>
    %161 = arith.subf %152, %160 : vector<8x1xf32>
    %162 = math.exp %161 : vector<8x1xf32>
    %163 = vector.broadcast %160 : vector<8x1xf32> to vector<8x8xf32>
    %164 = arith.subf %157, %163 : vector<8x8xf32>
    %165 = math.exp %164 : vector<8x8xf32>
    %166 = arith.mulf %162, %153 : vector<8x1xf32>
    %cst_86 = arith.constant dense<0.000000e+00> : vector<8xf32>
    %167 = vector.multi_reduction <add>, %165, %cst_86 [1] : vector<8x8xf32> to vector<8xf32>
    %168 = vector.shape_cast %167 : vector<8xf32> to vector<8x1xf32>
    %169 = arith.addf %166, %168 : vector<8x1xf32>
    %170 = vector.broadcast %162 : vector<8x1xf32> to vector<8x8xf32>
    %171 = arith.mulf %170, %154 : vector<8x8xf32>
    %cst_87 = arith.constant dense<0.000000e+00> : vector<8x8xf32>
    %172 = tpu.matmul %165, %156, %cst_87 {dimension_numbers = #tpu.dot_dimension_numbers<[1], [0], [0], [1], [0, 0, 1, 1], [], []>} : vector<8x8xf32>, vector<8x8xf32>, vector<8x8xf32> -> vector<8x8xf32>
    %173 = arith.addf %171, %172 : vector<8x8xf32>
    %174 = tpu.reciprocal %169 {approx = true} : vector<8x1xf32> -> vector<8x1xf32>
    %175 = vector.broadcast %174 : vector<8x1xf32> to vector<8x8xf32>
    %176 = arith.mulf %173, %175 : vector<8x8xf32>
    %c0_88 = arith.constant 0 : index
    %c8_89 = arith.constant 8 : index
    %177 = vector.load %arg21[%c0_88, %c8_89] : memref<8x32xf32, #tpu.memory_space<vmem>>, vector<8x8xf32>
    tpu.vector_store %arg21[%c0_88, %c8_89], %176 {strides = array<i32>} : memref<8x32xf32, #tpu.memory_space<vmem>>, vector<8x8xf32>,
    %178 = vector.extract_strided_slice %123 {offsets = [0, 16], sizes = [8, 8], strides = [1, 1]} : vector<8x32xf32> to vector<8x8xf32>
    %cst_90 = arith.constant 0xFF800000 : f32
    %179 = vector.broadcast %cst_90 : f32 to vector<8x1xf32>
    %cst_91 = arith.constant 0.000000e+00 : f32
    %180 = vector.broadcast %cst_91 : f32 to vector<8x1xf32>
    %cst_92 = arith.constant 0.000000e+00 : f32
    %181 = vector.broadcast %cst_92 : f32 to vector<8x8xf32>
    %c0_93 = arith.constant 0 : index
    %c16_94 = arith.constant 16 : index
    %182 = vector.load %arg19[%c0_93, %c16_94] : memref<8x32xf32, #tpu.memory_space<vmem>>, vector<8x8xf32>
    %c0_95 = arith.constant 0 : index
    %c16_96 = arith.constant 16 : index
    %183 = vector.load %arg20[%c0_95, %c16_96] : memref<8x32xf32, #tpu.memory_space<vmem>>, vector<8x8xf32>
    %cst_97 = arith.constant dense<0.000000e+00> : vector<8x8xf32>
    %184 = tpu.matmul %178, %182, %cst_97 {dimension_numbers = #tpu.dot_dimension_numbers<[1], [1], [0], [0], [0, 0, 1, 0], [], []>} : vector<8x8xf32>, vector<8x8xf32>, vector<8x8xf32> -> vector<8x8xf32>
    %cst_98 = arith.constant dense<0xFF800000> : vector<8xf32>
    %185 = vector.multi_reduction <maximumf>, %184, %cst_98 [1] : vector<8x8xf32> to vector<8xf32>
    %186 = vector.shape_cast %185 : vector<8xf32> to vector<8x1xf32>
    %187 = arith.maximumf %179, %186 : vector<8x1xf32>
    %188 = arith.subf %179, %187 : vector<8x1xf32>
    %189 = math.exp %188 : vector<8x1xf32>
    %190 = vector.broadcast %187 : vector<8x1xf32> to vector<8x8xf32>
    %191 = arith.subf %184, %190 : vector<8x8xf32>
    %192 = math.exp %191 : vector<8x8xf32>
    %193 = arith.mulf %189, %180 : vector<8x1xf32>
    %cst_99 = arith.constant dense<0.000000e+00> : vector<8xf32>
    %194 = vector.multi_reduction <add>, %192, %cst_99 [1] : vector<8x8xf32> to vector<8xf32>
    %195 = vector.shape_cast %194 : vector<8xf32> to vector<8x1xf32>
    %196 = arith.addf %193, %195 : vector<8x1xf32>
    %197 = vector.broadcast %189 : vector<8x1xf32> to vector<8x8xf32>
    %198 = arith.mulf %197, %181 : vector<8x8xf32>
    %cst_100 = arith.constant dense<0.000000e+00> : vector<8x8xf32>
    %199 = tpu.matmul %192, %183, %cst_100 {dimension_numbers = #tpu.dot_dimension_numbers<[1], [0], [0], [1], [0, 0, 1, 1], [], []>} : vector<8x8xf32>, vector<8x8xf32>, vector<8x8xf32> -> vector<8x8xf32>
    %200 = arith.addf %198, %199 : vector<8x8xf32>
    %201 = tpu.reciprocal %196 {approx = true} : vector<8x1xf32> -> vector<8x1xf32>
    %202 = vector.broadcast %201 : vector<8x1xf32> to vector<8x8xf32>
    %203 = arith.mulf %200, %202 : vector<8x8xf32>
    %c0_101 = arith.constant 0 : index
    %c16_102 = arith.constant 16 : index
    %204 = vector.load %arg21[%c0_101, %c16_102] : memref<8x32xf32, #tpu.memory_space<vmem>>, vector<8x8xf32>
    tpu.vector_store %arg21[%c0_101, %c16_102], %203 {strides = array<i32>} : memref<8x32xf32, #tpu.memory_space<vmem>>, vector<8x8xf32>,
    %205 = vector.extract_strided_slice %123 {offsets = [0, 24], sizes = [8, 8], strides = [1, 1]} : vector<8x32xf32> to vector<8x8xf32>
    %cst_103 = arith.constant 0xFF800000 : f32
    %206 = vector.broadcast %cst_103 : f32 to vector<8x1xf32>
    %cst_104 = arith.constant 0.000000e+00 : f32
    %207 = vector.broadcast %cst_104 : f32 to vector<8x1xf32>
    %cst_105 = arith.constant 0.000000e+00 : f32
    %208 = vector.broadcast %cst_105 : f32 to vector<8x8xf32>
    %c0_106 = arith.constant 0 : index
    %c24_107 = arith.constant 24 : index
    %209 = vector.load %arg19[%c0_106, %c24_107] : memref<8x32xf32, #tpu.memory_space<vmem>>, vector<8x8xf32>
    %c0_108 = arith.constant 0 : index
    %c24_109 = arith.constant 24 : index
    %210 = vector.load %arg20[%c0_108, %c24_109] : memref<8x32xf32, #tpu.memory_space<vmem>>, vector<8x8xf32>
    %cst_110 = arith.constant dense<0.000000e+00> : vector<8x8xf32>
    %211 = tpu.matmul %205, %209, %cst_110 {dimension_numbers = #tpu.dot_dimension_numbers<[1], [1], [0], [0], [0, 0, 1, 0], [], []>} : vector<8x8xf32>, vector<8x8xf32>, vector<8x8xf32> -> vector<8x8xf32>
    %cst_111 = arith.constant dense<0xFF800000> : vector<8xf32>
    %212 = vector.multi_reduction <maximumf>, %211, %cst_111 [1] : vector<8x8xf32> to vector<8xf32>
    %213 = vector.shape_cast %212 : vector<8xf32> to vector<8x1xf32>
    %214 = arith.maximumf %206, %213 : vector<8x1xf32>
    %215 = arith.subf %206, %214 : vector<8x1xf32>
    %216 = math.exp %215 : vector<8x1xf32>
    %217 = vector.broadcast %214 : vector<8x1xf32> to vector<8x8xf32>
    %218 = arith.subf %211, %217 : vector<8x8xf32>
    %219 = math.exp %218 : vector<8x8xf32>
    %220 = arith.mulf %216, %207 : vector<8x1xf32>
    %cst_112 = arith.constant dense<0.000000e+00> : vector<8xf32>
    %221 = vector.multi_reduction <add>, %219, %cst_112 [1] : vector<8x8xf32> to vector<8xf32>
    %222 = vector.shape_cast %221 : vector<8xf32> to vector<8x1xf32>
    %223 = arith.addf %220, %222 : vector<8x1xf32>
    %224 = vector.broadcast %216 : vector<8x1xf32> to vector<8x8xf32>
    %225 = arith.mulf %224, %208 : vector<8x8xf32>
    %cst_113 = arith.constant dense<0.000000e+00> : vector<8x8xf32>
    %226 = tpu.matmul %219, %210, %cst_113 {dimension_numbers = #tpu.dot_dimension_numbers<[1], [0], [0], [1], [0, 0, 1, 1], [], []>} : vector<8x8xf32>, vector<8x8xf32>, vector<8x8xf32> -> vector<8x8xf32>
    %227 = arith.addf %225, %226 : vector<8x8xf32>
    %228 = tpu.reciprocal %223 {approx = true} : vector<8x1xf32> -> vector<8x1xf32>
    %229 = vector.broadcast %228 : vector<8x1xf32> to vector<8x8xf32>
    %230 = arith.mulf %227, %229 : vector<8x8xf32>
    %c0_114 = arith.constant 0 : index
    %c24_115 = arith.constant 24 : index
    %231 = vector.load %arg21[%c0_114, %c24_115] : memref<8x32xf32, #tpu.memory_space<vmem>>, vector<8x8xf32>
    tpu.vector_store %arg21[%c0_114, %c24_115], %230 {strides = array<i32>} : memref<8x32xf32, #tpu.memory_space<vmem>>, vector<8x8xf32>,
    %c0_116 = arith.constant 0 : index
    %c0_117 = arith.constant 0 : index
    %232 = vector.load %arg21[%c0_116, %c0_117] : memref<8x32xf32, #tpu.memory_space<vmem>>, vector<8x32xf32>
    %c0_118 = arith.constant 0 : index
    %c0_119 = arith.constant 0 : index
    %233 = vector.load %arg12[%c0_118, %c0_119] : memref<32x32xf32, #tpu.memory_space<vmem>>, vector<32x32xf32>
    %cst_120 = arith.constant dense<0.000000e+00> : vector<8x32xf32>
    %234 = tpu.matmul %232, %233, %cst_120 {dimension_numbers = #tpu.dot_dimension_numbers<[1], [0], [0], [1], [0, 0, 1, 1], [], []>} : vector<8x32xf32>, vector<32x32xf32>, vector<8x32xf32> -> vector<8x32xf32>
    %c0_121 = arith.constant 0 : index
    %c0_122 = arith.constant 0 : index
    %235 = vector.load %arg13[%c0_121, %c0_122] : memref<1x32xf32, #tpu.memory_space<vmem>>, vector<1x32xf32>
    %236 = vector.broadcast %235 : vector<1x32xf32> to vector<8x32xf32>
    %237 = arith.addf %234, %236 : vector<8x32xf32>
    %238 = arith.addf %237, %121 : vector<8x32xf32>
    %c0_123 = arith.constant 0 : index
    %c0_124 = arith.constant 0 : index
    %239 = vector.load %arg14[%c0_123, %c0_124] : memref<32x32xf32, #tpu.memory_space<vmem>>, vector<32x32xf32>
    %cst_125 = arith.constant dense<0.000000e+00> : vector<8x32xf32>
    %240 = tpu.matmul %238, %239, %cst_125 {dimension_numbers = #tpu.dot_dimension_numbers<[1], [0], [0], [1], [0, 0, 1, 1], [], []>} : vector<8x32xf32>, vector<32x32xf32>, vector<8x32xf32> -> vector<8x32xf32>
    %c0_126 = arith.constant 0 : index
    %c0_127 = arith.constant 0 : index
    %241 = vector.load %arg15[%c0_126, %c0_127] : memref<1x32xf32, #tpu.memory_space<vmem>>, vector<1x32xf32>
    %242 = vector.broadcast %241 : vector<1x32xf32> to vector<8x32xf32>
    %243 = arith.addf %240, %242 : vector<8x32xf32>
    %c0_128 = arith.constant 0 : index
    %c0_129 = arith.constant 0 : index
    %c0_130 = arith.constant 0 : index
    %244 = vector.load %arg16[%c0_128, %c0_129, %c0_130] : memref<1x8x32xf32, #tpu.memory_space<vmem>>, vector<1x8x32xf32>
    %245 = vector.shape_cast %244 : vector<1x8x32xf32> to vector<8x32xf32>
    %246 = vector.shape_cast %243 : vector<8x32xf32> to vector<1x8x32xf32>
    tpu.vector_store %arg16[%c0_128, %c0_129, %c0_130], %246 {strides = array<i32>} : memref<1x8x32xf32, #tpu.memory_space<vmem>>, vector<1x8x32xf32>,
    return
  }
  func.func @transform_0(%arg0: i32, %arg1: i32) -> (i32, i32, i32) {
    %c0_i32 = arith.constant 0 : i32
    %c0_i32_0 = arith.constant 0 : i32
    return %arg0, %arg1, %c0_i32 : i32, i32, i32
  }
  func.func @transform_1(%arg0: i32, %arg1: i32) -> (i32, i32, i32) {
    %c0_i32 = arith.constant 0 : i32
    %c0_i32_0 = arith.constant 0 : i32
    %c0_i32_1 = arith.constant 0 : i32
    return %arg0, %c0_i32, %c0_i32_0 : i32, i32, i32
  }
  func.func @transform_2(%arg0: i32, %arg1: i32) -> (i32, i32) {
    %c0_i32 = arith.constant 0 : i32
    %c0_i32_0 = arith.constant 0 : i32
    %c0_i32_1 = arith.constant 0 : i32
    return %c0_i32, %c0_i32_0 : i32, i32
  }
  func.func @transform_3(%arg0: i32, %arg1: i32) -> (i32, i32) {
    %c0_i32 = arith.constant 0 : i32
    %c0_i32_0 = arith.constant 0 : i32
    %c0_i32_1 = arith.constant 0 : i32
    return %c0_i32, %c0_i32_0 : i32, i32
  }
  func.func @transform_4(%arg0: i32, %arg1: i32) -> (i32, i32) {
    %c0_i32 = arith.constant 0 : i32
    %c0_i32_0 = arith.constant 0 : i32
    %c0_i32_1 = arith.constant 0 : i32
    return %c0_i32, %c0_i32_0 : i32, i32
  }
  func.func @transform_5(%arg0: i32, %arg1: i32) -> (i32, i32) {
    %c0_i32 = arith.constant 0 : i32
    %c0_i32_0 = arith.constant 0 : i32
    %c0_i32_1 = arith.constant 0 : i32
    return %c0_i32, %c0_i32_0 : i32, i32
  }
  func.func @transform_6(%arg0: i32, %arg1: i32) -> (i32, i32) {
    %c0_i32 = arith.constant 0 : i32
    %c0_i32_0 = arith.constant 0 : i32
    %c0_i32_1 = arith.constant 0 : i32
    return %c0_i32, %c0_i32_0 : i32, i32
  }
  func.func @transform_7(%arg0: i32, %arg1: i32) -> (i32, i32) {
    %c0_i32 = arith.constant 0 : i32
    %c0_i32_0 = arith.constant 0 : i32
    %c0_i32_1 = arith.constant 0 : i32
    return %c0_i32, %c0_i32_0 : i32, i32
  }
  func.func @transform_8(%arg0: i32, %arg1: i32) -> (i32, i32) {
    %c0_i32 = arith.constant 0 : i32
    %c0_i32_0 = arith.constant 0 : i32
    %c0_i32_1 = arith.constant 0 : i32
    return %c0_i32, %c0_i32_0 : i32, i32
  }
  func.func @transform_9(%arg0: i32, %arg1: i32) -> (i32, i32) {
    %c0_i32 = arith.constant 0 : i32
    %c0_i32_0 = arith.constant 0 : i32
    %c0_i32_1 = arith.constant 0 : i32
    return %c0_i32, %c0_i32_0 : i32, i32
  }
  func.func @transform_10(%arg0: i32, %arg1: i32) -> (i32, i32) {
    %c0_i32 = arith.constant 0 : i32
    %c0_i32_0 = arith.constant 0 : i32
    %c0_i32_1 = arith.constant 0 : i32
    return %c0_i32, %c0_i32_0 : i32, i32
  }
  func.func @transform_11(%arg0: i32, %arg1: i32) -> (i32, i32) {
    %c0_i32 = arith.constant 0 : i32
    %c0_i32_0 = arith.constant 0 : i32
    %c0_i32_1 = arith.constant 0 : i32
    return %c0_i32, %c0_i32_0 : i32, i32
  }
  func.func @transform_12(%arg0: i32, %arg1: i32) -> (i32, i32) {
    %c0_i32 = arith.constant 0 : i32
    %c0_i32_0 = arith.constant 0 : i32
    %c0_i32_1 = arith.constant 0 : i32
    return %c0_i32, %c0_i32_0 : i32, i32
  }
  func.func @transform_13(%arg0: i32, %arg1: i32) -> (i32, i32) {
    %c0_i32 = arith.constant 0 : i32
    %c0_i32_0 = arith.constant 0 : i32
    %c0_i32_1 = arith.constant 0 : i32
    return %c0_i32, %c0_i32_0 : i32, i32
  }
  func.func @transform_14(%arg0: i32, %arg1: i32) -> (i32, i32, i32) {
    %c0_i32 = arith.constant 0 : i32
    %c0_i32_0 = arith.constant 0 : i32
    return %arg0, %arg1, %c0_i32 : i32, i32, i32
  }
}

</mosaic_0001>

<llo_original>
// kernel: tpu_custom_call.1
$region0: #{tpu_custom_call.1}
  #allocation0 [shape = 'u32[]', space=smem, size = 0x4, offset = 0x4, fixed_abs, tag = 'smem constant byte address 0x4 - core index']
  #allocation1 [shape = 'u32[144,128]{1,0:T(1,128)}', space=vmem, size = 0x12000, scoped, tag = 'internal scratch']
  #allocation2 [shape = 'f32[8,32]{1,0:T(8,128)}', space=vmem, size = 0x1000, scoped, tag = 'scratch operand']
  #allocation3 [shape = 'f32[8,32]{1,0:T(8,128)}', space=vmem, size = 0x1000, scoped, tag = 'scratch operand']
  #allocation4 [shape = 'f32[8,32]{1,0:T(8,128)}', space=vmem, size = 0x1000, scoped, tag = 'scratch operand']
  #allocation5 [shape = 'f32[8,32]{1,0:T(8,128)}', space=vmem, size = 0x1000, scoped, tag = 'scratch operand']
  #allocation6 [shape = 'f32[8,32]{1,0:T(8,128)}', space=vmem, size = 0x1000, scoped, tag = 'scratch operand']
  %s0 = inlined_call_operand.hbm [shape: f32[2,8,32], index: 0, kind: input, shape index: {}]
  %s1 = inlined_call_operand.hbm [shape: f32[2,8,32], index: 1, kind: input, shape index: {}]
  %s2 = inlined_call_operand.hbm [shape: f32[32,32], index: 2, kind: input, shape index: {}]
  %s3 = inlined_call_operand.hbm [shape: f32[32,32], index: 3, kind: input, shape index: {}]
  %s4 = inlined_call_operand.hbm [shape: f32[32,32], index: 4, kind: input, shape index: {}]
  %s5 = inlined_call_operand.hbm [shape: f32[32,32], index: 5, kind: input, shape index: {}]
  %s6 = inlined_call_operand.hbm [shape: f32[1,32], index: 6, kind: input, shape index: {}]
  %s7 = inlined_call_operand.hbm [shape: f32[32,32], index: 7, kind: input, shape index: {}]
  %s8 = inlined_call_operand.hbm [shape: f32[32,32], index: 8, kind: input, shape index: {}]
  %s9 = inlined_call_operand.hbm [shape: f32[32,32], index: 9, kind: input, shape index: {}]
  %s10 = inlined_call_operand.hbm [shape: f32[32,32], index: 10, kind: input, shape index: {}]
  %s11 = inlined_call_operand.hbm [shape: f32[1,32], index: 11, kind: input, shape index: {}]
  %s12 = inlined_call_operand.hbm [shape: f32[32,32], index: 12, kind: input, shape index: {}]
  %s13 = inlined_call_operand.hbm [shape: f32[1,32], index: 13, kind: input, shape index: {}]
  %s14 = inlined_call_operand.hbm [shape: f32[2,8,32], index: 14, kind: output, shape index: {}]
  %s15 = sld [smem:[#allocation0]]
  $region149: #{tpu_custom_call.1} parent=0
    _
  %s17 = ssub.s32 1, %s15
  %s18 = scalar_select 0, %s17, %s15
  $region1: #{tpu_custom_call.1} parent=0
    #allocation7 [shape = 'u8[8192]{0}', space=vmem, size = 0x2000, scoped, tag = 'input window, operand 0']
    #allocation8 [shape = 's32[2]{0}', space=sflag, size = 0x8, scoped, tag = 'scoped memory for tpu_custom_call.1']
    #allocation9 [shape = 's32[2]{0}', space=sflag, size = 0x8, scoped, tag = 'scoped memory for tpu_custom_call.1']
    #allocation10 [shape = 'u8[8192]{0}', space=vmem, size = 0x2000, scoped, tag = 'input window, operand 1']
    #allocation11 [shape = 's32[2]{0}', space=sflag, size = 0x8, scoped, tag = 'scoped memory for tpu_custom_call.1']
    #allocation12 [shape = 'u8[16384]{0}', space=vmem, size = 0x4000, scoped, tag = 'input window, operand 2, single buffered']
    #allocation13 [shape = 'u8[16384]{0}', space=vmem, size = 0x4000, scoped, tag = 'input window, operand 3, single buffered']
    #allocation14 [shape = 's32[1]{0}', space=sflag, size = 0x4, scoped, tag = 'scoped memory for tpu_custom_call.1']
    #allocation15 [shape = 'u8[16384]{0}', space=vmem, size = 0x4000, scoped, tag = 'input window, operand 4, single buffered']
    #allocation16 [shape = 'u8[16384]{0}', space=vmem, size = 0x4000, scoped, tag = 'input window, operand 5, single buffered']
    #allocation17 [shape = 's32[1]{0}', space=sflag, size = 0x4, scoped, tag = 'scoped memory for tpu_custom_call.1']
    #allocation18 [shape = 'u8[512]{0}', space=vmem, size = 0x400, scoped, tag = 'input window, operand 6, single buffered']
    #allocation19 [shape = 'u8[16384]{0}', space=vmem, size = 0x4000, scoped, tag = 'input window, operand 7, single buffered']
    #allocation20 [shape = 's32[1]{0}', space=sflag, size = 0x4, scoped, tag = 'scoped memory for tpu_custom_call.1']
    #allocation21 [shape = 'u8[16384]{0}', space=vmem, size = 0x4000, scoped, tag = 'input window, operand 8, single buffered']
    #allocation22 [shape = 'u8[16384]{0}', space=vmem, size = 0x4000, scoped, tag = 'input window, operand 9, single buffered']
    #allocation23 [shape = 's32[1]{0}', space=sflag, size = 0x4, scoped, tag = 'scoped memory for tpu_custom_call.1']
    #allocation24 [shape = 'u8[16384]{0}', space=vmem, size = 0x4000, scoped, tag = 'input window, operand 10, single buffered']
    #allocation25 [shape = 'u8[512]{0}', space=vmem, size = 0x400, scoped, tag = 'input window, operand 11, single buffered']
    #allocation26 [shape = 's32[1]{0}', space=sflag, size = 0x4, scoped, tag = 'scoped memory for tpu_custom_call.1']
    #allocation27 [shape = 'u8[16384]{0}', space=vmem, size = 0x4000, scoped, tag = 'input window, operand 12, single buffered']
    #allocation28 [shape = 'u8[512]{0}', space=vmem, size = 0x400, scoped, tag = 'input window, operand 13, single buffered']
    #allocation29 [shape = 's32[1]{0}', space=sflag, size = 0x4, scoped, tag = 'scoped memory for tpu_custom_call.1']
    #allocation30 [shape = 'u8[8192]{0}', space=vmem, size = 0x2000, scoped, tag = 'output window, operand 0']
    %19 = vsyncpa [#allocation8], 0
    %s20 = scalar_lea.sflag [#allocation8], 1
    %21 = vsyncpa %s20, 0
    %22 = vsyncpa [#allocation11], 0
    %s23 = scalar_lea.sflag [#allocation11], 1
    %24 = vsyncpa %s23, 0
    %25 = vsyncpa [#allocation14], 0
    %26 = vsyncpa [#allocation17], 0
    %27 = vsyncpa [#allocation20], 0
    %28 = vsyncpa [#allocation23], 0
    %29 = vsyncpa [#allocation26], 0
    %30 = vsyncpa [#allocation29], 0
    %31 = vsyncpa [#allocation9], 0
    %s32 = scalar_lea.sflag [#allocation9], 1
    %33 = vsyncpa %s32, 0
    loop: start=0, step=1, limit=4
    $region2: #{tpu_custom_call.1} parent=1 // loop_pre_header
      _
    $region3: #{tpu_custom_call.1} parent=1 // loop_header
      %s35 = sphi 0, %s39
      %p36 = scmp.ge.s32.totalorder %s35, 4
      %s42 = sphi 0, %s54
      %s43 = sphi 0, %s50
      %s44 = sphi 0, %s42
      %s45 = sphi 0, %s43
      %s46 = sphi 0, %s44
      %s47 = sphi 0, %s45
      %s59 = sphi 0, %s61
      %s62 = sphi 0, %s59
      %s63 = sphi 0, %s62
      %s79 = sphi 0, %s63
      %s85 = sphi 0, %s87
      %s88 = sphi 0, %s85
      %s89 = sphi 0, %s88
      %s105 = sphi 0, %s89
      %s109 = sphi 0, %s109
      %s111 = sphi 0, %s109
      %s112 = sphi 0, %s111
      %s126 = sphi 0, %s112
      %s130 = sphi 0, %s130
      %s132 = sphi 0, %s130
      %s133 = sphi 0, %s132
      %s147 = sphi 0, %s133
      %s151 = sphi 0, %s151
      %s153 = sphi 0, %s151
      %s154 = sphi 0, %s153
      %s168 = sphi 0, %s154
      %s172 = sphi 0, %s172
      %s174 = sphi 0, %s172
      %s175 = sphi 0, %s174
      %s189 = sphi 0, %s175
      %s193 = sphi 0, %s193
      %s195 = sphi 0, %s193
      %s196 = sphi 0, %s195
      %s210 = sphi 0, %s196
      %s214 = sphi 0, %s214
      %s216 = sphi 0, %s214
      %s217 = sphi 0, %s216
      %s231 = sphi 0, %s217
      %s235 = sphi 0, %s235
      %s237 = sphi 0, %s235
      %s238 = sphi 0, %s237
      %s252 = sphi 0, %s238
      %s256 = sphi 0, %s256
      %s258 = sphi 0, %s256
      %s259 = sphi 0, %s258
      %s273 = sphi 0, %s259
      %s277 = sphi 0, %s277
      %s279 = sphi 0, %s277
      %s280 = sphi 0, %s279
      %s294 = sphi 0, %s280
      %s298 = sphi 0, %s298
      %s300 = sphi 0, %s298
      %s301 = sphi 0, %s300
      %s315 = sphi 0, %s301
      %s319 = sphi 0, %s319
      %s321 = sphi 0, %s319
      %s322 = sphi 0, %s321
      %s336 = sphi 0, %s322
      %s340 = sphi 0, %s340
      %s342 = sphi 0, %s340
      %s343 = sphi 0, %s342
      %s357 = sphi 0, %s343
      %s365 = sphi 0, %s367
      %s368 = sphi 0, %s365
      %s369 = sphi 0, %s368
      %s385 = sphi 0, %s369
    $region4: #{tpu_custom_call.1} parent=1 // loop_header_branch
      %38 = sbr.rel (%p36) target = $region8
    $region5: #{tpu_custom_call.1} parent=1 // loop_body
      %s40 = ssub.s32 %s35, 1
      %s41 = ssub.s32 %s35, 2
      %s48 = sadd.s32 1, %s43
      %p49 = scmp.ge.s32.totalorder %s48, 1
      %s50 = scalar_select %p49, 0, %s48
      %s51 = sadd.s32 1, %s42
      %s52 = scalar_select %p49, %s51, %s42
      %p53 = scmp.ge.s32.totalorder %s52, 2
      %s54 = scalar_select %p53, 0, %s52
      %s55 = ssub.s32 %s42, %s54
      %s56 = ssub.s32 %s43, %s50
      %s57 = sor.u32 %s55, %s56
      %p58 = scmp.eq.s32.totalorder %s57, 0
      %s60 = sadd.s32 %s59, 1
      %s61 = scalar_select %p58, %s59, %s60
      %p64 = pneg %p58
      %p65 = scmp.eq.s32.totalorder %s35, 1
      %p66 = por %p64, %p65
      %p67 = scmp.ne.s32.totalorder %s59, %s62
      %p68 = scmp.eq.s32.totalorder %s35, 0
      %p69 = por %p67, %p68
      %p70 = scmp.ne.s32.totalorder %s59, %s62
      %p71 = scmp.eq.s32.totalorder %s40, 1
      %p72 = por %p70, %p71
      %p73 = scmp.ne.s32.totalorder %s62, %s63
      %p74 = scmp.eq.s32.totalorder %s40, 0
      %p75 = por %p73, %p74
      %p76 = scmp.ne.s32.totalorder %s62, %s63
      %p77 = scmp.eq.s32.totalorder %s41, 1
      %p78 = por %p76, %p77
      %p80 = scmp.ne.s32.totalorder %s63, %s79
      %p81 = scmp.eq.s32.totalorder %s41, 0
      %p82 = por %p80, %p81
      %s83 = ssub.s32 %s42, %s54
      %p84 = scmp.eq.s32.totalorder %s83, 0
      %s86 = sadd.s32 %s85, 1
      %s87 = scalar_select %p84, %s85, %s86
      %p90 = pneg %p84
      %p91 = scmp.eq.s32.totalorder %s35, 1
      %p92 = por %p90, %p91
      %p93 = scmp.ne.s32.totalorder %s85, %s88
      %p94 = scmp.eq.s32.totalorder %s35, 0
      %p95 = por %p93, %p94
      %p96 = scmp.ne.s32.totalorder %s85, %s88
      %p97 = scmp.eq.s32.totalorder %s40, 1
      %p98 = por %p96, %p97
      %p99 = scmp.ne.s32.totalorder %s88, %s89
      %p100 = scmp.eq.s32.totalorder %s40, 0
      %p101 = por %p99, %p100
      %p102 = scmp.ne.s32.totalorder %s88, %s89
      %p103 = scmp.eq.s32.totalorder %s41, 1
      %p104 = por %p102, %p103
      %p106 = scmp.ne.s32.totalorder %s89, %s105
      %p107 = scmp.eq.s32.totalorder %s41, 0
      %p108 = por %p106, %p107
      %s110 = sadd.s32 %s109, 1
      %p113 = scmp.eq.s32.totalorder %s35, 1
      %p114 = scmp.ne.s32.totalorder %s109, %s111
      %p115 = scmp.eq.s32.totalorder %s35, 0
      %p116 = por %p114, %p115
      %p117 = scmp.ne.s32.totalorder %s109, %s111
      %p118 = scmp.eq.s32.totalorder %s40, 1
      %p119 = por %p117, %p118
      %p120 = scmp.ne.s32.totalorder %s111, %s112
      %p121 = scmp.eq.s32.totalorder %s40, 0
      %p122 = por %p120, %p121
      %p123 = scmp.ne.s32.totalorder %s111, %s112
      %p124 = scmp.eq.s32.totalorder %s41, 1
      %p125 = por %p123, %p124
      %p127 = scmp.ne.s32.totalorder %s112, %s126
      %p128 = scmp.eq.s32.totalorder %s41, 0
      %p129 = por %p127, %p128
      %s131 = sadd.s32 %s130, 1
      %p134 = scmp.eq.s32.totalorder %s35, 1
      %p135 = scmp.ne.s32.totalorder %s130, %s132
      %p136 = scmp.eq.s32.totalorder %s35, 0
      %p137 = por %p135, %p136
      %p138 = scmp.ne.s32.totalorder %s130, %s132
      %p139 = scmp.eq.s32.totalorder %s40, 1
      %p140 = por %p138, %p139
      %p141 = scmp.ne.s32.totalorder %s132, %s133
      %p142 = scmp.eq.s32.totalorder %s40, 0
      %p143 = por %p141, %p142
      %p144 = scmp.ne.s32.totalorder %s132, %s133
      %p145 = scmp.eq.s32.totalorder %s41, 1
      %p146 = por %p144, %p145
      %p148 = scmp.ne.s32.totalorder %s133, %s147
      %p149 = scmp.eq.s32.totalorder %s41, 0
      %p150 = por %p148, %p149
      %s152 = sadd.s32 %s151, 1
      %p155 = scmp.eq.s32.totalorder %s35, 1
      %p156 = scmp.ne.s32.totalorder %s151, %s153
      %p157 = scmp.eq.s32.totalorder %s35, 0
      %p158 = por %p156, %p157
      %p159 = scmp.ne.s32.totalorder %s151, %s153
      %p160 = scmp.eq.s32.totalorder %s40, 1
      %p161 = por %p159, %p160
      %p162 = scmp.ne.s32.totalorder %s153, %s154
      %p163 = scmp.eq.s32.totalorder %s40, 0
      %p164 = por %p162, %p163
      %p165 = scmp.ne.s32.totalorder %s153, %s154
      %p166 = scmp.eq.s32.totalorder %s41, 1
      %p167 = por %p165, %p166
      %p169 = scmp.ne.s32.totalorder %s154, %s168
      %p170 = scmp.eq.s32.totalorder %s41, 0
      %p171 = por %p169, %p170
      %s173 = sadd.s32 %s172, 1
      %p176 = scmp.eq.s32.totalorder %s35, 1
      %p177 = scmp.ne.s32.totalorder %s172, %s174
      %p178 = scmp.eq.s32.totalorder %s35, 0
      %p179 = por %p177, %p178
      %p180 = scmp.ne.s32.totalorder %s172, %s174
      %p181 = scmp.eq.s32.totalorder %s40, 1
      %p182 = por %p180, %p181
      %p183 = scmp.ne.s32.totalorder %s174, %s175
      %p184 = scmp.eq.s32.totalorder %s40, 0
      %p185 = por %p183, %p184
      %p186 = scmp.ne.s32.totalorder %s174, %s175
      %p187 = scmp.eq.s32.totalorder %s41, 1
      %p188 = por %p186, %p187
      %p190 = scmp.ne.s32.totalorder %s175, %s189
      %p191 = scmp.eq.s32.totalorder %s41, 0
      %p192 = por %p190, %p191
      %s194 = sadd.s32 %s193, 1
      %p197 = scmp.eq.s32.totalorder %s35, 1
      %p198 = scmp.ne.s32.totalorder %s193, %s195
      %p199 = scmp.eq.s32.totalorder %s35, 0
      %p200 = por %p198, %p199
      %p201 = scmp.ne.s32.totalorder %s193, %s195
      %p202 = scmp.eq.s32.totalorder %s40, 1
      %p203 = por %p201, %p202
      %p204 = scmp.ne.s32.totalorder %s195, %s196
      %p205 = scmp.eq.s32.totalorder %s40, 0
      %p206 = por %p204, %p205
      %p207 = scmp.ne.s32.totalorder %s195, %s196
      %p208 = scmp.eq.s32.totalorder %s41, 1
      %p209 = por %p207, %p208
      %p211 = scmp.ne.s32.totalorder %s196, %s210
      %p212 = scmp.eq.s32.totalorder %s41, 0
      %p213 = por %p211, %p212
      %s215 = sadd.s32 %s214, 1
      %p218 = scmp.eq.s32.totalorder %s35, 1
      %p219 = scmp.ne.s32.totalorder %s214, %s216
      %p220 = scmp.eq.s32.totalorder %s35, 0
      %p221 = por %p219, %p220
      %p222 = scmp.ne.s32.totalorder %s214, %s216
      %p223 = scmp.eq.s32.totalorder %s40, 1
      %p224 = por %p222, %p223
      %p225 = scmp.ne.s32.totalorder %s216, %s217
      %p226 = scmp.eq.s32.totalorder %s40, 0
      %p227 = por %p225, %p226
      %p228 = scmp.ne.s32.totalorder %s216, %s217
      %p229 = scmp.eq.s32.totalorder %s41, 1
      %p230 = por %p228, %p229
      %p232 = scmp.ne.s32.totalorder %s217, %s231
      %p233 = scmp.eq.s32.totalorder %s41, 0
      %p234 = por %p232, %p233
      %s236 = sadd.s32 %s235, 1
      %p239 = scmp.eq.s32.totalorder %s35, 1
      %p240 = scmp.ne.s32.totalorder %s235, %s237
      %p241 = scmp.eq.s32.totalorder %s35, 0
      %p242 = por %p240, %p241
      %p243 = scmp.ne.s32.totalorder %s235, %s237
      %p244 = scmp.eq.s32.totalorder %s40, 1
      %p245 = por %p243, %p244
      %p246 = scmp.ne.s32.totalorder %s237, %s238
      %p247 = scmp.eq.s32.totalorder %s40, 0
      %p248 = por %p246, %p247
      %p249 = scmp.ne.s32.totalorder %s237, %s238
      %p250 = scmp.eq.s32.totalorder %s41, 1
      %p251 = por %p249, %p250
      %p253 = scmp.ne.s32.totalorder %s238, %s252
      %p254 = scmp.eq.s32.totalorder %s41, 0
      %p255 = por %p253, %p254
      %s257 = sadd.s32 %s256, 1
      %p260 = scmp.eq.s32.totalorder %s35, 1
      %p261 = scmp.ne.s32.totalorder %s256, %s258
      %p262 = scmp.eq.s32.totalorder %s35, 0
      %p263 = por %p261, %p262
      %p264 = scmp.ne.s32.totalorder %s256, %s258
      %p265 = scmp.eq.s32.totalorder %s40, 1
      %p266 = por %p264, %p265
      %p267 = scmp.ne.s32.totalorder %s258, %s259
      %p268 = scmp.eq.s32.totalorder %s40, 0
      %p269 = por %p267, %p268
      %p270 = scmp.ne.s32.totalorder %s258, %s259
      %p271 = scmp.eq.s32.totalorder %s41, 1
      %p272 = por %p270, %p271
      %p274 = scmp.ne.s32.totalorder %s259, %s273
      %p275 = scmp.eq.s32.totalorder %s41, 0
      %p276 = por %p274, %p275
      %s278 = sadd.s32 %s277, 1
      %p281 = scmp.eq.s32.totalorder %s35, 1
      %p282 = scmp.ne.s32.totalorder %s277, %s279
      %p283 = scmp.eq.s32.totalorder %s35, 0
      %p284 = por %p282, %p283
      %p285 = scmp.ne.s32.totalorder %s277, %s279
      %p286 = scmp.eq.s32.totalorder %s40, 1
      %p287 = por %p285, %p286
      %p288 = scmp.ne.s32.totalorder %s279, %s280
      %p289 = scmp.eq.s32.totalorder %s40, 0
      %p290 = por %p288, %p289
      %p291 = scmp.ne.s32.totalorder %s279, %s280
      %p292 = scmp.eq.s32.totalorder %s41, 1
      %p293 = por %p291, %p292
      %p295 = scmp.ne.s32.totalorder %s280, %s294
      %p296 = scmp.eq.s32.totalorder %s41, 0
      %p297 = por %p295, %p296
      %s299 = sadd.s32 %s298, 1
      %p302 = scmp.eq.s32.totalorder %s35, 1
      %p303 = scmp.ne.s32.totalorder %s298, %s300
      %p304 = scmp.eq.s32.totalorder %s35, 0
      %p305 = por %p303, %p304
      %p306 = scmp.ne.s32.totalorder %s298, %s300
      %p307 = scmp.eq.s32.totalorder %s40, 1
      %p308 = por %p306, %p307
      %p309 = scmp.ne.s32.totalorder %s300, %s301
      %p310 = scmp.eq.s32.totalorder %s40, 0
      %p311 = por %p309, %p310
      %p312 = scmp.ne.s32.totalorder %s300, %s301
      %p313 = scmp.eq.s32.totalorder %s41, 1
      %p314 = por %p312, %p313
      %p316 = scmp.ne.s32.totalorder %s301, %s315
      %p317 = scmp.eq.s32.totalorder %s41, 0
      %p318 = por %p316, %p317
      %s320 = sadd.s32 %s319, 1
      %p323 = scmp.eq.s32.totalorder %s35, 1
      %p324 = scmp.ne.s32.totalorder %s319, %s321
      %p325 = scmp.eq.s32.totalorder %s35, 0
      %p326 = por %p324, %p325
      %p327 = scmp.ne.s32.totalorder %s319, %s321
      %p328 = scmp.eq.s32.totalorder %s40, 1
      %p329 = por %p327, %p328
      %p330 = scmp.ne.s32.totalorder %s321, %s322
      %p331 = scmp.eq.s32.totalorder %s40, 0
      %p332 = por %p330, %p331
      %p333 = scmp.ne.s32.totalorder %s321, %s322
      %p334 = scmp.eq.s32.totalorder %s41, 1
      %p335 = por %p333, %p334
      %p337 = scmp.ne.s32.totalorder %s322, %s336
      %p338 = scmp.eq.s32.totalorder %s41, 0
      %p339 = por %p337, %p338
      %s341 = sadd.s32 %s340, 1
      %p344 = scmp.eq.s32.totalorder %s35, 1
      %p345 = scmp.ne.s32.totalorder %s340, %s342
      %p346 = scmp.eq.s32.totalorder %s35, 0
      %p347 = por %p345, %p346
      %p348 = scmp.ne.s32.totalorder %s340, %s342
      %p349 = scmp.eq.s32.totalorder %s40, 1
      %p350 = por %p348, %p349
      %p351 = scmp.ne.s32.totalorder %s342, %s343
      %p352 = scmp.eq.s32.totalorder %s40, 0
      %p353 = por %p351, %p352
      %p354 = scmp.ne.s32.totalorder %s342, %s343
      %p355 = scmp.eq.s32.totalorder %s41, 1
      %p356 = por %p354, %p355
      %p358 = scmp.ne.s32.totalorder %s343, %s357
      %p359 = scmp.eq.s32.totalorder %s41, 0
      %p360 = por %p358, %p359
      %s361 = ssub.s32 %s42, %s54
      %s362 = ssub.s32 %s43, %s50
      %s363 = sor.u32 %s361, %s362
      %p364 = scmp.eq.s32.totalorder %s363, 0
      %s366 = sadd.s32 %s365, 1
      %s367 = scalar_select %p364, %s365, %s366
      %p370 = pneg %p364
      %p371 = scmp.eq.s32.totalorder %s35, 1
      %p372 = por %p370, %p371
      %p373 = scmp.ne.s32.totalorder %s365, %s368
      %p374 = scmp.eq.s32.totalorder %s35, 0
      %p375 = por %p373, %p374
      %p376 = scmp.ne.s32.totalorder %s365, %s368
      %p377 = scmp.eq.s32.totalorder %s40, 1
      %p378 = por %p376, %p377
      %p379 = scmp.ne.s32.totalorder %s368, %s369
      %p380 = scmp.eq.s32.totalorder %s40, 0
      %p381 = por %p379, %p380
      %p382 = scmp.ne.s32.totalorder %s368, %s369
      %p383 = scmp.eq.s32.totalorder %s41, 1
      %p384 = por %p382, %p383
      %p386 = scmp.ne.s32.totalorder %s369, %s385
      %p387 = scmp.eq.s32.totalorder %s41, 0
      %p388 = por %p386, %p387
      %p389 = scmp.le.s32.totalorder 1, %s35
      %p390 = scmp.lt.s32.totalorder %s35, 3
      %p391 = pnand %p389, %p390
      %p392 = pneg %p391
      // Predicated region
      $region9: #{tpu_custom_call.1} parent=5 // pred_check
        _
      $region10: #{tpu_custom_call.1} parent=5 // pred_check_branch
        %394 = sbr.rel (%p391) target = $region12
      $region11: #{tpu_custom_call.1} parent=5 // pred_region
        %s395 = ssub.s32 %s35, 1
        // Predicated region
        $region13: #{tpu_custom_call.1} parent=11 // pred_check
          %p396 = pneg %p122
        $region14: #{tpu_custom_call.1} parent=11 // pred_check_branch
          %398 = sbr.rel (%p396) target = $region16
        $region15: #{tpu_custom_call.1} parent=11 // pred_region
          %s400 = ssub.s32 512, 512
          %401 = vsyncadd [#allocation11], %s400
          %s402 = sshll.u32 [#allocation12], 4
          %s403 = int_to_ptr.vmem [resolvable:$true] %s402
          %408 = dma.hbm_to_vmem [thread:$0]  %s2, 512, %s403, [#allocation11], 128, 128, 8
        $region16: #{tpu_custom_call.1} parent=11 // pred_fallthru
          _
        // Predicated region
        $region17: #{tpu_custom_call.1} parent=11 // pred_check
          %p409 = pneg %p143
        $region18: #{tpu_custom_call.1} parent=11 // pred_check_branch
          %411 = sbr.rel (%p409) target = $region20
        $region19: #{tpu_custom_call.1} parent=11 // pred_region
          %s413 = ssub.s32 512, 512
          %414 = vsyncadd [#allocation14], %s413
          %s415 = sshll.u32 [#allocation13], 4
          %s416 = int_to_ptr.vmem [resolvable:$true] %s415
          %421 = dma.hbm_to_vmem [thread:$0]  %s3, 512, %s416, [#allocation14], 128, 128, 8
        $region20: #{tpu_custom_call.1} parent=11 // pred_fallthru
          _
        // Predicated region
        $region21: #{tpu_custom_call.1} parent=11 // pred_check
          %p422 = pneg %p164
        $region22: #{tpu_custom_call.1} parent=11 // pred_check_branch
          %424 = sbr.rel (%p422) target = $region24
        $region23: #{tpu_custom_call.1} parent=11 // pred_region
          %s426 = ssub.s32 512, 512
          %427 = vsyncadd [#allocation14], %s426
          %s428 = sshll.u32 [#allocation15], 4
          %s429 = int_to_ptr.vmem [resolvable:$true] %s428
          %434 = dma.hbm_to_vmem [thread:$0]  %s4, 512, %s429, [#allocation14], 128, 128, 8
        $region24: #{tpu_custom_call.1} parent=11 // pred_fallthru
          _
        // Predicated region
        $region25: #{tpu_custom_call.1} parent=11 // pred_check
          %p435 = pneg %p185
        $region26: #{tpu_custom_call.1} parent=11 // pred_check_branch
          %437 = sbr.rel (%p435) target = $region28
        $region27: #{tpu_custom_call.1} parent=11 // pred_region
          %s439 = ssub.s32 512, 512
          %440 = vsyncadd [#allocation17], %s439
          %s441 = sshll.u32 [#allocation16], 4
          %s442 = int_to_ptr.vmem [resolvable:$true] %s441
          %447 = dma.hbm_to_vmem [thread:$0]  %s5, 512, %s442, [#allocation17], 128, 128, 8
        $region28: #{tpu_custom_call.1} parent=11 // pred_fallthru
          _
        // Predicated region
        $region29: #{tpu_custom_call.1} parent=11 // pred_check
          %p448 = pneg %p206
        $region30: #{tpu_custom_call.1} parent=11 // pred_check_branch
          %450 = sbr.rel (%p448) target = $region32
        $region31: #{tpu_custom_call.1} parent=11 // pred_region
          %s452 = ssub.s32 16, 16
          %453 = vsyncadd [#allocation17], %s452
          %s455 = sshll.u32 [#allocation18], 4
          %s456 = int_to_ptr.vmem [resolvable:$true] %s455
          %458 = dma.hbm_to_vmem [thread:$0]  %s6, 16, %s456, [#allocation17]
        $region32: #{tpu_custom_call.1} parent=11 // pred_fallthru
          _
        // Predicated region
        $region33: #{tpu_custom_call.1} parent=11 // pred_check
          %p459 = pneg %p227
        $region34: #{tpu_custom_call.1} parent=11 // pred_check_branch
          %461 = sbr.rel (%p459) target = $region36
        $region35: #{tpu_custom_call.1} parent=11 // pred_region
          %s463 = ssub.s32 512, 512
          %464 = vsyncadd [#allocation20], %s463
          %s465 = sshll.u32 [#allocation19], 4
          %s466 = int_to_ptr.vmem [resolvable:$true] %s465
          %471 = dma.hbm_to_vmem [thread:$0]  %s7, 512, %s466, [#allocation20], 128, 128, 8
        $region36: #{tpu_custom_call.1} parent=11 // pred_fallthru
          _
        // Predicated region
        $region37: #{tpu_custom_call.1} parent=11 // pred_check
          %p472 = pneg %p248
        $region38: #{tpu_custom_call.1} parent=11 // pred_check_branch
          %474 = sbr.rel (%p472) target = $region40
        $region39: #{tpu_custom_call.1} parent=11 // pred_region
          %s476 = ssub.s32 512, 512
          %477 = vsyncadd [#allocation20], %s476
          %s478 = sshll.u32 [#allocation21], 4
          %s479 = int_to_ptr.vmem [resolvable:$true] %s478
          %484 = dma.hbm_to_vmem [thread:$0]  %s8, 512, %s479, [#allocation20], 128, 128, 8
        $region40: #{tpu_custom_call.1} parent=11 // pred_fallthru
          _
        // Predicated region
        $region41: #{tpu_custom_call.1} parent=11 // pred_check
          %p485 = pneg %p269
        $region42: #{tpu_custom_call.1} parent=11 // pred_check_branch
          %487 = sbr.rel (%p485) target = $region44
        $region43: #{tpu_custom_call.1} parent=11 // pred_region
          %s489 = ssub.s32 512, 512
          %490 = vsyncadd [#allocation23], %s489
          %s491 = sshll.u32 [#allocation22], 4
          %s492 = int_to_ptr.vmem [resolvable:$true] %s491
          %497 = dma.hbm_to_vmem [thread:$0]  %s9, 512, %s492, [#allocation23], 128, 128, 8
        $region44: #{tpu_custom_call.1} parent=11 // pred_fallthru
          _
        // Predicated region
        $region45: #{tpu_custom_call.1} parent=11 // pred_check
          %p498 = pneg %p290
        $region46: #{tpu_custom_call.1} parent=11 // pred_check_branch
          %500 = sbr.rel (%p498) target = $region48
        $region47: #{tpu_custom_call.1} parent=11 // pred_region
          %s502 = ssub.s32 512, 512
          %503 = vsyncadd [#allocation23], %s502
          %s504 = sshll.u32 [#allocation24], 4
          %s505 = int_to_ptr.vmem [resolvable:$true] %s504
          %510 = dma.hbm_to_vmem [thread:$0]  %s10, 512, %s505, [#allocation23], 128, 128, 8
        $region48: #{tpu_custom_call.1} parent=11 // pred_fallthru
          _
        // Predicated region
        $region49: #{tpu_custom_call.1} parent=11 // pred_check
          %p511 = pneg %p311
        $region50: #{tpu_custom_call.1} parent=11 // pred_check_branch
          %513 = sbr.rel (%p511) target = $region52
        $region51: #{tpu_custom_call.1} parent=11 // pred_region
          %s515 = ssub.s32 16, 16
          %516 = vsyncadd [#allocation26], %s515
          %s518 = sshll.u32 [#allocation25], 4
          %s519 = int_to_ptr.vmem [resolvable:$true] %s518
          %521 = dma.hbm_to_vmem [thread:$0]  %s11, 16, %s519, [#allocation26]
        $region52: #{tpu_custom_call.1} parent=11 // pred_fallthru
          _
        // Predicated region
        $region53: #{tpu_custom_call.1} parent=11 // pred_check
          %p522 = pneg %p332
        $region54: #{tpu_custom_call.1} parent=11 // pred_check_branch
          %524 = sbr.rel (%p522) target = $region56
        $region55: #{tpu_custom_call.1} parent=11 // pred_region
          %s526 = ssub.s32 512, 512
          %527 = vsyncadd [#allocation26], %s526
          %s528 = sshll.u32 [#allocation27], 4
          %s529 = int_to_ptr.vmem [resolvable:$true] %s528
          %534 = dma.hbm_to_vmem [thread:$0]  %s12, 512, %s529, [#allocation26], 128, 128, 8
        $region56: #{tpu_custom_call.1} parent=11 // pred_fallthru
          _
        // Predicated region
        $region57: #{tpu_custom_call.1} parent=11 // pred_check
          %p535 = pneg %p353
        $region58: #{tpu_custom_call.1} parent=11 // pred_check_branch
          %537 = sbr.rel (%p535) target = $region60
        $region59: #{tpu_custom_call.1} parent=11 // pred_region
          %s539 = ssub.s32 16, 16
          %540 = vsyncadd [#allocation29], %s539
          %s542 = sshll.u32 [#allocation28], 4
          %s543 = int_to_ptr.vmem [resolvable:$true] %s542
          %545 = dma.hbm_to_vmem [thread:$0]  %s13, 16, %s543, [#allocation29]
        $region60: #{tpu_custom_call.1} parent=11 // pred_fallthru
          _
      $region12: #{tpu_custom_call.1} parent=5 // pred_fallthru
        _
      %p546 = scmp.lt.s32.totalorder %s35, 2
      // Predicated region
      $region61: #{tpu_custom_call.1} parent=5 // pred_check
        %p547 = pneg %p546
      $region62: #{tpu_custom_call.1} parent=5 // pred_check_branch
        %549 = sbr.rel (%p547) target = $region64
      $region63: #{tpu_custom_call.1} parent=5 // pred_region
        // Predicated region
        $region65: #{tpu_custom_call.1} parent=63 // pred_check
          %p550 = pneg %p69
        $region66: #{tpu_custom_call.1} parent=63 // pred_check_branch
          %552 = sbr.rel (%p550) target = $region68
        $region67: #{tpu_custom_call.1} parent=63 // pred_region
          %s553 = sand.u32 %s59, 1
          %s554 = scalar_lea.sflag [#allocation8], %s553
          %s555 = sand.u32 %s59, 1
          %s556 = smul.addr %s555, 8
          %s557 = scalar_lea.vmem [#allocation7], %s556
          %s559 = ssub.s32 128, 128
          %560 = vsyncadd %s554, %s559
          %s561 = sadd.s32 %s43, %s42
          %s562 = smul.addr %s561, 128
          %s563 = scalar_lea.hbm %s0, %s562
          %s565 = sshll.u32 %s557, 4
          %s566 = int_to_ptr.vmem [resolvable:$true] %s565
          %568 = dma.hbm_to_vmem [thread:$0]  %s563, 128, %s566, %s554
        $region68: #{tpu_custom_call.1} parent=63 // pred_fallthru
          _
        // Predicated region
        $region69: #{tpu_custom_call.1} parent=63 // pred_check
          %p569 = pneg %p95
        $region70: #{tpu_custom_call.1} parent=63 // pred_check_branch
          %571 = sbr.rel (%p569) target = $region72
        $region71: #{tpu_custom_call.1} parent=63 // pred_region
          %s572 = sand.u32 %s35, 1
          %s573 = scalar_lea.sflag [#allocation11], %s572
          %s574 = sand.u32 %s85, 1
          %s575 = smul.addr %s574, 8
          %s576 = scalar_lea.vmem [#allocation10], %s575
          %s578 = ssub.s32 128, 128
          %579 = vsyncadd %s573, %s578
          %s580 = smul.addr %s42, 128
          %s581 = scalar_lea.hbm %s1, %s580
          %s583 = sshll.u32 %s576, 4
          %s584 = int_to_ptr.vmem [resolvable:$true] %s583
          %586 = dma.hbm_to_vmem [thread:$0]  %s581, 128, %s584, %s573
        $region72: #{tpu_custom_call.1} parent=63 // pred_fallthru
          _
      $region64: #{tpu_custom_call.1} parent=5 // pred_fallthru
        _
      %p587 = scmp.le.s32.totalorder 1, %s35
      %p588 = scmp.lt.s32.totalorder %s35, 3
      %p589 = pnand %p587, %p588
      %p590 = pneg %p589
      // Predicated region
      $region73: #{tpu_custom_call.1} parent=5 // pred_check
        _
      $region74: #{tpu_custom_call.1} parent=5 // pred_check_branch
        %592 = sbr.rel (%p589) target = $region76
      $region75: #{tpu_custom_call.1} parent=5 // pred_region
        %s593 = ssub.s32 %s35, 1
        %s594 = sand.u32 %s62, 1
        %s595 = scalar_lea.sflag [#allocation8], %s594
        %s596 = sand.u32 %s62, 1
        %s597 = smul.addr %s596, 8
        %s598 = scalar_lea.vmem [#allocation7], %s597
        // Predicated region
        $region77: #{tpu_custom_call.1} parent=75 // pred_check
          %p599 = pneg %p75
        $region78: #{tpu_custom_call.1} parent=75 // pred_check_branch
          %601 = sbr.rel (%p599) target = $region80
        $region79: #{tpu_custom_call.1} parent=75 // pred_region
          %602 = dma.done %s595, 128
        $region80: #{tpu_custom_call.1} parent=75 // pred_fallthru
          _
        %s603 = sand.u32 %s40, 1
        %s604 = scalar_lea.sflag [#allocation11], %s603
        %s605 = sand.u32 %s88, 1
        %s606 = smul.addr %s605, 8
        %s607 = scalar_lea.vmem [#allocation10], %s606
        // Predicated region
        $region81: #{tpu_custom_call.1} parent=75 // pred_check
          %p608 = pneg %p101
        $region82: #{tpu_custom_call.1} parent=75 // pred_check_branch
          %610 = sbr.rel (%p608) target = $region84
        $region83: #{tpu_custom_call.1} parent=75 // pred_region
          %611 = dma.done %s604, 128
        $region84: #{tpu_custom_call.1} parent=75 // pred_fallthru
          _
        // Predicated region
        $region85: #{tpu_custom_call.1} parent=75 // pred_check
          %p612 = pneg %p122
        $region86: #{tpu_custom_call.1} parent=75 // pred_check_branch
          %614 = sbr.rel (%p612) target = $region88
        $region87: #{tpu_custom_call.1} parent=75 // pred_region
          %615 = dma.done [#allocation11], 512
        $region88: #{tpu_custom_call.1} parent=75 // pred_fallthru
          _
        // Predicated region
        $region89: #{tpu_custom_call.1} parent=75 // pred_check
          %p616 = pneg %p143
        $region90: #{tpu_custom_call.1} parent=75 // pred_check_branch
          %618 = sbr.rel (%p616) target = $region92
        $region91: #{tpu_custom_call.1} parent=75 // pred_region
          %619 = dma.done [#allocation14], 512
        $region92: #{tpu_custom_call.1} parent=75 // pred_fallthru
          _
        // Predicated region
        $region93: #{tpu_custom_call.1} parent=75 // pred_check
          %p620 = pneg %p164
        $region94: #{tpu_custom_call.1} parent=75 // pred_check_branch
          %622 = sbr.rel (%p620) target = $region96
        $region95: #{tpu_custom_call.1} parent=75 // pred_region
          %623 = dma.done [#allocation14], 512
        $region96: #{tpu_custom_call.1} parent=75 // pred_fallthru
          _
        // Predicated region
        $region97: #{tpu_custom_call.1} parent=75 // pred_check
          %p624 = pneg %p185
        $region98: #{tpu_custom_call.1} parent=75 // pred_check_branch
          %626 = sbr.rel (%p624) target = $region100
        $region99: #{tpu_custom_call.1} parent=75 // pred_region
          %627 = dma.done [#allocation17], 512
        $region100: #{tpu_custom_call.1} parent=75 // pred_fallthru
          _
        // Predicated region
        $region101: #{tpu_custom_call.1} parent=75 // pred_check
          %p628 = pneg %p206
        $region102: #{tpu_custom_call.1} parent=75 // pred_check_branch
          %630 = sbr.rel (%p628) target = $region104
        $region103: #{tpu_custom_call.1} parent=75 // pred_region
          %631 = dma.done [#allocation17], 16
        $region104: #{tpu_custom_call.1} parent=75 // pred_fallthru
          _
        // Predicated region
        $region105: #{tpu_custom_call.1} parent=75 // pred_check
          %p632 = pneg %p227
        $region106: #{tpu_custom_call.1} parent=75 // pred_check_branch
          %634 = sbr.rel (%p632) target = $region108
        $region107: #{tpu_custom_call.1} parent=75 // pred_region
          %635 = dma.done [#allocation20], 512
        $region108: #{tpu_custom_call.1} parent=75 // pred_fallthru
          _
        // Predicated region
        $region109: #{tpu_custom_call.1} parent=75 // pred_check
          %p636 = pneg %p248
        $region110: #{tpu_custom_call.1} parent=75 // pred_check_branch
          %638 = sbr.rel (%p636) target = $region112
        $region111: #{tpu_custom_call.1} parent=75 // pred_region
          %639 = dma.done [#allocation20], 512
        $region112: #{tpu_custom_call.1} parent=75 // pred_fallthru
          _
        // Predicated region
        $region113: #{tpu_custom_call.1} parent=75 // pred_check
          %p640 = pneg %p269
        $region114: #{tpu_custom_call.1} parent=75 // pred_check_branch
          %642 = sbr.rel (%p640) target = $region116
        $region115: #{tpu_custom_call.1} parent=75 // pred_region
          %643 = dma.done [#allocation23], 512
        $region116: #{tpu_custom_call.1} parent=75 // pred_fallthru
          _
        // Predicated region
        $region117: #{tpu_custom_call.1} parent=75 // pred_check
          %p644 = pneg %p290
        $region118: #{tpu_custom_call.1} parent=75 // pred_check_branch
          %646 = sbr.rel (%p644) target = $region120
        $region119: #{tpu_custom_call.1} parent=75 // pred_region
          %647 = dma.done [#allocation23], 512
        $region120: #{tpu_custom_call.1} parent=75 // pred_fallthru
          _
        // Predicated region
        $region121: #{tpu_custom_call.1} parent=75 // pred_check
          %p648 = pneg %p311
        $region122: #{tpu_custom_call.1} parent=75 // pred_check_branch
          %650 = sbr.rel (%p648) target = $region124
        $region123: #{tpu_custom_call.1} parent=75 // pred_region
          %651 = dma.done [#allocation26], 16
        $region124: #{tpu_custom_call.1} parent=75 // pred_fallthru
          _
        // Predicated region
        $region125: #{tpu_custom_call.1} parent=75 // pred_check
          %p652 = pneg %p332
        $region126: #{tpu_custom_call.1} parent=75 // pred_check_branch
          %654 = sbr.rel (%p652) target = $region128
        $region127: #{tpu_custom_call.1} parent=75 // pred_region
          %655 = dma.done [#allocation26], 512
        $region128: #{tpu_custom_call.1} parent=75 // pred_fallthru
          _
        // Predicated region
        $region129: #{tpu_custom_call.1} parent=75 // pred_check
          %p656 = pneg %p353
        $region130: #{tpu_custom_call.1} parent=75 // pred_check_branch
          %658 = sbr.rel (%p656) target = $region132
        $region131: #{tpu_custom_call.1} parent=75 // pred_region
          %659 = dma.done [#allocation29], 16
        $region132: #{tpu_custom_call.1} parent=75 // pred_fallthru
          _
        %s660 = sand.u32 %s62, 1
        %s661 = scalar_lea.sflag [#allocation8], %s660
        %s662 = sand.u32 %s62, 1
        %s663 = smul.addr %s662, 8
        %s664 = scalar_lea.vmem [#allocation7], %s663
        %p665 = pneg %p75
        %p666 = pneg %p72
        %s667 = sand.u32 %s40, 1
        %s668 = scalar_lea.sflag [#allocation11], %s667
        %s669 = sand.u32 %s88, 1
        %s670 = smul.addr %s669, 8
        %s671 = scalar_lea.vmem [#allocation10], %s670
        %p672 = pneg %p101
        %p673 = pneg %p98
        %p674 = pneg %p122
        %p675 = pneg %p119
        %p676 = pneg %p143
        %p677 = pneg %p140
        %p678 = pneg %p164
        %p679 = pneg %p161
        %p680 = pneg %p185
        %p681 = pneg %p182
        %p682 = pneg %p206
        %p683 = pneg %p203
        %p684 = pneg %p227
        %p685 = pneg %p224
        %p686 = pneg %p248
        %p687 = pneg %p245
        %p688 = pneg %p269
        %p689 = pneg %p266
        %p690 = pneg %p290
        %p691 = pneg %p287
        %p692 = pneg %p311
        %p693 = pneg %p308
        %p694 = pneg %p332
        %p695 = pneg %p329
        %p696 = pneg %p353
        %p697 = pneg %p350
        %p698 = pneg %p381
        %p699 = pneg %p378
        %s700 = sand.u32 %s368, 1
        %s701 = scalar_lea.sflag [#allocation9], %s700
        %s702 = sand.u32 %s368, 1
        %s703 = smul.addr %s702, 8
        %s704 = scalar_lea.vmem [#allocation30], %s703
        %p705 = scmp.eq.s32.totalorder %s45, 0
        // Predicated region
        $region133: #{tpu_custom_call.1} parent=75 // pred_check
          %p706 = pneg %p705
        $region134: #{tpu_custom_call.1} parent=75 // pred_check_branch
          %708 = sbr.rel (%p706) target = $region136
        $region135: #{tpu_custom_call.1} parent=75 // pred_region
          %v709 = vld [vmem:[%s607] sm:$0xff]
          %v710 = vld [vmem:[#allocation13] sm:$0xff]
          %v711 = vld [vmem:[#allocation13 + $0x8] sm:$0xff]
          %v712 = vld [vmem:[#allocation13 + $0x10] sm:$0xff]
          %v713 = vld [vmem:[#allocation13 + $0x18] sm:$0xff]
          %vm714 = vcmask 261120
          %v716 = vsel %vm714, %v709, 0
          %718 = vmatprep.subr.mxu0 0.0
          %719 = vmatpush1.msra.mxu0 %v710
          %720 = vmatprep.subr.mxu0 0.0
          %721 = vmatpush1.msra.mxu0 %v711
          %722 = vmatprep.subr.mxu0 0.0
          %723 = vmatpush1.msra.mxu0 %v712
          %724 = vmatprep.subr.mxu0 0.0
          %725 = vmatpush1.msra.mxu0 %v713
          %726 = vmatprep.subr.mxu0 0.0
          %727 = vmatpush1.msra.mxu0 0.0
          %728 = vmatprep.subr.mxu0 0.0
          %729 = vmatpush1.msra.mxu0 0.0
          %730 = vmatprep.subr.mxu0 0.0
          %731 = vmatpush1.msra.mxu0 0.0
          %732 = vmatprep.subr.mxu0 0.0
          %733 = vmatpush1.msra.mxu0 0.0
          %734 = vmatprep.subr.mxu0 0.0
          %735 = vmatpush1.msra.mxu0 0.0
          %736 = vmatprep.subr.mxu0 0.0
          %737 = vmatpush1.msra.mxu0 0.0
          %738 = vmatprep.subr.mxu0 0.0
          %739 = vmatpush1.msra.mxu0 0.0
          %740 = vmatprep.subr.mxu0 0.0
          %741 = vmatpush1.msra.mxu0 0.0
          %742 = vmatprep.subr.mxu0 0.0
          %743 = vmatpush1.msra.mxu0 0.0
          %744 = vmatprep.subr.mxu0 0.0
          %745 = vmatpush1.msra.mxu0 0.0
          %746 = vmatprep.subr.mxu0 0.0
          %747 = vmatpush1.msra.mxu0 0.0
          %748 = vmatprep.subr.mxu0 0.0
          %749 = vmatpush1.msra.mxu0 0.0
          %750 = vmatprep.subr.mxu0 0.0
          %751 = vmatpush1.msra.mxu0 0.0
          %752 = vmatprep.subr.mxu0 0.0
          %753 = vmatpush1.msra.mxu0 0.0
          %754 = vmatprep.subr.mxu0 0.0
          %755 = vmatpush1.msra.mxu0 0.0
          %756 = vmatprep.subr.mxu0 0.0
          %757 = vmatpush1.msra.mxu0 0.0
          %758 = vmatprep.subr.mxu0 0.0
          %759 = vmatpush1.msra.mxu0 0.0
          %760 = vmatprep.subr.mxu0 0.0
          %761 = vmatpush1.msra.mxu0 0.0
          %762 = vmatprep.subr.mxu0 0.0
          %763 = vmatpush1.msra.mxu0 0.0
          %764 = vmatprep.subr.mxu0 0.0
          %765 = vmatpush1.msra.mxu0 0.0
          %766 = vmatprep.subr.mxu0 0.0
          %767 = vmatpush1.msra.mxu0 0.0
          %768 = vmatprep.subr.mxu0 0.0
          %769 = vmatpush1.msra.mxu0 0.0
          %770 = vmatprep.subr.mxu0 0.0
          %771 = vmatpush1.msra.mxu0 0.0
          %772 = vmatprep.subr.mxu0 0.0
          %773 = vmatpush1.msra.mxu0 0.0
          %774 = vmatprep.subr.mxu0 0.0
          %775 = vmatpush1.msra.mxu0 0.0
          %776 = vmatprep.subr.mxu0 0.0
          %777 = vmatpush1.msra.mxu0 0.0
          %778 = vmatprep.subr.mxu0 0.0
          %779 = vmatpush1.msra.mxu0 0.0
          %780 = vmatprep.subr.mxu0 0.0
          %781 = vmatpush1.msra.mxu0 0.0
          %782 = vmatprep.mubr.f32.mxu0 0.0
          %783 = vmatmul.mubr.f32.gmra.mrb[0].mxu0 %v716
          %v784 = vpop.f32.mrb[0].mxu0
          %v785 = vadd.f32 0.0, %v784
          %v786 = vpop.f32.mrb[0].mxu0
          %787 = vdwg.mxu0
          %788 = vst.msk [vmem:[#allocation2] sm:$0xff] %vm714, %v785
          %v789 = vld [vmem:[#allocation15] sm:$0xff]
          %v790 = vld [vmem:[#allocation15 + $0x8] sm:$0xff]
          %v791 = vld [vmem:[#allocation15 + $0x10] sm:$0xff]
          %v792 = vld [vmem:[#allocation15 + $0x18] sm:$0xff]
          %793 = vmatprep.subr.mxu0 0.0
          %794 = vmatpush1.msra.mxu0 %v789
          %795 = vmatprep.subr.mxu0 0.0
          %796 = vmatpush1.msra.mxu0 %v790
          %797 = vmatprep.subr.mxu0 0.0
          %798 = vmatpush1.msra.mxu0 %v791
          %799 = vmatprep.subr.mxu0 0.0
          %800 = vmatpush1.msra.mxu0 %v792
          %801 = vmatprep.subr.mxu0 0.0
          %802 = vmatpush1.msra.mxu0 0.0
          %803 = vmatprep.subr.mxu0 0.0
          %804 = vmatpush1.msra.mxu0 0.0
          %805 = vmatprep.subr.mxu0 0.0
          %806 = vmatpush1.msra.mxu0 0.0
          %807 = vmatprep.subr.mxu0 0.0
          %808 = vmatpush1.msra.mxu0 0.0
          %809 = vmatprep.subr.mxu0 0.0
          %810 = vmatpush1.msra.mxu0 0.0
          %811 = vmatprep.subr.mxu0 0.0
          %812 = vmatpush1.msra.mxu0 0.0
          %813 = vmatprep.subr.mxu0 0.0
          %814 = vmatpush1.msra.mxu0 0.0
          %815 = vmatprep.subr.mxu0 0.0
          %816 = vmatpush1.msra.mxu0 0.0
          %817 = vmatprep.subr.mxu0 0.0
          %818 = vmatpush1.msra.mxu0 0.0
          %819 = vmatprep.subr.mxu0 0.0
          %820 = vmatpush1.msra.mxu0 0.0
          %821 = vmatprep.subr.mxu0 0.0
          %822 = vmatpush1.msra.mxu0 0.0
          %823 = vmatprep.subr.mxu0 0.0
          %824 = vmatpush1.msra.mxu0 0.0
          %825 = vmatprep.subr.mxu0 0.0
          %826 = vmatpush1.msra.mxu0 0.0
          %827 = vmatprep.subr.mxu0 0.0
          %828 = vmatpush1.msra.mxu0 0.0
          %829 = vmatprep.subr.mxu0 0.0
          %830 = vmatpush1.msra.mxu0 0.0
          %831 = vmatprep.subr.mxu0 0.0
          %832 = vmatpush1.msra.mxu0 0.0
          %833 = vmatprep.subr.mxu0 0.0
          %834 = vmatpush1.msra.mxu0 0.0
          %835 = vmatprep.subr.mxu0 0.0
          %836 = vmatpush1.msra.mxu0 0.0
          %837 = vmatprep.subr.mxu0 0.0
          %838 = vmatpush1.msra.mxu0 0.0
          %839 = vmatprep.subr.mxu0 0.0
          %840 = vmatpush1.msra.mxu0 0.0
          %841 = vmatprep.subr.mxu0 0.0
          %842 = vmatpush1.msra.mxu0 0.0
          %843 = vmatprep.subr.mxu0 0.0
          %844 = vmatpush1.msra.mxu0 0.0
          %845 = vmatprep.subr.mxu0 0.0
          %846 = vmatpush1.msra.mxu0 0.0
          %847 = vmatprep.subr.mxu0 0.0
          %848 = vmatpush1.msra.mxu0 0.0
          %849 = vmatprep.subr.mxu0 0.0
          %850 = vmatpush1.msra.mxu0 0.0
          %851 = vmatprep.subr.mxu0 0.0
          %852 = vmatpush1.msra.mxu0 0.0
          %853 = vmatprep.subr.mxu0 0.0
          %854 = vmatpush1.msra.mxu0 0.0
          %855 = vmatprep.subr.mxu0 0.0
          %856 = vmatpush1.msra.mxu0 0.0
          %857 = vmatprep.mubr.f32.mxu0 0.0
          %858 = vmatmul.mubr.f32.gmra.mrb[0].mxu0 %v716
          %v859 = vpop.f32.mrb[0].mxu0
          %v860 = vadd.f32 0.0, %v859
          %v861 = vpop.f32.mrb[0].mxu0
          %862 = vdwg.mxu0
          %863 = vst.msk [vmem:[#allocation3] sm:$0xff] %vm714, %v860
          %v864 = vld [vmem:[#allocation21] sm:$0xff]
          %v865 = vld [vmem:[#allocation21 + $0x8] sm:$0xff]
          %v866 = vld [vmem:[#allocation21 + $0x10] sm:$0xff]
          %v867 = vld [vmem:[#allocation21 + $0x18] sm:$0xff]
          %868 = vmatprep.subr.mxu0 0.0
          %869 = vmatpush1.msra.mxu0 %v864
          %870 = vmatprep.subr.mxu0 0.0
          %871 = vmatpush1.msra.mxu0 %v865
          %872 = vmatprep.subr.mxu0 0.0
          %873 = vmatpush1.msra.mxu0 %v866
          %874 = vmatprep.subr.mxu0 0.0
          %875 = vmatpush1.msra.mxu0 %v867
          %876 = vmatprep.subr.mxu0 0.0
          %877 = vmatpush1.msra.mxu0 0.0
          %878 = vmatprep.subr.mxu0 0.0
          %879 = vmatpush1.msra.mxu0 0.0
          %880 = vmatprep.subr.mxu0 0.0
          %881 = vmatpush1.msra.mxu0 0.0
          %882 = vmatprep.subr.mxu0 0.0
          %883 = vmatpush1.msra.mxu0 0.0
          %884 = vmatprep.subr.mxu0 0.0
          %885 = vmatpush1.msra.mxu0 0.0
          %886 = vmatprep.subr.mxu0 0.0
          %887 = vmatpush1.msra.mxu0 0.0
          %888 = vmatprep.subr.mxu0 0.0
          %889 = vmatpush1.msra.mxu0 0.0
          %890 = vmatprep.subr.mxu0 0.0
          %891 = vmatpush1.msra.mxu0 0.0
          %892 = vmatprep.subr.mxu0 0.0
          %893 = vmatpush1.msra.mxu0 0.0
          %894 = vmatprep.subr.mxu0 0.0
          %895 = vmatpush1.msra.mxu0 0.0
          %896 = vmatprep.subr.mxu0 0.0
          %897 = vmatpush1.msra.mxu0 0.0
          %898 = vmatprep.subr.mxu0 0.0
          %899 = vmatpush1.msra.mxu0 0.0
          %900 = vmatprep.subr.mxu0 0.0
          %901 = vmatpush1.msra.mxu0 0.0
          %902 = vmatprep.subr.mxu0 0.0
          %903 = vmatpush1.msra.mxu0 0.0
          %904 = vmatprep.subr.mxu0 0.0
          %905 = vmatpush1.msra.mxu0 0.0
          %906 = vmatprep.subr.mxu0 0.0
          %907 = vmatpush1.msra.mxu0 0.0
          %908 = vmatprep.subr.mxu0 0.0
          %909 = vmatpush1.msra.mxu0 0.0
          %910 = vmatprep.subr.mxu0 0.0
          %911 = vmatpush1.msra.mxu0 0.0
          %912 = vmatprep.subr.mxu0 0.0
          %913 = vmatpush1.msra.mxu0 0.0
          %914 = vmatprep.subr.mxu0 0.0
          %915 = vmatpush1.msra.mxu0 0.0
          %916 = vmatprep.subr.mxu0 0.0
          %917 = vmatpush1.msra.mxu0 0.0
          %918 = vmatprep.subr.mxu0 0.0
          %919 = vmatpush1.msra.mxu0 0.0
          %920 = vmatprep.subr.mxu0 0.0
          %921 = vmatpush1.msra.mxu0 0.0
          %922 = vmatprep.subr.mxu0 0.0
          %923 = vmatpush1.msra.mxu0 0.0
          %924 = vmatprep.subr.mxu0 0.0
          %925 = vmatpush1.msra.mxu0 0.0
          %926 = vmatprep.subr.mxu0 0.0
          %927 = vmatpush1.msra.mxu0 0.0
          %928 = vmatprep.subr.mxu0 0.0
          %929 = vmatpush1.msra.mxu0 0.0
          %930 = vmatprep.subr.mxu0 0.0
          %931 = vmatpush1.msra.mxu0 0.0
          %932 = vmatprep.mubr.f32.mxu0 0.0
          %933 = vmatmul.mubr.f32.gmra.mrb[0].mxu0 %v716
          %v934 = vpop.f32.mrb[0].mxu0
          %v935 = vadd.f32 0.0, %v934
          %v936 = vpop.f32.mrb[0].mxu0
          %937 = vdwg.mxu0
          %938 = vst.msk [vmem:[#allocation4] sm:$0xff] %vm714, %v935
          %v939 = vld [vmem:[#allocation22] sm:$0xff]
          %v940 = vld [vmem:[#allocation22 + $0x8] sm:$0xff]
          %v941 = vld [vmem:[#allocation22 + $0x10] sm:$0xff]
          %v942 = vld [vmem:[#allocation22 + $0x18] sm:$0xff]
          %943 = vmatprep.subr.mxu0 0.0
          %944 = vmatpush1.msra.mxu0 %v939
          %945 = vmatprep.subr.mxu0 0.0
          %946 = vmatpush1.msra.mxu0 %v940
          %947 = vmatprep.subr.mxu0 0.0
          %948 = vmatpush1.msra.mxu0 %v941
          %949 = vmatprep.subr.mxu0 0.0
          %950 = vmatpush1.msra.mxu0 %v942
          %951 = vmatprep.subr.mxu0 0.0
          %952 = vmatpush1.msra.mxu0 0.0
          %953 = vmatprep.subr.mxu0 0.0
          %954 = vmatpush1.msra.mxu0 0.0
          %955 = vmatprep.subr.mxu0 0.0
          %956 = vmatpush1.msra.mxu0 0.0
          %957 = vmatprep.subr.mxu0 0.0
          %958 = vmatpush1.msra.mxu0 0.0
          %959 = vmatprep.subr.mxu0 0.0
          %960 = vmatpush1.msra.mxu0 0.0
          %961 = vmatprep.subr.mxu0 0.0
          %962 = vmatpush1.msra.mxu0 0.0
          %963 = vmatprep.subr.mxu0 0.0
          %964 = vmatpush1.msra.mxu0 0.0
          %965 = vmatprep.subr.mxu0 0.0
          %966 = vmatpush1.msra.mxu0 0.0
          %967 = vmatprep.subr.mxu0 0.0
          %968 = vmatpush1.msra.mxu0 0.0
          %969 = vmatprep.subr.mxu0 0.0
          %970 = vmatpush1.msra.mxu0 0.0
          %971 = vmatprep.subr.mxu0 0.0
          %972 = vmatpush1.msra.mxu0 0.0
          %973 = vmatprep.subr.mxu0 0.0
          %974 = vmatpush1.msra.mxu0 0.0
          %975 = vmatprep.subr.mxu0 0.0
          %976 = vmatpush1.msra.mxu0 0.0
          %977 = vmatprep.subr.mxu0 0.0
          %978 = vmatpush1.msra.mxu0 0.0
          %979 = vmatprep.subr.mxu0 0.0
          %980 = vmatpush1.msra.mxu0 0.0
          %981 = vmatprep.subr.mxu0 0.0
          %982 = vmatpush1.msra.mxu0 0.0
          %983 = vmatprep.subr.mxu0 0.0
          %984 = vmatpush1.msra.mxu0 0.0
          %985 = vmatprep.subr.mxu0 0.0
          %986 = vmatpush1.msra.mxu0 0.0
          %987 = vmatprep.subr.mxu0 0.0
          %988 = vmatpush1.msra.mxu0 0.0
          %989 = vmatprep.subr.mxu0 0.0
          %990 = vmatpush1.msra.mxu0 0.0
          %991 = vmatprep.subr.mxu0 0.0
          %992 = vmatpush1.msra.mxu0 0.0
          %993 = vmatprep.subr.mxu0 0.0
          %994 = vmatpush1.msra.mxu0 0.0
          %995 = vmatprep.subr.mxu0 0.0
          %996 = vmatpush1.msra.mxu0 0.0
          %997 = vmatprep.subr.mxu0 0.0
          %998 = vmatpush1.msra.mxu0 0.0
          %999 = vmatprep.subr.mxu0 0.0
          %1000 = vmatpush1.msra.mxu0 0.0
          %1001 = vmatprep.subr.mxu0 0.0
          %1002 = vmatpush1.msra.mxu0 0.0
          %1003 = vmatprep.subr.mxu0 0.0
          %1004 = vmatpush1.msra.mxu0 0.0
          %1005 = vmatprep.subr.mxu0 0.0
          %1006 = vmatpush1.msra.mxu0 0.0
          %1007 = vmatprep.mubr.f32.mxu0 0.0
          %1008 = vmatmul.mubr.f32.gmra.mrb[0].mxu0 %v716
          %v1009 = vpop.f32.mrb[0].mxu0
          %v1010 = vadd.f32 0.0, %v1009
          %v1011 = vpop.f32.mrb[0].mxu0
          %1012 = vdwg.mxu0
          %1013 = vst.msk [vmem:[#allocation5] sm:$0xff] %vm714, %v1010
        $region136: #{tpu_custom_call.1} parent=75 // pred_fallthru
          _
        %v1014 = vld [vmem:[%s598] sm:$0xff]
        %v1015 = vld [vmem:[#allocation12] sm:$0xff]
        %v1016 = vld [vmem:[#allocation12 + $0x8] sm:$0xff]
        %v1017 = vld [vmem:[#allocation12 + $0x10] sm:$0xff]
        %v1018 = vld [vmem:[#allocation12 + $0x18] sm:$0xff]
        %vm1019 = vcmask 261120
        %v1021 = vsel %vm1019, %v1014, 0
        %1023 = vmatprep.subr.mxu0 0.0
        %1024 = vmatpush1.msra.mxu0 %v1015
        %1025 = vmatprep.subr.mxu0 0.0
        %1026 = vmatpush1.msra.mxu0 %v1016
        %1027 = vmatprep.subr.mxu0 0.0
        %1028 = vmatpush1.msra.mxu0 %v1017
        %1029 = vmatprep.subr.mxu0 0.0
        %1030 = vmatpush1.msra.mxu0 %v1018
        %1031 = vmatprep.subr.mxu0 0.0
        %1032 = vmatpush1.msra.mxu0 0.0
        %1033 = vmatprep.subr.mxu0 0.0
        %1034 = vmatpush1.msra.mxu0 0.0
        %1035 = vmatprep.subr.mxu0 0.0
        %1036 = vmatpush1.msra.mxu0 0.0
        %1037 = vmatprep.subr.mxu0 0.0
        %1038 = vmatpush1.msra.mxu0 0.0
        %1039 = vmatprep.subr.mxu0 0.0
        %1040 = vmatpush1.msra.mxu0 0.0
        %1041 = vmatprep.subr.mxu0 0.0
        %1042 = vmatpush1.msra.mxu0 0.0
        %1043 = vmatprep.subr.mxu0 0.0
        %1044 = vmatpush1.msra.mxu0 0.0
        %1045 = vmatprep.subr.mxu0 0.0
        %1046 = vmatpush1.msra.mxu0 0.0
        %1047 = vmatprep.subr.mxu0 0.0
        %1048 = vmatpush1.msra.mxu0 0.0
        %1049 = vmatprep.subr.mxu0 0.0
        %1050 = vmatpush1.msra.mxu0 0.0
        %1051 = vmatprep.subr.mxu0 0.0
        %1052 = vmatpush1.msra.mxu0 0.0
        %1053 = vmatprep.subr.mxu0 0.0
        %1054 = vmatpush1.msra.mxu0 0.0
        %1055 = vmatprep.subr.mxu0 0.0
        %1056 = vmatpush1.msra.mxu0 0.0
        %1057 = vmatprep.subr.mxu0 0.0
        %1058 = vmatpush1.msra.mxu0 0.0
        %1059 = vmatprep.subr.mxu0 0.0
        %1060 = vmatpush1.msra.mxu0 0.0
        %1061 = vmatprep.subr.mxu0 0.0
        %1062 = vmatpush1.msra.mxu0 0.0
        %1063 = vmatprep.subr.mxu0 0.0
        %1064 = vmatpush1.msra.mxu0 0.0
        %1065 = vmatprep.subr.mxu0 0.0
        %1066 = vmatpush1.msra.mxu0 0.0
        %1067 = vmatprep.subr.mxu0 0.0
        %1068 = vmatpush1.msra.mxu0 0.0
        %1069 = vmatprep.subr.mxu0 0.0
        %1070 = vmatpush1.msra.mxu0 0.0
        %1071 = vmatprep.subr.mxu0 0.0
        %1072 = vmatpush1.msra.mxu0 0.0
        %1073 = vmatprep.subr.mxu0 0.0
        %1074 = vmatpush1.msra.mxu0 0.0
        %1075 = vmatprep.subr.mxu0 0.0
        %1076 = vmatpush1.msra.mxu0 0.0
        %1077 = vmatprep.subr.mxu0 0.0
        %1078 = vmatpush1.msra.mxu0 0.0
        %1079 = vmatprep.subr.mxu0 0.0
        %1080 = vmatpush1.msra.mxu0 0.0
        %1081 = vmatprep.subr.mxu0 0.0
        %1082 = vmatpush1.msra.mxu0 0.0
        %1083 = vmatprep.subr.mxu0 0.0
        %1084 = vmatpush1.msra.mxu0 0.0
        %1085 = vmatprep.subr.mxu0 0.0
        %1086 = vmatpush1.msra.mxu0 0.0
        %1087 = vmatprep.mubr.f32.mxu0 0.0
        %1088 = vmatmul.mubr.f32.gmra.mrb[0].mxu0 %v1021
        %v1089 = vpop.f32.mrb[0].mxu0
        %v1090 = vadd.f32 0.0, %v1089
        %v1091 = vpop.f32.mrb[0].mxu0
        %1092 = vdwg.mxu0
        %v1093 = vld [vmem:[#allocation2] sm:$0xff]
        %v1094 = vld [vmem:[#allocation3] sm:$0xff]
        %vm1095 = vcmask 64512
        %v1097 = vsel %vm1095, %v1090, 0
        %v1100 = vsel %vm1095, %v1093, 0
        %1102 = vmatprep.subr.mxu0 0.0
        %1103 = vmatpush1.xpose.msra.mxu0 %v1100
        %1104 = vmatprep.subr.mxu0 0.0
        %1105 = vmatpush1.xpose.msra.mxu0 0.0
        %1106 = vmatprep.subr.mxu0 0.0
        %1107 = vmatpush1.xpose.msra.mxu0 0.0
        %1108 = vmatprep.subr.mxu0 0.0
        %1109 = vmatpush1.xpose.msra.mxu0 0.0
        %1110 = vmatprep.subr.mxu0 0.0
        %1111 = vmatpush1.xpose.msra.mxu0 0.0
        %1112 = vmatprep.subr.mxu0 0.0
        %1113 = vmatpush1.xpose.msra.mxu0 0.0
        %1114 = vmatprep.subr.mxu0 0.0
        %1115 = vmatpush1.xpose.msra.mxu0 0.0
        %1116 = vmatprep.subr.mxu0 0.0
        %1117 = vmatpush1.xpose.msra.mxu0 0.0
        %1118 = vmatprep.subr.mxu0 0.0
        %1119 = vmatpush1.xpose.msra.mxu0 0.0
        %1120 = vmatprep.subr.mxu0 0.0
        %1121 = vmatpush1.xpose.msra.mxu0 0.0
        %1122 = vmatprep.subr.mxu0 0.0
        %1123 = vmatpush1.xpose.msra.mxu0 0.0
        %1124 = vmatprep.subr.mxu0 0.0
        %1125 = vmatpush1.xpose.msra.mxu0 0.0
        %1126 = vmatprep.subr.mxu0 0.0
        %1127 = vmatpush1.xpose.msra.mxu0 0.0
        %1128 = vmatprep.subr.mxu0 0.0
        %1129 = vmatpush1.xpose.msra.mxu0 0.0
        %1130 = vmatprep.subr.mxu0 0.0
        %1131 = vmatpush1.xpose.msra.mxu0 0.0
        %1132 = vmatprep.subr.mxu0 0.0
        %1133 = vmatpush1.xpose.msra.mxu0 0.0
        %1134 = vmatprep.subr.mxu0 0.0
        %1135 = vmatpush1.xpose.msra.mxu0 0.0
        %1136 = vmatprep.subr.mxu0 0.0
        %1137 = vmatpush1.xpose.msra.mxu0 0.0
        %1138 = vmatprep.subr.mxu0 0.0
        %1139 = vmatpush1.xpose.msra.mxu0 0.0
        %1140 = vmatprep.subr.mxu0 0.0
        %1141 = vmatpush1.xpose.msra.mxu0 0.0
        %1142 = vmatprep.subr.mxu0 0.0
        %1143 = vmatpush1.xpose.msra.mxu0 0.0
        %1144 = vmatprep.subr.mxu0 0.0
        %1145 = vmatpush1.xpose.msra.mxu0 0.0
        %1146 = vmatprep.subr.mxu0 0.0
        %1147 = vmatpush1.xpose.msra.mxu0 0.0
        %1148 = vmatprep.subr.mxu0 0.0
        %1149 = vmatpush1.xpose.msra.mxu0 0.0
        %1150 = vmatprep.subr.mxu0 0.0
        %1151 = vmatpush1.xpose.msra.mxu0 0.0
        %1152 = vmatprep.subr.mxu0 0.0
        %1153 = vmatpush1.xpose.msra.mxu0 0.0
        %1154 = vmatprep.subr.mxu0 0.0
        %1155 = vmatpush1.xpose.msra.mxu0 0.0
        %1156 = vmatprep.subr.mxu0 0.0
        %1157 = vmatpush1.xpose.msra.mxu0 0.0
        %1158 = vmatprep.subr.mxu0 0.0
        %1159 = vmatpush1.xpose.msra.mxu0 0.0
        %1160 = vmatprep.subr.mxu0 0.0
        %1161 = vmatpush1.xpose.msra.mxu0 0.0
        %1162 = vmatprep.subr.mxu0 0.0
        %1163 = vmatpush1.xpose.msra.mxu0 0.0
        %1164 = vmatprep.subr.mxu0 0.0
        %1165 = vmatpush1.xpose.msra.mxu0 0.0
        %1166 = vmatprep.mubr.f32.mxu0 0.0
        %1167 = vmatmul.mubr.f32.gmra.mrb[0].mxu0 %v1097
        %v1168 = vpop.f32.mrb[0].mxu0
        %v1169 = vadd.f32 0.0, %v1168
        %v1170 = vpop.f32.mrb[0].mxu0
        %1171 = vdwg.mxu0
        %v1172 = vsel %vm1095, %v1169, -inf
        %1173 = vmax.xlane.f32.xlu0 %v1172
        %v1174 = vpop.xlane.xlu0 %1173
        %v1175 = vsub.f32 -inf, %v1174
        %v1176 = vmul.f32 %v1175, 1.442695
        %v1177 = vpow.pop %v1176
        %v1178 = vsub.f32 %v1169, %v1174
        %v1179 = vmul.f32 %v1178, 1.442695
        %v1180 = vpow.pop %v1179
        %v1181 = vmul.f32 %v1177, 0.0
        %v1182 = vsel %vm1095, %v1180, 0.0
        %1183 = vadd.xlane.f32.xlu0 %v1182
        %v1184 = vpop.xlane.xlu0 %1183
        %v1185 = vadd.f32 %v1181, %v1184
        %v1187 = vsel %vm1095, %v1180, 0
        %1189 = vmatprep.subr.mxu0 0.0
        %1190 = vmatpush1.msra.mxu0 %v1094
        %1191 = vmatprep.subr.mxu0 0.0
        %1192 = vmatpush1.msra.mxu0 0.0
        %1193 = vmatprep.subr.mxu0 0.0
        %1194 = vmatpush1.msra.mxu0 0.0
        %1195 = vmatprep.subr.mxu0 0.0
        %1196 = vmatpush1.msra.mxu0 0.0
        %1197 = vmatprep.subr.mxu0 0.0
        %1198 = vmatpush1.msra.mxu0 0.0
        %1199 = vmatprep.subr.mxu0 0.0
        %1200 = vmatpush1.msra.mxu0 0.0
        %1201 = vmatprep.subr.mxu0 0.0
        %1202 = vmatpush1.msra.mxu0 0.0
        %1203 = vmatprep.subr.mxu0 0.0
        %1204 = vmatpush1.msra.mxu0 0.0
        %1205 = vmatprep.subr.mxu0 0.0
        %1206 = vmatpush1.msra.mxu0 0.0
        %1207 = vmatprep.subr.mxu0 0.0
        %1208 = vmatpush1.msra.mxu0 0.0
        %1209 = vmatprep.subr.mxu0 0.0
        %1210 = vmatpush1.msra.mxu0 0.0
        %1211 = vmatprep.subr.mxu0 0.0
        %1212 = vmatpush1.msra.mxu0 0.0
        %1213 = vmatprep.subr.mxu0 0.0
        %1214 = vmatpush1.msra.mxu0 0.0
        %1215 = vmatprep.subr.mxu0 0.0
        %1216 = vmatpush1.msra.mxu0 0.0
        %1217 = vmatprep.subr.mxu0 0.0
        %1218 = vmatpush1.msra.mxu0 0.0
        %1219 = vmatprep.subr.mxu0 0.0
        %1220 = vmatpush1.msra.mxu0 0.0
        %1221 = vmatprep.subr.mxu0 0.0
        %1222 = vmatpush1.msra.mxu0 0.0
        %1223 = vmatprep.subr.mxu0 0.0
        %1224 = vmatpush1.msra.mxu0 0.0
        %1225 = vmatprep.subr.mxu0 0.0
        %1226 = vmatpush1.msra.mxu0 0.0
        %1227 = vmatprep.subr.mxu0 0.0
        %1228 = vmatpush1.msra.mxu0 0.0
        %1229 = vmatprep.subr.mxu0 0.0
        %1230 = vmatpush1.msra.mxu0 0.0
        %1231 = vmatprep.subr.mxu0 0.0
        %1232 = vmatpush1.msra.mxu0 0.0
        %1233 = vmatprep.subr.mxu0 0.0
        %1234 = vmatpush1.msra.mxu0 0.0
        %1235 = vmatprep.subr.mxu0 0.0
        %1236 = vmatpush1.msra.mxu0 0.0
        %1237 = vmatprep.subr.mxu0 0.0
        %1238 = vmatpush1.msra.mxu0 0.0
        %1239 = vmatprep.subr.mxu0 0.0
        %1240 = vmatpush1.msra.mxu0 0.0
        %1241 = vmatprep.subr.mxu0 0.0
        %1242 = vmatpush1.msra.mxu0 0.0
        %1243 = vmatprep.subr.mxu0 0.0
        %1244 = vmatpush1.msra.mxu0 0.0
        %1245 = vmatprep.subr.mxu0 0.0
        %1246 = vmatpush1.msra.mxu0 0.0
        %1247 = vmatprep.subr.mxu0 0.0
        %1248 = vmatpush1.msra.mxu0 0.0
        %1249 = vmatprep.subr.mxu0 0.0
        %1250 = vmatpush1.msra.mxu0 0.0
        %1251 = vmatprep.subr.mxu0 0.0
        %1252 = vmatpush1.msra.mxu0 0.0
        %1253 = vmatprep.mubr.f32.mxu0 0.0
        %1254 = vmatmul.mubr.f32.gmra.mrb[0].mxu0 %v1187
        %v1255 = vpop.f32.mrb[0].mxu0
        %v1256 = vadd.f32 0.0, %v1255
        %v1257 = vpop.f32.mrb[0].mxu0
        %1258 = vdwg.mxu0
        %v1259 = vadd.f32 %v1181, %v1256
        %v1260 = vrcp.pop %v1185
        %v1261 = vmul.f32 %v1259, %v1260
        %1262 = vst.msk [vmem:[#allocation6] sm:$0xff] %vm1095, %v1261
        %v1263 = vld [vmem:[#allocation2] sm:$0xff]
        %v1264 = vld [vmem:[#allocation3] sm:$0xff]
        %1265 = vrot.lane.b32.xlu0 %v1090, 120
        %v1266 = vpop.permute.xlu0 %1265
        %1268 = vrot.lane.b32.xlu0 %v1263, 120
        %v1269 = vpop.permute.xlu0 %1268
        %v1270 = vsel %vm1095, %v1266, 0
        %v1272 = vsel %vm1095, %v1269, 0
        %1274 = vmatprep.subr.mxu0 0.0
        %1275 = vmatpush1.xpose.msra.mxu0 %v1272
        %1276 = vmatprep.subr.mxu0 0.0
        %1277 = vmatpush1.xpose.msra.mxu0 0.0
        %1278 = vmatprep.subr.mxu0 0.0
        %1279 = vmatpush1.xpose.msra.mxu0 0.0
        %1280 = vmatprep.subr.mxu0 0.0
        %1281 = vmatpush1.xpose.msra.mxu0 0.0
        %1282 = vmatprep.subr.mxu0 0.0
        %1283 = vmatpush1.xpose.msra.mxu0 0.0
        %1284 = vmatprep.subr.mxu0 0.0
        %1285 = vmatpush1.xpose.msra.mxu0 0.0
        %1286 = vmatprep.subr.mxu0 0.0
        %1287 = vmatpush1.xpose.msra.mxu0 0.0
        %1288 = vmatprep.subr.mxu0 0.0
        %1289 = vmatpush1.xpose.msra.mxu0 0.0
        %1290 = vmatprep.subr.mxu0 0.0
        %1291 = vmatpush1.xpose.msra.mxu0 0.0
        %1292 = vmatprep.subr.mxu0 0.0
        %1293 = vmatpush1.xpose.msra.mxu0 0.0
        %1294 = vmatprep.subr.mxu0 0.0
        %1295 = vmatpush1.xpose.msra.mxu0 0.0
        %1296 = vmatprep.subr.mxu0 0.0
        %1297 = vmatpush1.xpose.msra.mxu0 0.0
        %1298 = vmatprep.subr.mxu0 0.0
        %1299 = vmatpush1.xpose.msra.mxu0 0.0
        %1300 = vmatprep.subr.mxu0 0.0
        %1301 = vmatpush1.xpose.msra.mxu0 0.0
        %1302 = vmatprep.subr.mxu0 0.0
        %1303 = vmatpush1.xpose.msra.mxu0 0.0
        %1304 = vmatprep.subr.mxu0 0.0
        %1305 = vmatpush1.xpose.msra.mxu0 0.0
        %1306 = vmatprep.subr.mxu0 0.0
        %1307 = vmatpush1.xpose.msra.mxu0 0.0
        %1308 = vmatprep.subr.mxu0 0.0
        %1309 = vmatpush1.xpose.msra.mxu0 0.0
        %1310 = vmatprep.subr.mxu0 0.0
        %1311 = vmatpush1.xpose.msra.mxu0 0.0
        %1312 = vmatprep.subr.mxu0 0.0
        %1313 = vmatpush1.xpose.msra.mxu0 0.0
        %1314 = vmatprep.subr.mxu0 0.0
        %1315 = vmatpush1.xpose.msra.mxu0 0.0
        %1316 = vmatprep.subr.mxu0 0.0
        %1317 = vmatpush1.xpose.msra.mxu0 0.0
        %1318 = vmatprep.subr.mxu0 0.0
        %1319 = vmatpush1.xpose.msra.mxu0 0.0
        %1320 = vmatprep.subr.mxu0 0.0
        %1321 = vmatpush1.xpose.msra.mxu0 0.0
        %1322 = vmatprep.subr.mxu0 0.0
        %1323 = vmatpush1.xpose.msra.mxu0 0.0
        %1324 = vmatprep.subr.mxu0 0.0
        %1325 = vmatpush1.xpose.msra.mxu0 0.0
        %1326 = vmatprep.subr.mxu0 0.0
        %1327 = vmatpush1.xpose.msra.mxu0 0.0
        %1328 = vmatprep.subr.mxu0 0.0
        %1329 = vmatpush1.xpose.msra.mxu0 0.0
        %1330 = vmatprep.subr.mxu0 0.0
        %1331 = vmatpush1.xpose.msra.mxu0 0.0
        %1332 = vmatprep.subr.mxu0 0.0
        %1333 = vmatpush1.xpose.msra.mxu0 0.0
        %1334 = vmatprep.subr.mxu0 0.0
        %1335 = vmatpush1.xpose.msra.mxu0 0.0
        %1336 = vmatprep.subr.mxu0 0.0
        %1337 = vmatpush1.xpose.msra.mxu0 0.0
        %1338 = vmatprep.mubr.f32.mxu0 0.0
        %1339 = vmatmul.mubr.f32.gmra.mrb[0].mxu0 %v1270
        %v1340 = vpop.f32.mrb[0].mxu0
        %v1341 = vadd.f32 0.0, %v1340
        %v1342 = vpop.f32.mrb[0].mxu0
        %1343 = vdwg.mxu0
        %v1344 = vsel %vm1095, %v1341, -inf
        %1345 = vmax.xlane.f32.xlu0 %v1344
        %v1346 = vpop.xlane.xlu0 %1345
        %v1347 = vsub.f32 -inf, %v1346
        %v1348 = vmul.f32 %v1347, 1.442695
        %v1349 = vpow.pop %v1348
        %v1350 = vsub.f32 %v1341, %v1346
        %v1351 = vmul.f32 %v1350, 1.442695
        %v1352 = vpow.pop %v1351
        %v1353 = vmul.f32 %v1349, 0.0
        %v1354 = vsel %vm1095, %v1352, 0.0
        %1355 = vadd.xlane.f32.xlu0 %v1354
        %v1356 = vpop.xlane.xlu0 %1355
        %v1357 = vadd.f32 %v1353, %v1356
        %1359 = vrot.lane.b32.xlu0 %v1264, 120
        %v1360 = vpop.permute.xlu0 %1359
        %v1363 = vsel %vm1095, %v1352, 0
        %1365 = vmatprep.subr.mxu0 0.0
        %1366 = vmatpush1.msra.mxu0 %v1360
        %1367 = vmatprep.subr.mxu0 0.0
        %1368 = vmatpush1.msra.mxu0 0.0
        %1369 = vmatprep.subr.mxu0 0.0
        %1370 = vmatpush1.msra.mxu0 0.0
        %1371 = vmatprep.subr.mxu0 0.0
        %1372 = vmatpush1.msra.mxu0 0.0
        %1373 = vmatprep.subr.mxu0 0.0
        %1374 = vmatpush1.msra.mxu0 0.0
        %1375 = vmatprep.subr.mxu0 0.0
        %1376 = vmatpush1.msra.mxu0 0.0
        %1377 = vmatprep.subr.mxu0 0.0
        %1378 = vmatpush1.msra.mxu0 0.0
        %1379 = vmatprep.subr.mxu0 0.0
        %1380 = vmatpush1.msra.mxu0 0.0
        %1381 = vmatprep.subr.mxu0 0.0
        %1382 = vmatpush1.msra.mxu0 0.0
        %1383 = vmatprep.subr.mxu0 0.0
        %1384 = vmatpush1.msra.mxu0 0.0
        %1385 = vmatprep.subr.mxu0 0.0
        %1386 = vmatpush1.msra.mxu0 0.0
        %1387 = vmatprep.subr.mxu0 0.0
        %1388 = vmatpush1.msra.mxu0 0.0
        %1389 = vmatprep.subr.mxu0 0.0
        %1390 = vmatpush1.msra.mxu0 0.0
        %1391 = vmatprep.subr.mxu0 0.0
        %1392 = vmatpush1.msra.mxu0 0.0
        %1393 = vmatprep.subr.mxu0 0.0
        %1394 = vmatpush1.msra.mxu0 0.0
        %1395 = vmatprep.subr.mxu0 0.0
        %1396 = vmatpush1.msra.mxu0 0.0
        %1397 = vmatprep.subr.mxu0 0.0
        %1398 = vmatpush1.msra.mxu0 0.0
        %1399 = vmatprep.subr.mxu0 0.0
        %1400 = vmatpush1.msra.mxu0 0.0
        %1401 = vmatprep.subr.mxu0 0.0
        %1402 = vmatpush1.msra.mxu0 0.0
        %1403 = vmatprep.subr.mxu0 0.0
        %1404 = vmatpush1.msra.mxu0 0.0
        %1405 = vmatprep.subr.mxu0 0.0
        %1406 = vmatpush1.msra.mxu0 0.0
        %1407 = vmatprep.subr.mxu0 0.0
        %1408 = vmatpush1.msra.mxu0 0.0
        %1409 = vmatprep.subr.mxu0 0.0
        %1410 = vmatpush1.msra.mxu0 0.0
        %1411 = vmatprep.subr.mxu0 0.0
        %1412 = vmatpush1.msra.mxu0 0.0
        %1413 = vmatprep.subr.mxu0 0.0
        %1414 = vmatpush1.msra.mxu0 0.0
        %1415 = vmatprep.subr.mxu0 0.0
        %1416 = vmatpush1.msra.mxu0 0.0
        %1417 = vmatprep.subr.mxu0 0.0
        %1418 = vmatpush1.msra.mxu0 0.0
        %1419 = vmatprep.subr.mxu0 0.0
        %1420 = vmatpush1.msra.mxu0 0.0
        %1421 = vmatprep.subr.mxu0 0.0
        %1422 = vmatpush1.msra.mxu0 0.0
        %1423 = vmatprep.subr.mxu0 0.0
        %1424 = vmatpush1.msra.mxu0 0.0
        %1425 = vmatprep.subr.mxu0 0.0
        %1426 = vmatpush1.msra.mxu0 0.0
        %1427 = vmatprep.subr.mxu0 0.0
        %1428 = vmatpush1.msra.mxu0 0.0
        %1429 = vmatprep.mubr.f32.mxu0 0.0
        %1430 = vmatmul.mubr.f32.gmra.mrb[0].mxu0 %v1363
        %v1431 = vpop.f32.mrb[0].mxu0
        %v1432 = vadd.f32 0.0, %v1431
        %v1433 = vpop.f32.mrb[0].mxu0
        %1434 = vdwg.mxu0
        %v1435 = vadd.f32 %v1353, %v1432
        %v1436 = vrcp.pop %v1357
        %v1437 = vmul.f32 %v1435, %v1436
        %1439 = vrot.lane.b32.xlu0 %v1437, 8
        %v1440 = vpop.permute.xlu0 %1439
        %vm1442 = vcmask 130112
        %1443 = vst.msk [vmem:[#allocation6] sm:$0xff] %vm1442, %v1440
        %v1444 = vld [vmem:[#allocation2] sm:$0xff]
        %v1445 = vld [vmem:[#allocation3] sm:$0xff]
        %1446 = vrot.lane.b32.xlu0 %v1090, 112
        %v1447 = vpop.permute.xlu0 %1446
        %1449 = vrot.lane.b32.xlu0 %v1444, 112
        %v1450 = vpop.permute.xlu0 %1449
        %v1451 = vsel %vm1095, %v1447, 0
        %v1453 = vsel %vm1095, %v1450, 0
        %1455 = vmatprep.subr.mxu0 0.0
        %1456 = vmatpush1.xpose.msra.mxu0 %v1453
        %1457 = vmatprep.subr.mxu0 0.0
        %1458 = vmatpush1.xpose.msra.mxu0 0.0
        %1459 = vmatprep.subr.mxu0 0.0
        %1460 = vmatpush1.xpose.msra.mxu0 0.0
        %1461 = vmatprep.subr.mxu0 0.0
        %1462 = vmatpush1.xpose.msra.mxu0 0.0
        %1463 = vmatprep.subr.mxu0 0.0
        %1464 = vmatpush1.xpose.msra.mxu0 0.0
        %1465 = vmatprep.subr.mxu0 0.0
        %1466 = vmatpush1.xpose.msra.mxu0 0.0
        %1467 = vmatprep.subr.mxu0 0.0
        %1468 = vmatpush1.xpose.msra.mxu0 0.0
        %1469 = vmatprep.subr.mxu0 0.0
        %1470 = vmatpush1.xpose.msra.mxu0 0.0
        %1471 = vmatprep.subr.mxu0 0.0
        %1472 = vmatpush1.xpose.msra.mxu0 0.0
        %1473 = vmatprep.subr.mxu0 0.0
        %1474 = vmatpush1.xpose.msra.mxu0 0.0
        %1475 = vmatprep.subr.mxu0 0.0
        %1476 = vmatpush1.xpose.msra.mxu0 0.0
        %1477 = vmatprep.subr.mxu0 0.0
        %1478 = vmatpush1.xpose.msra.mxu0 0.0
        %1479 = vmatprep.subr.mxu0 0.0
        %1480 = vmatpush1.xpose.msra.mxu0 0.0
        %1481 = vmatprep.subr.mxu0 0.0
        %1482 = vmatpush1.xpose.msra.mxu0 0.0
        %1483 = vmatprep.subr.mxu0 0.0
        %1484 = vmatpush1.xpose.msra.mxu0 0.0
        %1485 = vmatprep.subr.mxu0 0.0
        %1486 = vmatpush1.xpose.msra.mxu0 0.0
        %1487 = vmatprep.subr.mxu0 0.0
        %1488 = vmatpush1.xpose.msra.mxu0 0.0
        %1489 = vmatprep.subr.mxu0 0.0
        %1490 = vmatpush1.xpose.msra.mxu0 0.0
        %1491 = vmatprep.subr.mxu0 0.0
        %1492 = vmatpush1.xpose.msra.mxu0 0.0
        %1493 = vmatprep.subr.mxu0 0.0
        %1494 = vmatpush1.xpose.msra.mxu0 0.0
        %1495 = vmatprep.subr.mxu0 0.0
        %1496 = vmatpush1.xpose.msra.mxu0 0.0
        %1497 = vmatprep.subr.mxu0 0.0
        %1498 = vmatpush1.xpose.msra.mxu0 0.0
        %1499 = vmatprep.subr.mxu0 0.0
        %1500 = vmatpush1.xpose.msra.mxu0 0.0
        %1501 = vmatprep.subr.mxu0 0.0
        %1502 = vmatpush1.xpose.msra.mxu0 0.0
        %1503 = vmatprep.subr.mxu0 0.0
        %1504 = vmatpush1.xpose.msra.mxu0 0.0
        %1505 = vmatprep.subr.mxu0 0.0
        %1506 = vmatpush1.xpose.msra.mxu0 0.0
        %1507 = vmatprep.subr.mxu0 0.0
        %1508 = vmatpush1.xpose.msra.mxu0 0.0
        %1509 = vmatprep.subr.mxu0 0.0
        %1510 = vmatpush1.xpose.msra.mxu0 0.0
        %1511 = vmatprep.subr.mxu0 0.0
        %1512 = vmatpush1.xpose.msra.mxu0 0.0
        %1513 = vmatprep.subr.mxu0 0.0
        %1514 = vmatpush1.xpose.msra.mxu0 0.0
        %1515 = vmatprep.subr.mxu0 0.0
        %1516 = vmatpush1.xpose.msra.mxu0 0.0
        %1517 = vmatprep.subr.mxu0 0.0
        %1518 = vmatpush1.xpose.msra.mxu0 0.0
        %1519 = vmatprep.mubr.f32.mxu0 0.0
        %1520 = vmatmul.mubr.f32.gmra.mrb[0].mxu0 %v1451
        %v1521 = vpop.f32.mrb[0].mxu0
        %v1522 = vadd.f32 0.0, %v1521
        %v1523 = vpop.f32.mrb[0].mxu0
        %1524 = vdwg.mxu0
        %v1525 = vsel %vm1095, %v1522, -inf
        %1526 = vmax.xlane.f32.xlu0 %v1525
        %v1527 = vpop.xlane.xlu0 %1526
        %v1528 = vsub.f32 -inf, %v1527
        %v1529 = vmul.f32 %v1528, 1.442695
        %v1530 = vpow.pop %v1529
        %v1531 = vsub.f32 %v1522, %v1527
        %v1532 = vmul.f32 %v1531, 1.442695
        %v1533 = vpow.pop %v1532
        %v1534 = vmul.f32 %v1530, 0.0
        %v1535 = vsel %vm1095, %v1533, 0.0
        %1536 = vadd.xlane.f32.xlu0 %v1535
        %v1537 = vpop.xlane.xlu0 %1536
        %v1538 = vadd.f32 %v1534, %v1537
        %1540 = vrot.lane.b32.xlu0 %v1445, 112
        %v1541 = vpop.permute.xlu0 %1540
        %v1544 = vsel %vm1095, %v1533, 0
        %1546 = vmatprep.subr.mxu0 0.0
        %1547 = vmatpush1.msra.mxu0 %v1541
        %1548 = vmatprep.subr.mxu0 0.0
        %1549 = vmatpush1.msra.mxu0 0.0
        %1550 = vmatprep.subr.mxu0 0.0
        %1551 = vmatpush1.msra.mxu0 0.0
        %1552 = vmatprep.subr.mxu0 0.0
        %1553 = vmatpush1.msra.mxu0 0.0
        %1554 = vmatprep.subr.mxu0 0.0
        %1555 = vmatpush1.msra.mxu0 0.0
        %1556 = vmatprep.subr.mxu0 0.0
        %1557 = vmatpush1.msra.mxu0 0.0
        %1558 = vmatprep.subr.mxu0 0.0
        %1559 = vmatpush1.msra.mxu0 0.0
        %1560 = vmatprep.subr.mxu0 0.0
        %1561 = vmatpush1.msra.mxu0 0.0
        %1562 = vmatprep.subr.mxu0 0.0
        %1563 = vmatpush1.msra.mxu0 0.0
        %1564 = vmatprep.subr.mxu0 0.0
        %1565 = vmatpush1.msra.mxu0 0.0
        %1566 = vmatprep.subr.mxu0 0.0
        %1567 = vmatpush1.msra.mxu0 0.0
        %1568 = vmatprep.subr.mxu0 0.0
        %1569 = vmatpush1.msra.mxu0 0.0
        %1570 = vmatprep.subr.mxu0 0.0
        %1571 = vmatpush1.msra.mxu0 0.0
        %1572 = vmatprep.subr.mxu0 0.0
        %1573 = vmatpush1.msra.mxu0 0.0
        %1574 = vmatprep.subr.mxu0 0.0
        %1575 = vmatpush1.msra.mxu0 0.0
        %1576 = vmatprep.subr.mxu0 0.0
        %1577 = vmatpush1.msra.mxu0 0.0
        %1578 = vmatprep.subr.mxu0 0.0
        %1579 = vmatpush1.msra.mxu0 0.0
        %1580 = vmatprep.subr.mxu0 0.0
        %1581 = vmatpush1.msra.mxu0 0.0
        %1582 = vmatprep.subr.mxu0 0.0
        %1583 = vmatpush1.msra.mxu0 0.0
        %1584 = vmatprep.subr.mxu0 0.0
        %1585 = vmatpush1.msra.mxu0 0.0
        %1586 = vmatprep.subr.mxu0 0.0
        %1587 = vmatpush1.msra.mxu0 0.0
        %1588 = vmatprep.subr.mxu0 0.0
        %1589 = vmatpush1.msra.mxu0 0.0
        %1590 = vmatprep.subr.mxu0 0.0
        %1591 = vmatpush1.msra.mxu0 0.0
        %1592 = vmatprep.subr.mxu0 0.0
        %1593 = vmatpush1.msra.mxu0 0.0
        %1594 = vmatprep.subr.mxu0 0.0
        %1595 = vmatpush1.msra.mxu0 0.0
        %1596 = vmatprep.subr.mxu0 0.0
        %1597 = vmatpush1.msra.mxu0 0.0
        %1598 = vmatprep.subr.mxu0 0.0
        %1599 = vmatpush1.msra.mxu0 0.0
        %1600 = vmatprep.subr.mxu0 0.0
        %1601 = vmatpush1.msra.mxu0 0.0
        %1602 = vmatprep.subr.mxu0 0.0
        %1603 = vmatpush1.msra.mxu0 0.0
        %1604 = vmatprep.subr.mxu0 0.0
        %1605 = vmatpush1.msra.mxu0 0.0
        %1606 = vmatprep.subr.mxu0 0.0
        %1607 = vmatpush1.msra.mxu0 0.0
        %1608 = vmatprep.subr.mxu0 0.0
        %1609 = vmatpush1.msra.mxu0 0.0
        %1610 = vmatprep.mubr.f32.mxu0 0.0
        %1611 = vmatmul.mubr.f32.gmra.mrb[0].mxu0 %v1544
        %v1612 = vpop.f32.mrb[0].mxu0
        %v1613 = vadd.f32 0.0, %v1612
        %v1614 = vpop.f32.mrb[0].mxu0
        %1615 = vdwg.mxu0
        %v1616 = vadd.f32 %v1534, %v1613
        %v1617 = vrcp.pop %v1538
        %v1618 = vmul.f32 %v1616, %v1617
        %1620 = vrot.lane.b32.xlu0 %v1618, 16
        %v1621 = vpop.permute.xlu0 %1620
        %vm1623 = vcmask 195712
        %1624 = vst.msk [vmem:[#allocation6] sm:$0xff] %vm1623, %v1621
        %v1625 = vld [vmem:[#allocation2] sm:$0xff]
        %v1626 = vld [vmem:[#allocation3] sm:$0xff]
        %1627 = vrot.lane.b32.xlu0 %v1090, 104
        %v1628 = vpop.permute.xlu0 %1627
        %1630 = vrot.lane.b32.xlu0 %v1625, 104
        %v1631 = vpop.permute.xlu0 %1630
        %v1632 = vsel %vm1095, %v1628, 0
        %v1634 = vsel %vm1095, %v1631, 0
        %1636 = vmatprep.subr.mxu0 0.0
        %1637 = vmatpush1.xpose.msra.mxu0 %v1634
        %1638 = vmatprep.subr.mxu0 0.0
        %1639 = vmatpush1.xpose.msra.mxu0 0.0
        %1640 = vmatprep.subr.mxu0 0.0
        %1641 = vmatpush1.xpose.msra.mxu0 0.0
        %1642 = vmatprep.subr.mxu0 0.0
        %1643 = vmatpush1.xpose.msra.mxu0 0.0
        %1644 = vmatprep.subr.mxu0 0.0
        %1645 = vmatpush1.xpose.msra.mxu0 0.0
        %1646 = vmatprep.subr.mxu0 0.0
        %1647 = vmatpush1.xpose.msra.mxu0 0.0
        %1648 = vmatprep.subr.mxu0 0.0
        %1649 = vmatpush1.xpose.msra.mxu0 0.0
        %1650 = vmatprep.subr.mxu0 0.0
        %1651 = vmatpush1.xpose.msra.mxu0 0.0
        %1652 = vmatprep.subr.mxu0 0.0
        %1653 = vmatpush1.xpose.msra.mxu0 0.0
        %1654 = vmatprep.subr.mxu0 0.0
        %1655 = vmatpush1.xpose.msra.mxu0 0.0
        %1656 = vmatprep.subr.mxu0 0.0
        %1657 = vmatpush1.xpose.msra.mxu0 0.0
        %1658 = vmatprep.subr.mxu0 0.0
        %1659 = vmatpush1.xpose.msra.mxu0 0.0
        %1660 = vmatprep.subr.mxu0 0.0
        %1661 = vmatpush1.xpose.msra.mxu0 0.0
        %1662 = vmatprep.subr.mxu0 0.0
        %1663 = vmatpush1.xpose.msra.mxu0 0.0
        %1664 = vmatprep.subr.mxu0 0.0
        %1665 = vmatpush1.xpose.msra.mxu0 0.0
        %1666 = vmatprep.subr.mxu0 0.0
        %1667 = vmatpush1.xpose.msra.mxu0 0.0
        %1668 = vmatprep.subr.mxu0 0.0
        %1669 = vmatpush1.xpose.msra.mxu0 0.0
        %1670 = vmatprep.subr.mxu0 0.0
        %1671 = vmatpush1.xpose.msra.mxu0 0.0
        %1672 = vmatprep.subr.mxu0 0.0
        %1673 = vmatpush1.xpose.msra.mxu0 0.0
        %1674 = vmatprep.subr.mxu0 0.0
        %1675 = vmatpush1.xpose.msra.mxu0 0.0
        %1676 = vmatprep.subr.mxu0 0.0
        %1677 = vmatpush1.xpose.msra.mxu0 0.0
        %1678 = vmatprep.subr.mxu0 0.0
        %1679 = vmatpush1.xpose.msra.mxu0 0.0
        %1680 = vmatprep.subr.mxu0 0.0
        %1681 = vmatpush1.xpose.msra.mxu0 0.0
        %1682 = vmatprep.subr.mxu0 0.0
        %1683 = vmatpush1.xpose.msra.mxu0 0.0
        %1684 = vmatprep.subr.mxu0 0.0
        %1685 = vmatpush1.xpose.msra.mxu0 0.0
        %1686 = vmatprep.subr.mxu0 0.0
        %1687 = vmatpush1.xpose.msra.mxu0 0.0
        %1688 = vmatprep.subr.mxu0 0.0
        %1689 = vmatpush1.xpose.msra.mxu0 0.0
        %1690 = vmatprep.subr.mxu0 0.0
        %1691 = vmatpush1.xpose.msra.mxu0 0.0
        %1692 = vmatprep.subr.mxu0 0.0
        %1693 = vmatpush1.xpose.msra.mxu0 0.0
        %1694 = vmatprep.subr.mxu0 0.0
        %1695 = vmatpush1.xpose.msra.mxu0 0.0
        %1696 = vmatprep.subr.mxu0 0.0
        %1697 = vmatpush1.xpose.msra.mxu0 0.0
        %1698 = vmatprep.subr.mxu0 0.0
        %1699 = vmatpush1.xpose.msra.mxu0 0.0
        %1700 = vmatprep.mubr.f32.mxu0 0.0
        %1701 = vmatmul.mubr.f32.gmra.mrb[0].mxu0 %v1632
        %v1702 = vpop.f32.mrb[0].mxu0
        %v1703 = vadd.f32 0.0, %v1702
        %v1704 = vpop.f32.mrb[0].mxu0
        %1705 = vdwg.mxu0
        %v1706 = vsel %vm1095, %v1703, -inf
        %1707 = vmax.xlane.f32.xlu0 %v1706
        %v1708 = vpop.xlane.xlu0 %1707
        %v1709 = vsub.f32 -inf, %v1708
        %v1710 = vmul.f32 %v1709, 1.442695
        %v1711 = vpow.pop %v1710
        %v1712 = vsub.f32 %v1703, %v1708
        %v1713 = vmul.f32 %v1712, 1.442695
        %v1714 = vpow.pop %v1713
        %v1715 = vmul.f32 %v1711, 0.0
        %v1716 = vsel %vm1095, %v1714, 0.0
        %1717 = vadd.xlane.f32.xlu0 %v1716
        %v1718 = vpop.xlane.xlu0 %1717
        %v1719 = vadd.f32 %v1715, %v1718
        %1721 = vrot.lane.b32.xlu0 %v1626, 104
        %v1722 = vpop.permute.xlu0 %1721
        %v1725 = vsel %vm1095, %v1714, 0
        %1727 = vmatprep.subr.mxu0 0.0
        %1728 = vmatpush1.msra.mxu0 %v1722
        %1729 = vmatprep.subr.mxu0 0.0
        %1730 = vmatpush1.msra.mxu0 0.0
        %1731 = vmatprep.subr.mxu0 0.0
        %1732 = vmatpush1.msra.mxu0 0.0
        %1733 = vmatprep.subr.mxu0 0.0
        %1734 = vmatpush1.msra.mxu0 0.0
        %1735 = vmatprep.subr.mxu0 0.0
        %1736 = vmatpush1.msra.mxu0 0.0
        %1737 = vmatprep.subr.mxu0 0.0
        %1738 = vmatpush1.msra.mxu0 0.0
        %1739 = vmatprep.subr.mxu0 0.0
        %1740 = vmatpush1.msra.mxu0 0.0
        %1741 = vmatprep.subr.mxu0 0.0
        %1742 = vmatpush1.msra.mxu0 0.0
        %1743 = vmatprep.subr.mxu0 0.0
        %1744 = vmatpush1.msra.mxu0 0.0
        %1745 = vmatprep.subr.mxu0 0.0
        %1746 = vmatpush1.msra.mxu0 0.0
        %1747 = vmatprep.subr.mxu0 0.0
        %1748 = vmatpush1.msra.mxu0 0.0
        %1749 = vmatprep.subr.mxu0 0.0
        %1750 = vmatpush1.msra.mxu0 0.0
        %1751 = vmatprep.subr.mxu0 0.0
        %1752 = vmatpush1.msra.mxu0 0.0
        %1753 = vmatprep.subr.mxu0 0.0
        %1754 = vmatpush1.msra.mxu0 0.0
        %1755 = vmatprep.subr.mxu0 0.0
        %1756 = vmatpush1.msra.mxu0 0.0
        %1757 = vmatprep.subr.mxu0 0.0
        %1758 = vmatpush1.msra.mxu0 0.0
        %1759 = vmatprep.subr.mxu0 0.0
        %1760 = vmatpush1.msra.mxu0 0.0
        %1761 = vmatprep.subr.mxu0 0.0
        %1762 = vmatpush1.msra.mxu0 0.0
        %1763 = vmatprep.subr.mxu0 0.0
        %1764 = vmatpush1.msra.mxu0 0.0
        %1765 = vmatprep.subr.mxu0 0.0
        %1766 = vmatpush1.msra.mxu0 0.0
        %1767 = vmatprep.subr.mxu0 0.0
        %1768 = vmatpush1.msra.mxu0 0.0
        %1769 = vmatprep.subr.mxu0 0.0
        %1770 = vmatpush1.msra.mxu0 0.0
        %1771 = vmatprep.subr.mxu0 0.0
        %1772 = vmatpush1.msra.mxu0 0.0
        %1773 = vmatprep.subr.mxu0 0.0
        %1774 = vmatpush1.msra.mxu0 0.0
        %1775 = vmatprep.subr.mxu0 0.0
        %1776 = vmatpush1.msra.mxu0 0.0
        %1777 = vmatprep.subr.mxu0 0.0
        %1778 = vmatpush1.msra.mxu0 0.0
        %1779 = vmatprep.subr.mxu0 0.0
        %1780 = vmatpush1.msra.mxu0 0.0
        %1781 = vmatprep.subr.mxu0 0.0
        %1782 = vmatpush1.msra.mxu0 0.0
        %1783 = vmatprep.subr.mxu0 0.0
        %1784 = vmatpush1.msra.mxu0 0.0
        %1785 = vmatprep.subr.mxu0 0.0
        %1786 = vmatpush1.msra.mxu0 0.0
        %1787 = vmatprep.subr.mxu0 0.0
        %1788 = vmatpush1.msra.mxu0 0.0
        %1789 = vmatprep.subr.mxu0 0.0
        %1790 = vmatpush1.msra.mxu0 0.0
        %1791 = vmatprep.mubr.f32.mxu0 0.0
        %1792 = vmatmul.mubr.f32.gmra.mrb[0].mxu0 %v1725
        %v1793 = vpop.f32.mrb[0].mxu0
        %v1794 = vadd.f32 0.0, %v1793
        %v1795 = vpop.f32.mrb[0].mxu0
        %1796 = vdwg.mxu0
        %v1797 = vadd.f32 %v1715, %v1794
        %v1798 = vrcp.pop %v1719
        %v1799 = vmul.f32 %v1797, %v1798
        %1801 = vrot.lane.b32.xlu0 %v1799, 24
        %v1802 = vpop.permute.xlu0 %1801
        %vm1804 = vcmask 261312
        %1805 = vst.msk [vmem:[#allocation6] sm:$0xff] %vm1804, %v1802
        %v1806 = vld [vmem:[#allocation6] sm:$0xff]
        %v1807 = vld [vmem:[#allocation16] sm:$0xff]
        %v1808 = vld [vmem:[#allocation16 + $0x8] sm:$0xff]
        %v1809 = vld [vmem:[#allocation16 + $0x10] sm:$0xff]
        %v1810 = vld [vmem:[#allocation16 + $0x18] sm:$0xff]
        %v1811 = vld [vmem:[#allocation18] sm:$0x1]
        %v1813 = vlaneseq
        %v1814 = vshrl.u32 %v1813, 7
        %v1815 = vsub.s32 0, %v1814
        %v1816 = vrot.slane %v1811, %v1815
        %v1819 = vsel %vm1019, %v1806, 0
        %1821 = vmatprep.subr.mxu0 0.0
        %1822 = vmatpush1.msra.mxu0 %v1807
        %1823 = vmatprep.subr.mxu0 0.0
        %1824 = vmatpush1.msra.mxu0 %v1808
        %1825 = vmatprep.subr.mxu0 0.0
        %1826 = vmatpush1.msra.mxu0 %v1809
        %1827 = vmatprep.subr.mxu0 0.0
        %1828 = vmatpush1.msra.mxu0 %v1810
        %1829 = vmatprep.subr.mxu0 0.0
        %1830 = vmatpush1.msra.mxu0 0.0
        %1831 = vmatprep.subr.mxu0 0.0
        %1832 = vmatpush1.msra.mxu0 0.0
        %1833 = vmatprep.subr.mxu0 0.0
        %1834 = vmatpush1.msra.mxu0 0.0
        %1835 = vmatprep.subr.mxu0 0.0
        %1836 = vmatpush1.msra.mxu0 0.0
        %1837 = vmatprep.subr.mxu0 0.0
        %1838 = vmatpush1.msra.mxu0 0.0
        %1839 = vmatprep.subr.mxu0 0.0
        %1840 = vmatpush1.msra.mxu0 0.0
        %1841 = vmatprep.subr.mxu0 0.0
        %1842 = vmatpush1.msra.mxu0 0.0
        %1843 = vmatprep.subr.mxu0 0.0
        %1844 = vmatpush1.msra.mxu0 0.0
        %1845 = vmatprep.subr.mxu0 0.0
        %1846 = vmatpush1.msra.mxu0 0.0
        %1847 = vmatprep.subr.mxu0 0.0
        %1848 = vmatpush1.msra.mxu0 0.0
        %1849 = vmatprep.subr.mxu0 0.0
        %1850 = vmatpush1.msra.mxu0 0.0
        %1851 = vmatprep.subr.mxu0 0.0
        %1852 = vmatpush1.msra.mxu0 0.0
        %1853 = vmatprep.subr.mxu0 0.0
        %1854 = vmatpush1.msra.mxu0 0.0
        %1855 = vmatprep.subr.mxu0 0.0
        %1856 = vmatpush1.msra.mxu0 0.0
        %1857 = vmatprep.subr.mxu0 0.0
        %1858 = vmatpush1.msra.mxu0 0.0
        %1859 = vmatprep.subr.mxu0 0.0
        %1860 = vmatpush1.msra.mxu0 0.0
        %1861 = vmatprep.subr.mxu0 0.0
        %1862 = vmatpush1.msra.mxu0 0.0
        %1863 = vmatprep.subr.mxu0 0.0
        %1864 = vmatpush1.msra.mxu0 0.0
        %1865 = vmatprep.subr.mxu0 0.0
        %1866 = vmatpush1.msra.mxu0 0.0
        %1867 = vmatprep.subr.mxu0 0.0
        %1868 = vmatpush1.msra.mxu0 0.0
        %1869 = vmatprep.subr.mxu0 0.0
        %1870 = vmatpush1.msra.mxu0 0.0
        %1871 = vmatprep.subr.mxu0 0.0
        %1872 = vmatpush1.msra.mxu0 0.0
        %1873 = vmatprep.subr.mxu0 0.0
        %1874 = vmatpush1.msra.mxu0 0.0
        %1875 = vmatprep.subr.mxu0 0.0
        %1876 = vmatpush1.msra.mxu0 0.0
        %1877 = vmatprep.subr.mxu0 0.0
        %1878 = vmatpush1.msra.mxu0 0.0
        %1879 = vmatprep.subr.mxu0 0.0
        %1880 = vmatpush1.msra.mxu0 0.0
        %1881 = vmatprep.subr.mxu0 0.0
        %1882 = vmatpush1.msra.mxu0 0.0
        %1883 = vmatprep.subr.mxu0 0.0
        %1884 = vmatpush1.msra.mxu0 0.0
        %1885 = vmatprep.mubr.f32.mxu0 0.0
        %1886 = vmatmul.mubr.f32.gmra.mrb[0].mxu0 %v1819
        %v1887 = vpop.f32.mrb[0].mxu0
        %v1888 = vadd.f32 %v1816, %v1887
        %v1889 = vpop.f32.mrb[0].mxu0
        %1890 = vdwg.mxu0
        %v1891 = vadd.f32 %v1888, %v1014
        %v1892 = vld [vmem:[#allocation19] sm:$0xff]
        %v1893 = vld [vmem:[#allocation19 + $0x8] sm:$0xff]
        %v1894 = vld [vmem:[#allocation19 + $0x10] sm:$0xff]
        %v1895 = vld [vmem:[#allocation19 + $0x18] sm:$0xff]
        %v1897 = vsel %vm1019, %v1891, 0
        %1899 = vmatprep.subr.mxu0 0.0
        %1900 = vmatpush1.msra.mxu0 %v1892
        %1901 = vmatprep.subr.mxu0 0.0
        %1902 = vmatpush1.msra.mxu0 %v1893
        %1903 = vmatprep.subr.mxu0 0.0
        %1904 = vmatpush1.msra.mxu0 %v1894
        %1905 = vmatprep.subr.mxu0 0.0
        %1906 = vmatpush1.msra.mxu0 %v1895
        %1907 = vmatprep.subr.mxu0 0.0
        %1908 = vmatpush1.msra.mxu0 0.0
        %1909 = vmatprep.subr.mxu0 0.0
        %1910 = vmatpush1.msra.mxu0 0.0
        %1911 = vmatprep.subr.mxu0 0.0
        %1912 = vmatpush1.msra.mxu0 0.0
        %1913 = vmatprep.subr.mxu0 0.0
        %1914 = vmatpush1.msra.mxu0 0.0
        %1915 = vmatprep.subr.mxu0 0.0
        %1916 = vmatpush1.msra.mxu0 0.0
        %1917 = vmatprep.subr.mxu0 0.0
        %1918 = vmatpush1.msra.mxu0 0.0
        %1919 = vmatprep.subr.mxu0 0.0
        %1920 = vmatpush1.msra.mxu0 0.0
        %1921 = vmatprep.subr.mxu0 0.0
        %1922 = vmatpush1.msra.mxu0 0.0
        %1923 = vmatprep.subr.mxu0 0.0
        %1924 = vmatpush1.msra.mxu0 0.0
        %1925 = vmatprep.subr.mxu0 0.0
        %1926 = vmatpush1.msra.mxu0 0.0
        %1927 = vmatprep.subr.mxu0 0.0
        %1928 = vmatpush1.msra.mxu0 0.0
        %1929 = vmatprep.subr.mxu0 0.0
        %1930 = vmatpush1.msra.mxu0 0.0
        %1931 = vmatprep.subr.mxu0 0.0
        %1932 = vmatpush1.msra.mxu0 0.0
        %1933 = vmatprep.subr.mxu0 0.0
        %1934 = vmatpush1.msra.mxu0 0.0
        %1935 = vmatprep.subr.mxu0 0.0
        %1936 = vmatpush1.msra.mxu0 0.0
        %1937 = vmatprep.subr.mxu0 0.0
        %1938 = vmatpush1.msra.mxu0 0.0
        %1939 = vmatprep.subr.mxu0 0.0
        %1940 = vmatpush1.msra.mxu0 0.0
        %1941 = vmatprep.subr.mxu0 0.0
        %1942 = vmatpush1.msra.mxu0 0.0
        %1943 = vmatprep.subr.mxu0 0.0
        %1944 = vmatpush1.msra.mxu0 0.0
        %1945 = vmatprep.subr.mxu0 0.0
        %1946 = vmatpush1.msra.mxu0 0.0
        %1947 = vmatprep.subr.mxu0 0.0
        %1948 = vmatpush1.msra.mxu0 0.0
        %1949 = vmatprep.subr.mxu0 0.0
        %1950 = vmatpush1.msra.mxu0 0.0
        %1951 = vmatprep.subr.mxu0 0.0
        %1952 = vmatpush1.msra.mxu0 0.0
        %1953 = vmatprep.subr.mxu0 0.0
        %1954 = vmatpush1.msra.mxu0 0.0
        %1955 = vmatprep.subr.mxu0 0.0
        %1956 = vmatpush1.msra.mxu0 0.0
        %1957 = vmatprep.subr.mxu0 0.0
        %1958 = vmatpush1.msra.mxu0 0.0
        %1959 = vmatprep.subr.mxu0 0.0
        %1960 = vmatpush1.msra.mxu0 0.0
        %1961 = vmatprep.subr.mxu0 0.0
        %1962 = vmatpush1.msra.mxu0 0.0
        %1963 = vmatprep.mubr.f32.mxu0 0.0
        %1964 = vmatmul.mubr.f32.gmra.mrb[0].mxu0 %v1897
        %v1965 = vpop.f32.mrb[0].mxu0
        %v1966 = vadd.f32 0.0, %v1965
        %v1967 = vpop.f32.mrb[0].mxu0
        %1968 = vdwg.mxu0
        %v1969 = vld [vmem:[#allocation4] sm:$0xff]
        %v1970 = vld [vmem:[#allocation5] sm:$0xff]
        %v1972 = vsel %vm1095, %v1966, 0
        %v1975 = vsel %vm1095, %v1969, 0
        %1977 = vmatprep.subr.mxu0 0.0
        %1978 = vmatpush1.xpose.msra.mxu0 %v1975
        %1979 = vmatprep.subr.mxu0 0.0
        %1980 = vmatpush1.xpose.msra.mxu0 0.0
        %1981 = vmatprep.subr.mxu0 0.0
        %1982 = vmatpush1.xpose.msra.mxu0 0.0
        %1983 = vmatprep.subr.mxu0 0.0
        %1984 = vmatpush1.xpose.msra.mxu0 0.0
        %1985 = vmatprep.subr.mxu0 0.0
        %1986 = vmatpush1.xpose.msra.mxu0 0.0
        %1987 = vmatprep.subr.mxu0 0.0
        %1988 = vmatpush1.xpose.msra.mxu0 0.0
        %1989 = vmatprep.subr.mxu0 0.0
        %1990 = vmatpush1.xpose.msra.mxu0 0.0
        %1991 = vmatprep.subr.mxu0 0.0
        %1992 = vmatpush1.xpose.msra.mxu0 0.0
        %1993 = vmatprep.subr.mxu0 0.0
        %1994 = vmatpush1.xpose.msra.mxu0 0.0
        %1995 = vmatprep.subr.mxu0 0.0
        %1996 = vmatpush1.xpose.msra.mxu0 0.0
        %1997 = vmatprep.subr.mxu0 0.0
        %1998 = vmatpush1.xpose.msra.mxu0 0.0
        %1999 = vmatprep.subr.mxu0 0.0
        %2000 = vmatpush1.xpose.msra.mxu0 0.0
        %2001 = vmatprep.subr.mxu0 0.0
        %2002 = vmatpush1.xpose.msra.mxu0 0.0
        %2003 = vmatprep.subr.mxu0 0.0
        %2004 = vmatpush1.xpose.msra.mxu0 0.0
        %2005 = vmatprep.subr.mxu0 0.0
        %2006 = vmatpush1.xpose.msra.mxu0 0.0
        %2007 = vmatprep.subr.mxu0 0.0
        %2008 = vmatpush1.xpose.msra.mxu0 0.0
        %2009 = vmatprep.subr.mxu0 0.0
        %2010 = vmatpush1.xpose.msra.mxu0 0.0
        %2011 = vmatprep.subr.mxu0 0.0
        %2012 = vmatpush1.xpose.msra.mxu0 0.0
        %2013 = vmatprep.subr.mxu0 0.0
        %2014 = vmatpush1.xpose.msra.mxu0 0.0
        %2015 = vmatprep.subr.mxu0 0.0
        %2016 = vmatpush1.xpose.msra.mxu0 0.0
        %2017 = vmatprep.subr.mxu0 0.0
        %2018 = vmatpush1.xpose.msra.mxu0 0.0
        %2019 = vmatprep.subr.mxu0 0.0
        %2020 = vmatpush1.xpose.msra.mxu0 0.0
        %2021 = vmatprep.subr.mxu0 0.0
        %2022 = vmatpush1.xpose.msra.mxu0 0.0
        %2023 = vmatprep.subr.mxu0 0.0
        %2024 = vmatpush1.xpose.msra.mxu0 0.0
        %2025 = vmatprep.subr.mxu0 0.0
        %2026 = vmatpush1.xpose.msra.mxu0 0.0
        %2027 = vmatprep.subr.mxu0 0.0
        %2028 = vmatpush1.xpose.msra.mxu0 0.0
        %2029 = vmatprep.subr.mxu0 0.0
        %2030 = vmatpush1.xpose.msra.mxu0 0.0
        %2031 = vmatprep.subr.mxu0 0.0
        %2032 = vmatpush1.xpose.msra.mxu0 0.0
        %2033 = vmatprep.subr.mxu0 0.0
        %2034 = vmatpush1.xpose.msra.mxu0 0.0
        %2035 = vmatprep.subr.mxu0 0.0
        %2036 = vmatpush1.xpose.msra.mxu0 0.0
        %2037 = vmatprep.subr.mxu0 0.0
        %2038 = vmatpush1.xpose.msra.mxu0 0.0
        %2039 = vmatprep.subr.mxu0 0.0
        %2040 = vmatpush1.xpose.msra.mxu0 0.0
        %2041 = vmatprep.mubr.f32.mxu0 0.0
        %2042 = vmatmul.mubr.f32.gmra.mrb[0].mxu0 %v1972
        %v2043 = vpop.f32.mrb[0].mxu0
        %v2044 = vadd.f32 0.0, %v2043
        %v2045 = vpop.f32.mrb[0].mxu0
        %2046 = vdwg.mxu0
        %v2047 = vsel %vm1095, %v2044, -inf
        %2048 = vmax.xlane.f32.xlu0 %v2047
        %v2049 = vpop.xlane.xlu0 %2048
        %v2050 = vsub.f32 -inf, %v2049
        %v2051 = vmul.f32 %v2050, 1.442695
        %v2052 = vpow.pop %v2051
        %v2053 = vsub.f32 %v2044, %v2049
        %v2054 = vmul.f32 %v2053, 1.442695
        %v2055 = vpow.pop %v2054
        %v2056 = vmul.f32 %v2052, 0.0
        %v2057 = vsel %vm1095, %v2055, 0.0
        %2058 = vadd.xlane.f32.xlu0 %v2057
        %v2059 = vpop.xlane.xlu0 %2058
        %v2060 = vadd.f32 %v2056, %v2059
        %v2062 = vsel %vm1095, %v2055, 0
        %2064 = vmatprep.subr.mxu0 0.0
        %2065 = vmatpush1.msra.mxu0 %v1970
        %2066 = vmatprep.subr.mxu0 0.0
        %2067 = vmatpush1.msra.mxu0 0.0
        %2068 = vmatprep.subr.mxu0 0.0
        %2069 = vmatpush1.msra.mxu0 0.0
        %2070 = vmatprep.subr.mxu0 0.0
        %2071 = vmatpush1.msra.mxu0 0.0
        %2072 = vmatprep.subr.mxu0 0.0
        %2073 = vmatpush1.msra.mxu0 0.0
        %2074 = vmatprep.subr.mxu0 0.0
        %2075 = vmatpush1.msra.mxu0 0.0
        %2076 = vmatprep.subr.mxu0 0.0
        %2077 = vmatpush1.msra.mxu0 0.0
        %2078 = vmatprep.subr.mxu0 0.0
        %2079 = vmatpush1.msra.mxu0 0.0
        %2080 = vmatprep.subr.mxu0 0.0
        %2081 = vmatpush1.msra.mxu0 0.0
        %2082 = vmatprep.subr.mxu0 0.0
        %2083 = vmatpush1.msra.mxu0 0.0
        %2084 = vmatprep.subr.mxu0 0.0
        %2085 = vmatpush1.msra.mxu0 0.0
        %2086 = vmatprep.subr.mxu0 0.0
        %2087 = vmatpush1.msra.mxu0 0.0
        %2088 = vmatprep.subr.mxu0 0.0
        %2089 = vmatpush1.msra.mxu0 0.0
        %2090 = vmatprep.subr.mxu0 0.0
        %2091 = vmatpush1.msra.mxu0 0.0
        %2092 = vmatprep.subr.mxu0 0.0
        %2093 = vmatpush1.msra.mxu0 0.0
        %2094 = vmatprep.subr.mxu0 0.0
        %2095 = vmatpush1.msra.mxu0 0.0
        %2096 = vmatprep.subr.mxu0 0.0
        %2097 = vmatpush1.msra.mxu0 0.0
        %2098 = vmatprep.subr.mxu0 0.0
        %2099 = vmatpush1.msra.mxu0 0.0
        %2100 = vmatprep.subr.mxu0 0.0
        %2101 = vmatpush1.msra.mxu0 0.0
        %2102 = vmatprep.subr.mxu0 0.0
        %2103 = vmatpush1.msra.mxu0 0.0
        %2104 = vmatprep.subr.mxu0 0.0
        %2105 = vmatpush1.msra.mxu0 0.0
        %2106 = vmatprep.subr.mxu0 0.0
        %2107 = vmatpush1.msra.mxu0 0.0
        %2108 = vmatprep.subr.mxu0 0.0
        %2109 = vmatpush1.msra.mxu0 0.0
        %2110 = vmatprep.subr.mxu0 0.0
        %2111 = vmatpush1.msra.mxu0 0.0
        %2112 = vmatprep.subr.mxu0 0.0
        %2113 = vmatpush1.msra.mxu0 0.0
        %2114 = vmatprep.subr.mxu0 0.0
        %2115 = vmatpush1.msra.mxu0 0.0
        %2116 = vmatprep.subr.mxu0 0.0
        %2117 = vmatpush1.msra.mxu0 0.0
        %2118 = vmatprep.subr.mxu0 0.0
        %2119 = vmatpush1.msra.mxu0 0.0
        %2120 = vmatprep.subr.mxu0 0.0
        %2121 = vmatpush1.msra.mxu0 0.0
        %2122 = vmatprep.subr.mxu0 0.0
        %2123 = vmatpush1.msra.mxu0 0.0
        %2124 = vmatprep.subr.mxu0 0.0
        %2125 = vmatpush1.msra.mxu0 0.0
        %2126 = vmatprep.subr.mxu0 0.0
        %2127 = vmatpush1.msra.mxu0 0.0
        %2128 = vmatprep.mubr.f32.mxu0 0.0
        %2129 = vmatmul.mubr.f32.gmra.mrb[0].mxu0 %v2062
        %v2130 = vpop.f32.mrb[0].mxu0
        %v2131 = vadd.f32 0.0, %v2130
        %v2132 = vpop.f32.mrb[0].mxu0
        %2133 = vdwg.mxu0
        %v2134 = vadd.f32 %v2056, %v2131
        %v2135 = vrcp.pop %v2060
        %v2136 = vmul.f32 %v2134, %v2135
        %2137 = vst.msk [vmem:[#allocation6] sm:$0xff] %vm1095, %v2136
        %v2138 = vld [vmem:[#allocation4] sm:$0xff]
        %v2139 = vld [vmem:[#allocation5] sm:$0xff]
        %2140 = vrot.lane.b32.xlu0 %v1966, 120
        %v2141 = vpop.permute.xlu0 %2140
        %2143 = vrot.lane.b32.xlu0 %v2138, 120
        %v2144 = vpop.permute.xlu0 %2143
        %v2145 = vsel %vm1095, %v2141, 0
        %v2147 = vsel %vm1095, %v2144, 0
        %2149 = vmatprep.subr.mxu0 0.0
        %2150 = vmatpush1.xpose.msra.mxu0 %v2147
        %2151 = vmatprep.subr.mxu0 0.0
        %2152 = vmatpush1.xpose.msra.mxu0 0.0
        %2153 = vmatprep.subr.mxu0 0.0
        %2154 = vmatpush1.xpose.msra.mxu0 0.0
        %2155 = vmatprep.subr.mxu0 0.0
        %2156 = vmatpush1.xpose.msra.mxu0 0.0
        %2157 = vmatprep.subr.mxu0 0.0
        %2158 = vmatpush1.xpose.msra.mxu0 0.0
        %2159 = vmatprep.subr.mxu0 0.0
        %2160 = vmatpush1.xpose.msra.mxu0 0.0
        %2161 = vmatprep.subr.mxu0 0.0
        %2162 = vmatpush1.xpose.msra.mxu0 0.0
        %2163 = vmatprep.subr.mxu0 0.0
        %2164 = vmatpush1.xpose.msra.mxu0 0.0
        %2165 = vmatprep.subr.mxu0 0.0
        %2166 = vmatpush1.xpose.msra.mxu0 0.0
        %2167 = vmatprep.subr.mxu0 0.0
        %2168 = vmatpush1.xpose.msra.mxu0 0.0
        %2169 = vmatprep.subr.mxu0 0.0
        %2170 = vmatpush1.xpose.msra.mxu0 0.0
        %2171 = vmatprep.subr.mxu0 0.0
        %2172 = vmatpush1.xpose.msra.mxu0 0.0
        %2173 = vmatprep.subr.mxu0 0.0
        %2174 = vmatpush1.xpose.msra.mxu0 0.0
        %2175 = vmatprep.subr.mxu0 0.0
        %2176 = vmatpush1.xpose.msra.mxu0 0.0
        %2177 = vmatprep.subr.mxu0 0.0
        %2178 = vmatpush1.xpose.msra.mxu0 0.0
        %2179 = vmatprep.subr.mxu0 0.0
        %2180 = vmatpush1.xpose.msra.mxu0 0.0
        %2181 = vmatprep.subr.mxu0 0.0
        %2182 = vmatpush1.xpose.msra.mxu0 0.0
        %2183 = vmatprep.subr.mxu0 0.0
        %2184 = vmatpush1.xpose.msra.mxu0 0.0
        %2185 = vmatprep.subr.mxu0 0.0
        %2186 = vmatpush1.xpose.msra.mxu0 0.0
        %2187 = vmatprep.subr.mxu0 0.0
        %2188 = vmatpush1.xpose.msra.mxu0 0.0
        %2189 = vmatprep.subr.mxu0 0.0
        %2190 = vmatpush1.xpose.msra.mxu0 0.0
        %2191 = vmatprep.subr.mxu0 0.0
        %2192 = vmatpush1.xpose.msra.mxu0 0.0
        %2193 = vmatprep.subr.mxu0 0.0
        %2194 = vmatpush1.xpose.msra.mxu0 0.0
        %2195 = vmatprep.subr.mxu0 0.0
        %2196 = vmatpush1.xpose.msra.mxu0 0.0
        %2197 = vmatprep.subr.mxu0 0.0
        %2198 = vmatpush1.xpose.msra.mxu0 0.0
        %2199 = vmatprep.subr.mxu0 0.0
        %2200 = vmatpush1.xpose.msra.mxu0 0.0
        %2201 = vmatprep.subr.mxu0 0.0
        %2202 = vmatpush1.xpose.msra.mxu0 0.0
        %2203 = vmatprep.subr.mxu0 0.0
        %2204 = vmatpush1.xpose.msra.mxu0 0.0
        %2205 = vmatprep.subr.mxu0 0.0
        %2206 = vmatpush1.xpose.msra.mxu0 0.0
        %2207 = vmatprep.subr.mxu0 0.0
        %2208 = vmatpush1.xpose.msra.mxu0 0.0
        %2209 = vmatprep.subr.mxu0 0.0
        %2210 = vmatpush1.xpose.msra.mxu0 0.0
        %2211 = vmatprep.subr.mxu0 0.0
        %2212 = vmatpush1.xpose.msra.mxu0 0.0
        %2213 = vmatprep.mubr.f32.mxu0 0.0
        %2214 = vmatmul.mubr.f32.gmra.mrb[0].mxu0 %v2145
        %v2215 = vpop.f32.mrb[0].mxu0
        %v2216 = vadd.f32 0.0, %v2215
        %v2217 = vpop.f32.mrb[0].mxu0
        %2218 = vdwg.mxu0
        %v2219 = vsel %vm1095, %v2216, -inf
        %2220 = vmax.xlane.f32.xlu0 %v2219
        %v2221 = vpop.xlane.xlu0 %2220
        %v2222 = vsub.f32 -inf, %v2221
        %v2223 = vmul.f32 %v2222, 1.442695
        %v2224 = vpow.pop %v2223
        %v2225 = vsub.f32 %v2216, %v2221
        %v2226 = vmul.f32 %v2225, 1.442695
        %v2227 = vpow.pop %v2226
        %v2228 = vmul.f32 %v2224, 0.0
        %v2229 = vsel %vm1095, %v2227, 0.0
        %2230 = vadd.xlane.f32.xlu0 %v2229
        %v2231 = vpop.xlane.xlu0 %2230
        %v2232 = vadd.f32 %v2228, %v2231
        %2234 = vrot.lane.b32.xlu0 %v2139, 120
        %v2235 = vpop.permute.xlu0 %2234
        %v2238 = vsel %vm1095, %v2227, 0
        %2240 = vmatprep.subr.mxu0 0.0
        %2241 = vmatpush1.msra.mxu0 %v2235
        %2242 = vmatprep.subr.mxu0 0.0
        %2243 = vmatpush1.msra.mxu0 0.0
        %2244 = vmatprep.subr.mxu0 0.0
        %2245 = vmatpush1.msra.mxu0 0.0
        %2246 = vmatprep.subr.mxu0 0.0
        %2247 = vmatpush1.msra.mxu0 0.0
        %2248 = vmatprep.subr.mxu0 0.0
        %2249 = vmatpush1.msra.mxu0 0.0
        %2250 = vmatprep.subr.mxu0 0.0
        %2251 = vmatpush1.msra.mxu0 0.0
        %2252 = vmatprep.subr.mxu0 0.0
        %2253 = vmatpush1.msra.mxu0 0.0
        %2254 = vmatprep.subr.mxu0 0.0
        %2255 = vmatpush1.msra.mxu0 0.0
        %2256 = vmatprep.subr.mxu0 0.0
        %2257 = vmatpush1.msra.mxu0 0.0
        %2258 = vmatprep.subr.mxu0 0.0
        %2259 = vmatpush1.msra.mxu0 0.0
        %2260 = vmatprep.subr.mxu0 0.0
        %2261 = vmatpush1.msra.mxu0 0.0
        %2262 = vmatprep.subr.mxu0 0.0
        %2263 = vmatpush1.msra.mxu0 0.0
        %2264 = vmatprep.subr.mxu0 0.0
        %2265 = vmatpush1.msra.mxu0 0.0
        %2266 = vmatprep.subr.mxu0 0.0
        %2267 = vmatpush1.msra.mxu0 0.0
        %2268 = vmatprep.subr.mxu0 0.0
        %2269 = vmatpush1.msra.mxu0 0.0
        %2270 = vmatprep.subr.mxu0 0.0
        %2271 = vmatpush1.msra.mxu0 0.0
        %2272 = vmatprep.subr.mxu0 0.0
        %2273 = vmatpush1.msra.mxu0 0.0
        %2274 = vmatprep.subr.mxu0 0.0
        %2275 = vmatpush1.msra.mxu0 0.0
        %2276 = vmatprep.subr.mxu0 0.0
        %2277 = vmatpush1.msra.mxu0 0.0
        %2278 = vmatprep.subr.mxu0 0.0
        %2279 = vmatpush1.msra.mxu0 0.0
        %2280 = vmatprep.subr.mxu0 0.0
        %2281 = vmatpush1.msra.mxu0 0.0
        %2282 = vmatprep.subr.mxu0 0.0
        %2283 = vmatpush1.msra.mxu0 0.0
        %2284 = vmatprep.subr.mxu0 0.0
        %2285 = vmatpush1.msra.mxu0 0.0
        %2286 = vmatprep.subr.mxu0 0.0
        %2287 = vmatpush1.msra.mxu0 0.0
        %2288 = vmatprep.subr.mxu0 0.0
        %2289 = vmatpush1.msra.mxu0 0.0
        %2290 = vmatprep.subr.mxu0 0.0
        %2291 = vmatpush1.msra.mxu0 0.0
        %2292 = vmatprep.subr.mxu0 0.0
        %2293 = vmatpush1.msra.mxu0 0.0
        %2294 = vmatprep.subr.mxu0 0.0
        %2295 = vmatpush1.msra.mxu0 0.0
        %2296 = vmatprep.subr.mxu0 0.0
        %2297 = vmatpush1.msra.mxu0 0.0
        %2298 = vmatprep.subr.mxu0 0.0
        %2299 = vmatpush1.msra.mxu0 0.0
        %2300 = vmatprep.subr.mxu0 0.0
        %2301 = vmatpush1.msra.mxu0 0.0
        %2302 = vmatprep.subr.mxu0 0.0
        %2303 = vmatpush1.msra.mxu0 0.0
        %2304 = vmatprep.mubr.f32.mxu0 0.0
        %2305 = vmatmul.mubr.f32.gmra.mrb[0].mxu0 %v2238
        %v2306 = vpop.f32.mrb[0].mxu0
        %v2307 = vadd.f32 0.0, %v2306
        %v2308 = vpop.f32.mrb[0].mxu0
        %2309 = vdwg.mxu0
        %v2310 = vadd.f32 %v2228, %v2307
        %v2311 = vrcp.pop %v2232
        %v2312 = vmul.f32 %v2310, %v2311
        %2314 = vrot.lane.b32.xlu0 %v2312, 8
        %v2315 = vpop.permute.xlu0 %2314
        %2317 = vst.msk [vmem:[#allocation6] sm:$0xff] %vm1442, %v2315
        %v2318 = vld [vmem:[#allocation4] sm:$0xff]
        %v2319 = vld [vmem:[#allocation5] sm:$0xff]
        %2320 = vrot.lane.b32.xlu0 %v1966, 112
        %v2321 = vpop.permute.xlu0 %2320
        %2323 = vrot.lane.b32.xlu0 %v2318, 112
        %v2324 = vpop.permute.xlu0 %2323
        %v2325 = vsel %vm1095, %v2321, 0
        %v2327 = vsel %vm1095, %v2324, 0
        %2329 = vmatprep.subr.mxu0 0.0
        %2330 = vmatpush1.xpose.msra.mxu0 %v2327
        %2331 = vmatprep.subr.mxu0 0.0
        %2332 = vmatpush1.xpose.msra.mxu0 0.0
        %2333 = vmatprep.subr.mxu0 0.0
        %2334 = vmatpush1.xpose.msra.mxu0 0.0
        %2335 = vmatprep.subr.mxu0 0.0
        %2336 = vmatpush1.xpose.msra.mxu0 0.0
        %2337 = vmatprep.subr.mxu0 0.0
        %2338 = vmatpush1.xpose.msra.mxu0 0.0
        %2339 = vmatprep.subr.mxu0 0.0
        %2340 = vmatpush1.xpose.msra.mxu0 0.0
        %2341 = vmatprep.subr.mxu0 0.0
        %2342 = vmatpush1.xpose.msra.mxu0 0.0
        %2343 = vmatprep.subr.mxu0 0.0
        %2344 = vmatpush1.xpose.msra.mxu0 0.0
        %2345 = vmatprep.subr.mxu0 0.0
        %2346 = vmatpush1.xpose.msra.mxu0 0.0
        %2347 = vmatprep.subr.mxu0 0.0
        %2348 = vmatpush1.xpose.msra.mxu0 0.0
        %2349 = vmatprep.subr.mxu0 0.0
        %2350 = vmatpush1.xpose.msra.mxu0 0.0
        %2351 = vmatprep.subr.mxu0 0.0
        %2352 = vmatpush1.xpose.msra.mxu0 0.0
        %2353 = vmatprep.subr.mxu0 0.0
        %2354 = vmatpush1.xpose.msra.mxu0 0.0
        %2355 = vmatprep.subr.mxu0 0.0
        %2356 = vmatpush1.xpose.msra.mxu0 0.0
        %2357 = vmatprep.subr.mxu0 0.0
        %2358 = vmatpush1.xpose.msra.mxu0 0.0
        %2359 = vmatprep.subr.mxu0 0.0
        %2360 = vmatpush1.xpose.msra.mxu0 0.0
        %2361 = vmatprep.subr.mxu0 0.0
        %2362 = vmatpush1.xpose.msra.mxu0 0.0
        %2363 = vmatprep.subr.mxu0 0.0
        %2364 = vmatpush1.xpose.msra.mxu0 0.0
        %2365 = vmatprep.subr.mxu0 0.0
        %2366 = vmatpush1.xpose.msra.mxu0 0.0
        %2367 = vmatprep.subr.mxu0 0.0
        %2368 = vmatpush1.xpose.msra.mxu0 0.0
        %2369 = vmatprep.subr.mxu0 0.0
        %2370 = vmatpush1.xpose.msra.mxu0 0.0
        %2371 = vmatprep.subr.mxu0 0.0
        %2372 = vmatpush1.xpose.msra.mxu0 0.0
        %2373 = vmatprep.subr.mxu0 0.0
        %2374 = vmatpush1.xpose.msra.mxu0 0.0
        %2375 = vmatprep.subr.mxu0 0.0
        %2376 = vmatpush1.xpose.msra.mxu0 0.0
        %2377 = vmatprep.subr.mxu0 0.0
        %2378 = vmatpush1.xpose.msra.mxu0 0.0
        %2379 = vmatprep.subr.mxu0 0.0
        %2380 = vmatpush1.xpose.msra.mxu0 0.0
        %2381 = vmatprep.subr.mxu0 0.0
        %2382 = vmatpush1.xpose.msra.mxu0 0.0
        %2383 = vmatprep.subr.mxu0 0.0
        %2384 = vmatpush1.xpose.msra.mxu0 0.0
        %2385 = vmatprep.subr.mxu0 0.0
        %2386 = vmatpush1.xpose.msra.mxu0 0.0
        %2387 = vmatprep.subr.mxu0 0.0
        %2388 = vmatpush1.xpose.msra.mxu0 0.0
        %2389 = vmatprep.subr.mxu0 0.0
        %2390 = vmatpush1.xpose.msra.mxu0 0.0
        %2391 = vmatprep.subr.mxu0 0.0
        %2392 = vmatpush1.xpose.msra.mxu0 0.0
        %2393 = vmatprep.mubr.f32.mxu0 0.0
        %2394 = vmatmul.mubr.f32.gmra.mrb[0].mxu0 %v2325
        %v2395 = vpop.f32.mrb[0].mxu0
        %v2396 = vadd.f32 0.0, %v2395
        %v2397 = vpop.f32.mrb[0].mxu0
        %2398 = vdwg.mxu0
        %v2399 = vsel %vm1095, %v2396, -inf
        %2400 = vmax.xlane.f32.xlu0 %v2399
        %v2401 = vpop.xlane.xlu0 %2400
        %v2402 = vsub.f32 -inf, %v2401
        %v2403 = vmul.f32 %v2402, 1.442695
        %v2404 = vpow.pop %v2403
        %v2405 = vsub.f32 %v2396, %v2401
        %v2406 = vmul.f32 %v2405, 1.442695
        %v2407 = vpow.pop %v2406
        %v2408 = vmul.f32 %v2404, 0.0
        %v2409 = vsel %vm1095, %v2407, 0.0
        %2410 = vadd.xlane.f32.xlu0 %v2409
        %v2411 = vpop.xlane.xlu0 %2410
        %v2412 = vadd.f32 %v2408, %v2411
        %2414 = vrot.lane.b32.xlu0 %v2319, 112
        %v2415 = vpop.permute.xlu0 %2414
        %v2418 = vsel %vm1095, %v2407, 0
        %2420 = vmatprep.subr.mxu0 0.0
        %2421 = vmatpush1.msra.mxu0 %v2415
        %2422 = vmatprep.subr.mxu0 0.0
        %2423 = vmatpush1.msra.mxu0 0.0
        %2424 = vmatprep.subr.mxu0 0.0
        %2425 = vmatpush1.msra.mxu0 0.0
        %2426 = vmatprep.subr.mxu0 0.0
        %2427 = vmatpush1.msra.mxu0 0.0
        %2428 = vmatprep.subr.mxu0 0.0
        %2429 = vmatpush1.msra.mxu0 0.0
        %2430 = vmatprep.subr.mxu0 0.0
        %2431 = vmatpush1.msra.mxu0 0.0
        %2432 = vmatprep.subr.mxu0 0.0
        %2433 = vmatpush1.msra.mxu0 0.0
        %2434 = vmatprep.subr.mxu0 0.0
        %2435 = vmatpush1.msra.mxu0 0.0
        %2436 = vmatprep.subr.mxu0 0.0
        %2437 = vmatpush1.msra.mxu0 0.0
        %2438 = vmatprep.subr.mxu0 0.0
        %2439 = vmatpush1.msra.mxu0 0.0
        %2440 = vmatprep.subr.mxu0 0.0
        %2441 = vmatpush1.msra.mxu0 0.0
        %2442 = vmatprep.subr.mxu0 0.0
        %2443 = vmatpush1.msra.mxu0 0.0
        %2444 = vmatprep.subr.mxu0 0.0
        %2445 = vmatpush1.msra.mxu0 0.0
        %2446 = vmatprep.subr.mxu0 0.0
        %2447 = vmatpush1.msra.mxu0 0.0
        %2448 = vmatprep.subr.mxu0 0.0
        %2449 = vmatpush1.msra.mxu0 0.0
        %2450 = vmatprep.subr.mxu0 0.0
        %2451 = vmatpush1.msra.mxu0 0.0
        %2452 = vmatprep.subr.mxu0 0.0
        %2453 = vmatpush1.msra.mxu0 0.0
        %2454 = vmatprep.subr.mxu0 0.0
        %2455 = vmatpush1.msra.mxu0 0.0
        %2456 = vmatprep.subr.mxu0 0.0
        %2457 = vmatpush1.msra.mxu0 0.0
        %2458 = vmatprep.subr.mxu0 0.0
        %2459 = vmatpush1.msra.mxu0 0.0
        %2460 = vmatprep.subr.mxu0 0.0
        %2461 = vmatpush1.msra.mxu0 0.0
        %2462 = vmatprep.subr.mxu0 0.0
        %2463 = vmatpush1.msra.mxu0 0.0
        %2464 = vmatprep.subr.mxu0 0.0
        %2465 = vmatpush1.msra.mxu0 0.0
        %2466 = vmatprep.subr.mxu0 0.0
        %2467 = vmatpush1.msra.mxu0 0.0
        %2468 = vmatprep.subr.mxu0 0.0
        %2469 = vmatpush1.msra.mxu0 0.0
        %2470 = vmatprep.subr.mxu0 0.0
        %2471 = vmatpush1.msra.mxu0 0.0
        %2472 = vmatprep.subr.mxu0 0.0
        %2473 = vmatpush1.msra.mxu0 0.0
        %2474 = vmatprep.subr.mxu0 0.0
        %2475 = vmatpush1.msra.mxu0 0.0
        %2476 = vmatprep.subr.mxu0 0.0
        %2477 = vmatpush1.msra.mxu0 0.0
        %2478 = vmatprep.subr.mxu0 0.0
        %2479 = vmatpush1.msra.mxu0 0.0
        %2480 = vmatprep.subr.mxu0 0.0
        %2481 = vmatpush1.msra.mxu0 0.0
        %2482 = vmatprep.subr.mxu0 0.0
        %2483 = vmatpush1.msra.mxu0 0.0
        %2484 = vmatprep.mubr.f32.mxu0 0.0
        %2485 = vmatmul.mubr.f32.gmra.mrb[0].mxu0 %v2418
        %v2486 = vpop.f32.mrb[0].mxu0
        %v2487 = vadd.f32 0.0, %v2486
        %v2488 = vpop.f32.mrb[0].mxu0
        %2489 = vdwg.mxu0
        %v2490 = vadd.f32 %v2408, %v2487
        %v2491 = vrcp.pop %v2412
        %v2492 = vmul.f32 %v2490, %v2491
        %2494 = vrot.lane.b32.xlu0 %v2492, 16
        %v2495 = vpop.permute.xlu0 %2494
        %2497 = vst.msk [vmem:[#allocation6] sm:$0xff] %vm1623, %v2495
        %v2498 = vld [vmem:[#allocation4] sm:$0xff]
        %v2499 = vld [vmem:[#allocation5] sm:$0xff]
        %2500 = vrot.lane.b32.xlu0 %v1966, 104
        %v2501 = vpop.permute.xlu0 %2500
        %2503 = vrot.lane.b32.xlu0 %v2498, 104
        %v2504 = vpop.permute.xlu0 %2503
        %v2505 = vsel %vm1095, %v2501, 0
        %v2507 = vsel %vm1095, %v2504, 0
        %2509 = vmatprep.subr.mxu0 0.0
        %2510 = vmatpush1.xpose.msra.mxu0 %v2507
        %2511 = vmatprep.subr.mxu0 0.0
        %2512 = vmatpush1.xpose.msra.mxu0 0.0
        %2513 = vmatprep.subr.mxu0 0.0
        %2514 = vmatpush1.xpose.msra.mxu0 0.0
        %2515 = vmatprep.subr.mxu0 0.0
        %2516 = vmatpush1.xpose.msra.mxu0 0.0
        %2517 = vmatprep.subr.mxu0 0.0
        %2518 = vmatpush1.xpose.msra.mxu0 0.0
        %2519 = vmatprep.subr.mxu0 0.0
        %2520 = vmatpush1.xpose.msra.mxu0 0.0
        %2521 = vmatprep.subr.mxu0 0.0
        %2522 = vmatpush1.xpose.msra.mxu0 0.0
        %2523 = vmatprep.subr.mxu0 0.0
        %2524 = vmatpush1.xpose.msra.mxu0 0.0
        %2525 = vmatprep.subr.mxu0 0.0
        %2526 = vmatpush1.xpose.msra.mxu0 0.0
        %2527 = vmatprep.subr.mxu0 0.0
        %2528 = vmatpush1.xpose.msra.mxu0 0.0
        %2529 = vmatprep.subr.mxu0 0.0
        %2530 = vmatpush1.xpose.msra.mxu0 0.0
        %2531 = vmatprep.subr.mxu0 0.0
        %2532 = vmatpush1.xpose.msra.mxu0 0.0
        %2533 = vmatprep.subr.mxu0 0.0
        %2534 = vmatpush1.xpose.msra.mxu0 0.0
        %2535 = vmatprep.subr.mxu0 0.0
        %2536 = vmatpush1.xpose.msra.mxu0 0.0
        %2537 = vmatprep.subr.mxu0 0.0
        %2538 = vmatpush1.xpose.msra.mxu0 0.0
        %2539 = vmatprep.subr.mxu0 0.0
        %2540 = vmatpush1.xpose.msra.mxu0 0.0
        %2541 = vmatprep.subr.mxu0 0.0
        %2542 = vmatpush1.xpose.msra.mxu0 0.0
        %2543 = vmatprep.subr.mxu0 0.0
        %2544 = vmatpush1.xpose.msra.mxu0 0.0
        %2545 = vmatprep.subr.mxu0 0.0
        %2546 = vmatpush1.xpose.msra.mxu0 0.0
        %2547 = vmatprep.subr.mxu0 0.0
        %2548 = vmatpush1.xpose.msra.mxu0 0.0
        %2549 = vmatprep.subr.mxu0 0.0
        %2550 = vmatpush1.xpose.msra.mxu0 0.0
        %2551 = vmatprep.subr.mxu0 0.0
        %2552 = vmatpush1.xpose.msra.mxu0 0.0
        %2553 = vmatprep.subr.mxu0 0.0
        %2554 = vmatpush1.xpose.msra.mxu0 0.0
        %2555 = vmatprep.subr.mxu0 0.0
        %2556 = vmatpush1.xpose.msra.mxu0 0.0
        %2557 = vmatprep.subr.mxu0 0.0
        %2558 = vmatpush1.xpose.msra.mxu0 0.0
        %2559 = vmatprep.subr.mxu0 0.0
        %2560 = vmatpush1.xpose.msra.mxu0 0.0
        %2561 = vmatprep.subr.mxu0 0.0
        %2562 = vmatpush1.xpose.msra.mxu0 0.0
        %2563 = vmatprep.subr.mxu0 0.0
        %2564 = vmatpush1.xpose.msra.mxu0 0.0
        %2565 = vmatprep.subr.mxu0 0.0
        %2566 = vmatpush1.xpose.msra.mxu0 0.0
        %2567 = vmatprep.subr.mxu0 0.0
        %2568 = vmatpush1.xpose.msra.mxu0 0.0
        %2569 = vmatprep.subr.mxu0 0.0
        %2570 = vmatpush1.xpose.msra.mxu0 0.0
        %2571 = vmatprep.subr.mxu0 0.0
        %2572 = vmatpush1.xpose.msra.mxu0 0.0
        %2573 = vmatprep.mubr.f32.mxu0 0.0
        %2574 = vmatmul.mubr.f32.gmra.mrb[0].mxu0 %v2505
        %v2575 = vpop.f32.mrb[0].mxu0
        %v2576 = vadd.f32 0.0, %v2575
        %v2577 = vpop.f32.mrb[0].mxu0
        %2578 = vdwg.mxu0
        %v2579 = vsel %vm1095, %v2576, -inf
        %2580 = vmax.xlane.f32.xlu0 %v2579
        %v2581 = vpop.xlane.xlu0 %2580
        %v2582 = vsub.f32 -inf, %v2581
        %v2583 = vmul.f32 %v2582, 1.442695
        %v2584 = vpow.pop %v2583
        %v2585 = vsub.f32 %v2576, %v2581
        %v2586 = vmul.f32 %v2585, 1.442695
        %v2587 = vpow.pop %v2586
        %v2588 = vmul.f32 %v2584, 0.0
        %v2589 = vsel %vm1095, %v2587, 0.0
        %2590 = vadd.xlane.f32.xlu0 %v2589
        %v2591 = vpop.xlane.xlu0 %2590
        %v2592 = vadd.f32 %v2588, %v2591
        %2594 = vrot.lane.b32.xlu0 %v2499, 104
        %v2595 = vpop.permute.xlu0 %2594
        %v2598 = vsel %vm1095, %v2587, 0
        %2600 = vmatprep.subr.mxu0 0.0
        %2601 = vmatpush1.msra.mxu0 %v2595
        %2602 = vmatprep.subr.mxu0 0.0
        %2603 = vmatpush1.msra.mxu0 0.0
        %2604 = vmatprep.subr.mxu0 0.0
        %2605 = vmatpush1.msra.mxu0 0.0
        %2606 = vmatprep.subr.mxu0 0.0
        %2607 = vmatpush1.msra.mxu0 0.0
        %2608 = vmatprep.subr.mxu0 0.0
        %2609 = vmatpush1.msra.mxu0 0.0
        %2610 = vmatprep.subr.mxu0 0.0
        %2611 = vmatpush1.msra.mxu0 0.0
        %2612 = vmatprep.subr.mxu0 0.0
        %2613 = vmatpush1.msra.mxu0 0.0
        %2614 = vmatprep.subr.mxu0 0.0
        %2615 = vmatpush1.msra.mxu0 0.0
        %2616 = vmatprep.subr.mxu0 0.0
        %2617 = vmatpush1.msra.mxu0 0.0
        %2618 = vmatprep.subr.mxu0 0.0
        %2619 = vmatpush1.msra.mxu0 0.0
        %2620 = vmatprep.subr.mxu0 0.0
        %2621 = vmatpush1.msra.mxu0 0.0
        %2622 = vmatprep.subr.mxu0 0.0
        %2623 = vmatpush1.msra.mxu0 0.0
        %2624 = vmatprep.subr.mxu0 0.0
        %2625 = vmatpush1.msra.mxu0 0.0
        %2626 = vmatprep.subr.mxu0 0.0
        %2627 = vmatpush1.msra.mxu0 0.0
        %2628 = vmatprep.subr.mxu0 0.0
        %2629 = vmatpush1.msra.mxu0 0.0
        %2630 = vmatprep.subr.mxu0 0.0
        %2631 = vmatpush1.msra.mxu0 0.0
        %2632 = vmatprep.subr.mxu0 0.0
        %2633 = vmatpush1.msra.mxu0 0.0
        %2634 = vmatprep.subr.mxu0 0.0
        %2635 = vmatpush1.msra.mxu0 0.0
        %2636 = vmatprep.subr.mxu0 0.0
        %2637 = vmatpush1.msra.mxu0 0.0
        %2638 = vmatprep.subr.mxu0 0.0
        %2639 = vmatpush1.msra.mxu0 0.0
        %2640 = vmatprep.subr.mxu0 0.0
        %2641 = vmatpush1.msra.mxu0 0.0
        %2642 = vmatprep.subr.mxu0 0.0
        %2643 = vmatpush1.msra.mxu0 0.0
        %2644 = vmatprep.subr.mxu0 0.0
        %2645 = vmatpush1.msra.mxu0 0.0
        %2646 = vmatprep.subr.mxu0 0.0
        %2647 = vmatpush1.msra.mxu0 0.0
        %2648 = vmatprep.subr.mxu0 0.0
        %2649 = vmatpush1.msra.mxu0 0.0
        %2650 = vmatprep.subr.mxu0 0.0
        %2651 = vmatpush1.msra.mxu0 0.0
        %2652 = vmatprep.subr.mxu0 0.0
        %2653 = vmatpush1.msra.mxu0 0.0
        %2654 = vmatprep.subr.mxu0 0.0
        %2655 = vmatpush1.msra.mxu0 0.0
        %2656 = vmatprep.subr.mxu0 0.0
        %2657 = vmatpush1.msra.mxu0 0.0
        %2658 = vmatprep.subr.mxu0 0.0
        %2659 = vmatpush1.msra.mxu0 0.0
        %2660 = vmatprep.subr.mxu0 0.0
        %2661 = vmatpush1.msra.mxu0 0.0
        %2662 = vmatprep.subr.mxu0 0.0
        %2663 = vmatpush1.msra.mxu0 0.0
        %2664 = vmatprep.mubr.f32.mxu0 0.0
        %2665 = vmatmul.mubr.f32.gmra.mrb[0].mxu0 %v2598
        %v2666 = vpop.f32.mrb[0].mxu0
        %v2667 = vadd.f32 0.0, %v2666
        %v2668 = vpop.f32.mrb[0].mxu0
        %2669 = vdwg.mxu0
        %v2670 = vadd.f32 %v2588, %v2667
        %v2671 = vrcp.pop %v2592
        %v2672 = vmul.f32 %v2670, %v2671
        %2674 = vrot.lane.b32.xlu0 %v2672, 24
        %v2675 = vpop.permute.xlu0 %2674
        %2677 = vst.msk [vmem:[#allocation6] sm:$0xff] %vm1804, %v2675
        %v2678 = vld [vmem:[#allocation6] sm:$0xff]
        %v2679 = vld [vmem:[#allocation24] sm:$0xff]
        %v2680 = vld [vmem:[#allocation24 + $0x8] sm:$0xff]
        %v2681 = vld [vmem:[#allocation24 + $0x10] sm:$0xff]
        %v2682 = vld [vmem:[#allocation24 + $0x18] sm:$0xff]
        %v2683 = vld [vmem:[#allocation25] sm:$0x1]
        %v2685 = vlaneseq
        %v2686 = vshrl.u32 %v2685, 7
        %v2687 = vsub.s32 0, %v2686
        %v2688 = vrot.slane %v2683, %v2687
        %v2691 = vsel %vm1019, %v2678, 0
        %2693 = vmatprep.subr.mxu0 0.0
        %2694 = vmatpush1.msra.mxu0 %v2679
        %2695 = vmatprep.subr.mxu0 0.0
        %2696 = vmatpush1.msra.mxu0 %v2680
        %2697 = vmatprep.subr.mxu0 0.0
        %2698 = vmatpush1.msra.mxu0 %v2681
        %2699 = vmatprep.subr.mxu0 0.0
        %2700 = vmatpush1.msra.mxu0 %v2682
        %2701 = vmatprep.subr.mxu0 0.0
        %2702 = vmatpush1.msra.mxu0 0.0
        %2703 = vmatprep.subr.mxu0 0.0
        %2704 = vmatpush1.msra.mxu0 0.0
        %2705 = vmatprep.subr.mxu0 0.0
        %2706 = vmatpush1.msra.mxu0 0.0
        %2707 = vmatprep.subr.mxu0 0.0
        %2708 = vmatpush1.msra.mxu0 0.0
        %2709 = vmatprep.subr.mxu0 0.0
        %2710 = vmatpush1.msra.mxu0 0.0
        %2711 = vmatprep.subr.mxu0 0.0
        %2712 = vmatpush1.msra.mxu0 0.0
        %2713 = vmatprep.subr.mxu0 0.0
        %2714 = vmatpush1.msra.mxu0 0.0
        %2715 = vmatprep.subr.mxu0 0.0
        %2716 = vmatpush1.msra.mxu0 0.0
        %2717 = vmatprep.subr.mxu0 0.0
        %2718 = vmatpush1.msra.mxu0 0.0
        %2719 = vmatprep.subr.mxu0 0.0
        %2720 = vmatpush1.msra.mxu0 0.0
        %2721 = vmatprep.subr.mxu0 0.0
        %2722 = vmatpush1.msra.mxu0 0.0
        %2723 = vmatprep.subr.mxu0 0.0
        %2724 = vmatpush1.msra.mxu0 0.0
        %2725 = vmatprep.subr.mxu0 0.0
        %2726 = vmatpush1.msra.mxu0 0.0
        %2727 = vmatprep.subr.mxu0 0.0
        %2728 = vmatpush1.msra.mxu0 0.0
        %2729 = vmatprep.subr.mxu0 0.0
        %2730 = vmatpush1.msra.mxu0 0.0
        %2731 = vmatprep.subr.mxu0 0.0
        %2732 = vmatpush1.msra.mxu0 0.0
        %2733 = vmatprep.subr.mxu0 0.0
        %2734 = vmatpush1.msra.mxu0 0.0
        %2735 = vmatprep.subr.mxu0 0.0
        %2736 = vmatpush1.msra.mxu0 0.0
        %2737 = vmatprep.subr.mxu0 0.0
        %2738 = vmatpush1.msra.mxu0 0.0
        %2739 = vmatprep.subr.mxu0 0.0
        %2740 = vmatpush1.msra.mxu0 0.0
        %2741 = vmatprep.subr.mxu0 0.0
        %2742 = vmatpush1.msra.mxu0 0.0
        %2743 = vmatprep.subr.mxu0 0.0
        %2744 = vmatpush1.msra.mxu0 0.0
        %2745 = vmatprep.subr.mxu0 0.0
        %2746 = vmatpush1.msra.mxu0 0.0
        %2747 = vmatprep.subr.mxu0 0.0
        %2748 = vmatpush1.msra.mxu0 0.0
        %2749 = vmatprep.subr.mxu0 0.0
        %2750 = vmatpush1.msra.mxu0 0.0
        %2751 = vmatprep.subr.mxu0 0.0
        %2752 = vmatpush1.msra.mxu0 0.0
        %2753 = vmatprep.subr.mxu0 0.0
        %2754 = vmatpush1.msra.mxu0 0.0
        %2755 = vmatprep.subr.mxu0 0.0
        %2756 = vmatpush1.msra.mxu0 0.0
        %2757 = vmatprep.mubr.f32.mxu0 0.0
        %2758 = vmatmul.mubr.f32.gmra.mrb[0].mxu0 %v2691
        %v2759 = vpop.f32.mrb[0].mxu0
        %v2760 = vadd.f32 %v2688, %v2759
        %v2761 = vpop.f32.mrb[0].mxu0
        %2762 = vdwg.mxu0
        %v2763 = vadd.f32 %v2760, %v1891
        %v2764 = vld [vmem:[#allocation27] sm:$0xff]
        %v2765 = vld [vmem:[#allocation27 + $0x8] sm:$0xff]
        %v2766 = vld [vmem:[#allocation27 + $0x10] sm:$0xff]
        %v2767 = vld [vmem:[#allocation27 + $0x18] sm:$0xff]
        %v2768 = vld [vmem:[#allocation28] sm:$0x1]
        %v2770 = vlaneseq
        %v2771 = vshrl.u32 %v2770, 7
        %v2772 = vsub.s32 0, %v2771
        %v2773 = vrot.slane %v2768, %v2772
        %v2776 = vsel %vm1019, %v2763, 0
        %2778 = vmatprep.subr.mxu0 0.0
        %2779 = vmatpush1.msra.mxu0 %v2764
        %2780 = vmatprep.subr.mxu0 0.0
        %2781 = vmatpush1.msra.mxu0 %v2765
        %2782 = vmatprep.subr.mxu0 0.0
        %2783 = vmatpush1.msra.mxu0 %v2766
        %2784 = vmatprep.subr.mxu0 0.0
        %2785 = vmatpush1.msra.mxu0 %v2767
        %2786 = vmatprep.subr.mxu0 0.0
        %2787 = vmatpush1.msra.mxu0 0.0
        %2788 = vmatprep.subr.mxu0 0.0
        %2789 = vmatpush1.msra.mxu0 0.0
        %2790 = vmatprep.subr.mxu0 0.0
        %2791 = vmatpush1.msra.mxu0 0.0
        %2792 = vmatprep.subr.mxu0 0.0
        %2793 = vmatpush1.msra.mxu0 0.0
        %2794 = vmatprep.subr.mxu0 0.0
        %2795 = vmatpush1.msra.mxu0 0.0
        %2796 = vmatprep.subr.mxu0 0.0
        %2797 = vmatpush1.msra.mxu0 0.0
        %2798 = vmatprep.subr.mxu0 0.0
        %2799 = vmatpush1.msra.mxu0 0.0
        %2800 = vmatprep.subr.mxu0 0.0
        %2801 = vmatpush1.msra.mxu0 0.0
        %2802 = vmatprep.subr.mxu0 0.0
        %2803 = vmatpush1.msra.mxu0 0.0
        %2804 = vmatprep.subr.mxu0 0.0
        %2805 = vmatpush1.msra.mxu0 0.0
        %2806 = vmatprep.subr.mxu0 0.0
        %2807 = vmatpush1.msra.mxu0 0.0
        %2808 = vmatprep.subr.mxu0 0.0
        %2809 = vmatpush1.msra.mxu0 0.0
        %2810 = vmatprep.subr.mxu0 0.0
        %2811 = vmatpush1.msra.mxu0 0.0
        %2812 = vmatprep.subr.mxu0 0.0
        %2813 = vmatpush1.msra.mxu0 0.0
        %2814 = vmatprep.subr.mxu0 0.0
        %2815 = vmatpush1.msra.mxu0 0.0
        %2816 = vmatprep.subr.mxu0 0.0
        %2817 = vmatpush1.msra.mxu0 0.0
        %2818 = vmatprep.subr.mxu0 0.0
        %2819 = vmatpush1.msra.mxu0 0.0
        %2820 = vmatprep.subr.mxu0 0.0
        %2821 = vmatpush1.msra.mxu0 0.0
        %2822 = vmatprep.subr.mxu0 0.0
        %2823 = vmatpush1.msra.mxu0 0.0
        %2824 = vmatprep.subr.mxu0 0.0
        %2825 = vmatpush1.msra.mxu0 0.0
        %2826 = vmatprep.subr.mxu0 0.0
        %2827 = vmatpush1.msra.mxu0 0.0
        %2828 = vmatprep.subr.mxu0 0.0
        %2829 = vmatpush1.msra.mxu0 0.0
        %2830 = vmatprep.subr.mxu0 0.0
        %2831 = vmatpush1.msra.mxu0 0.0
        %2832 = vmatprep.subr.mxu0 0.0
        %2833 = vmatpush1.msra.mxu0 0.0
        %2834 = vmatprep.subr.mxu0 0.0
        %2835 = vmatpush1.msra.mxu0 0.0
        %2836 = vmatprep.subr.mxu0 0.0
        %2837 = vmatpush1.msra.mxu0 0.0
        %2838 = vmatprep.subr.mxu0 0.0
        %2839 = vmatpush1.msra.mxu0 0.0
        %2840 = vmatprep.subr.mxu0 0.0
        %2841 = vmatpush1.msra.mxu0 0.0
        %2842 = vmatprep.mubr.f32.mxu0 0.0
        %2843 = vmatmul.mubr.f32.gmra.mrb[0].mxu0 %v2776
        %v2844 = vpop.f32.mrb[0].mxu0
        %v2845 = vadd.f32 %v2773, %v2844
        %v2846 = vpop.f32.mrb[0].mxu0
        %2847 = vdwg.mxu0
        %2848 = vst.msk [vmem:[%s704] sm:$0xff] %vm1019, %v2845
        %s2849 = sand.u32 %s368, 1
        %s2850 = scalar_lea.sflag [#allocation9], %s2849
        %s2851 = sand.u32 %s368, 1
        %s2852 = smul.addr %s2851, 8
        %s2853 = scalar_lea.vmem [#allocation30], %s2852
        // Predicated region
        $region137: #{tpu_custom_call.1} parent=75 // pred_check
          %p2854 = pneg %p378
        $region138: #{tpu_custom_call.1} parent=75 // pred_check_branch
          %2856 = sbr.rel (%p2854) target = $region140
        $region139: #{tpu_custom_call.1} parent=75 // pred_region
          %s2858 = ssub.s32 128, 128
          %2859 = vsyncadd %s2850, %s2858
          %s2860 = sadd.s32 %s45, %s44
          %s2861 = smul.addr %s2860, 128
          %s2862 = scalar_lea.hbm %s14, %s2861
          %s2864 = sshll.u32 %s2853, 4
          %s2865 = int_to_ptr.vmem [resolvable:$true] %s2864
          %2867 = dma.vmem_to_hbm [thread:$0]  %s2865, 128, %s2862, %s2850
        $region140: #{tpu_custom_call.1} parent=75 // pred_fallthru
          _
      $region76: #{tpu_custom_call.1} parent=5 // pred_fallthru
        _
      %p2868 = scmp.le.s32.totalorder 2, %s35
      // Predicated region
      $region141: #{tpu_custom_call.1} parent=5 // pred_check
        %p2869 = pneg %p2868
      $region142: #{tpu_custom_call.1} parent=5 // pred_check_branch
        %2871 = sbr.rel (%p2869) target = $region144
      $region143: #{tpu_custom_call.1} parent=5 // pred_region
        %s2872 = ssub.s32 %s35, 2
        // Predicated region
        $region145: #{tpu_custom_call.1} parent=143 // pred_check
          %p2873 = pneg %p384
        $region146: #{tpu_custom_call.1} parent=143 // pred_check_branch
          %2875 = sbr.rel (%p2873) target = $region148
        $region147: #{tpu_custom_call.1} parent=143 // pred_region
          %s2876 = sand.u32 %s369, 1
          %s2877 = scalar_lea.sflag [#allocation9], %s2876
          %s2878 = sand.u32 %s369, 1
          %s2879 = smul.addr %s2878, 8
          %s2880 = scalar_lea.vmem [#allocation30], %s2879
          %2881 = dma.done %s2877, 128
        $region148: #{tpu_custom_call.1} parent=143 // pred_fallthru
          _
      $region144: #{tpu_custom_call.1} parent=5 // pred_fallthru
        _
    $region6: #{tpu_custom_call.1} parent=1 // loop_footer
      %s39 = sadd.s32 1, %s35
    $region7: #{tpu_custom_call.1} parent=1 // loop_footer_branch
      %34 = sbr.rel target = $region3
    $region8: #{tpu_custom_call.1} parent=1 // loop_exit
      _
    %2882 = vsyncpa [#allocation8], 1
    %s2883 = scalar_lea.sflag [#allocation8], 1
    %2884 = vsyncpa %s2883, 1
    %2885 = vsyncpa [#allocation11], 1
    %s2886 = scalar_lea.sflag [#allocation11], 1
    %2887 = vsyncpa %s2886, 1
    %2888 = vsyncpa [#allocation14], 1
    %2889 = vsyncpa [#allocation17], 1
    %2890 = vsyncpa [#allocation20], 1
    %2891 = vsyncpa [#allocation23], 1
    %2892 = vsyncpa [#allocation26], 1
    %2893 = vsyncpa [#allocation29], 1
    %2894 = vsyncpa [#allocation9], 1
    %s2895 = scalar_lea.sflag [#allocation9], 1
    %2896 = vsyncpa %s2895, 1

</llo_original>
